<compile_context>
chip_gen: v6e
topology: v6e:2x2x1
jax: 0.10.0
libtpu: 0.0.40
codegen_flags: <defaults>
</compile_context>

<pallas_src>
import functools

import jax
import jax.numpy as jnp
import numpy as np
from jax.experimental import pallas as pl
from jax.experimental.pallas import tpu as pltpu

HID = 128          # hidden width fixed by the module (p_in -> 128 channels)
EPS = 1e-5         # eps of both F.instance_norm and nn.BatchNorm2d defaults


# ---------------------------------------------------------------------------
# Shared math (used both inside the Pallas kernel and by the pure-JAX reference)
# ---------------------------------------------------------------------------
def _log_sigmoid(z):
    # stable: min(z, 0) - log(1 + exp(-|z|))
    return jnp.minimum(z, 0.0) - jnp.log(1.0 + jnp.exp(-jnp.abs(z)))


def _logsumexp(z, axis):
    m = jnp.max(z, axis=axis, keepdims=True)
    return m + jnp.log(jnp.sum(jnp.exp(z - m), axis=axis, keepdims=True))


def _conv1x1(h3, w, b):
    """(TB, N, Cin) @ (Cin, Cout) + b -> (TB, N, Cout).  bf16 MXU, f32 accumulate."""
    tb, n, cin = h3.shape
    h2 = h3.reshape(tb * n, cin).astype(w.dtype)   # merge leading dims (minor dim kept)
    y = jnp.dot(h2, w, preferred_element_type=jnp.float32) + b
    return y.reshape(tb, n, w.shape[1])


def _forward_batch(x3, params, dout):
    """Forward for a (TB, N, CinP) slab.  Returns (TB, N, HEADP) f32 where
    lanes [0, dout) hold log_ng, [dout, 2*dout) hold log_ng2 and the remaining
    lanes are don't-care padding (sliced off by the wrapper).

    `res_w` / `res_b` / `res_scale` / `res_shift` may be Pallas Refs (indexed
    per stage inside the kernel) or plain arrays (pure-JAX reference path)."""
    (pin_w, pin_b, res_w, res_b, res_scale, res_shift,
     head_w, head_b, gan_w, gan_b) = params
    tb, n, _ = x3.shape
    n_stage = res_w.shape[0]

    # p_in + ReLU  (K padded to a sublane multiple in prepare_params/wrapper)
    x = jnp.maximum(_conv1x1(x3, pin_w, pin_b), 0.0)            # (TB, N, HID)

    # residual blocks: conv -> instance_norm -> folded BN(eval) -> ReLU, x2, + skip
    # norm + BN + ReLU fused into a single per-channel FMA (review feedback).
    for i in range(n_stage // 2):
        res = x
        for j in range(2):
            idx = 2 * i + j
            h = _conv1x1(x, res_w[idx], res_b[idx])              # (TB, N, HID) f32
            mu = jnp.mean(h, axis=1, keepdims=True)              # per sample/channel
            var = jnp.maximum(
                jnp.mean(h * h, axis=1, keepdims=True) - mu * mu, 0.0)
            m = jax.lax.rsqrt(var + EPS) * res_scale[idx]        # (TB, 1, HID)
            c = res_shift[idx] - mu * m
            x = jnp.maximum(h * m + c, 0.0)
        x = x + res
    out = x                                                      # (TB, N, HID)

    # GAN_Block attention: a = sum(relu(tanh(p_out(out)))^2) (scalar per sample).
    # Only the p_out half of the fused head is needed here.
    w_att = _conv1x1(out, head_w[:, :dout], head_b[:, :dout])    # (TB, N, Dout)
    wr = jnp.maximum(jnp.tanh(w_att), 0.0)
    a = jnp.sum(wr * wr, axis=(1, 2), keepdims=True)             # (TB, 1, 1)

    # Closed-form graph aggregation:  A = a*ones(N,N) + I  =>
    #   D = I / sqrt(N*a + 1),   L @ out = (a * colsum(out) + out) / (N*a + 1)
    col = jnp.sum(out, axis=1, keepdims=True)                    # (TB, 1, HID)
    g = (a * col + out) * (1.0 / (n * a + 1.0))                  # (TB, N, HID)

    # GAN conv (BN folded into gan_w/gan_b) + ReLU, residual add
    out2 = jnp.maximum(_conv1x1(g, gan_w, gan_b), 0.0) + out

    # Fused, lane-padded head + log-sigmoid + the two log-softmax normalizers.
    lp = _log_sigmoid(_conv1x1(out2, head_w, head_b))            # (TB, N, HEADP)
    lane = jax.lax.broadcasted_iota(jnp.int32, lp.shape, 2)
    # log_ng: normalize over nodes (torch dim=1 after transpose) — per lane.
    ng = lp - _logsumexp(lp, axis=1)
    # log_ng2: normalize over output_dim.  After the PyTorch transpose the
    # tensor is (B, N, output_dim, 1), so dim=-2 is the output_dim axis.
    in2 = jnp.logical_and(lane >= dout, lane < 2 * dout)
    ng2 = lp - _logsumexp(jnp.where(in2, lp, -jnp.inf), axis=2)
    # lanes [0, dout): log_ng; [dout, 2*dout): log_ng2; rest: padding.
    return jnp.where(lane < dout, ng, ng2)


# ---------------------------------------------------------------------------
# Pallas kernel + wrapper
# ---------------------------------------------------------------------------
def _aganet_kernel(dout, x_ref, pin_w, pin_b, res_w, res_b, res_scale, res_shift,
                   head_w, head_b, gan_w, gan_b, out_ref):
    params = (pin_w[...], pin_b[...], res_w, res_b, res_scale, res_shift,
              head_w[...], head_b[...], gan_w[...], gan_b[...])
    out_ref[...] = _forward_batch(x_ref[...], params, dout)


def prepare_params(params):
    """Fold BN(eval) into scale/shift (or into gan conv), fuse + lane-pad the
    heads, pad p_in's K dim, cast matmul weights to bf16."""
    (pin_w, pin_b, res_w, res_b, res_bn,
     pout_w, pout_b, pout2_w, pout2_b, gan_w, gan_b, gan_bn) = params
    bf16 = jnp.bfloat16

    # residual BN(eval): rows [gamma, beta, running_mean, running_var]
    r_scale = res_bn[:, 0] * jax.lax.rsqrt(res_bn[:, 3] + EPS)   # (n_stage, HID)
    r_shift = res_bn[:, 1] - res_bn[:, 2] * r_scale

    # GAN-block BN follows its conv directly (no instance norm): fold into w/b.
    g_scale = gan_bn[0] * jax.lax.rsqrt(gan_bn[3] + EPS)
    g_shift = gan_bn[1] - gan_bn[2] * g_scale
    gan_w_f = gan_w * g_scale[None, :]
    gan_b_f = gan_b * g_scale[None, :] + g_shift[None, :]

    # p_in: pad contraction dim to a sublane multiple (>= 8).
    cin = pin_w.shape[0]
    cin_p = max(8, ((cin + 7) // 8) * 8)
    pin_w_p = jnp.pad(pin_w, ((0, cin_p - cin), (0, 0)))

    # Fuse p_out / p_out2 into one head and zero-pad its output channels to a
    # multiple of 128 -> lane-dense final matmul, elementwise chain and store.
    dout = pout_w.shape[1]
    head_w = jnp.concatenate([pout_w, pout2_w], axis=1)          # (HID, 2*Dout)
    head_b = jnp.concatenate([pout_b, pout2_b], axis=1)
    headp = max(128, ((2 * dout + 127) // 128) * 128)
    head_w = jnp.pad(head_w, ((0, 0), (0, headp - 2 * dout)))
    head_b = jnp.pad(head_b, ((0, 0), (0, headp - 2 * dout)))

    return (pin_w_p.astype(bf16), pin_b,
            res_w.astype(bf16), res_b,
            r_scale[:, None, :], r_shift[:, None, :],
            head_w.astype(bf16), head_b,
            gan_w_f.astype(bf16), gan_b_f)


def aganet_pallas(inputs, params, input_dim, tb=None):
    # PyTorch: inputs_ = inputs.transpose(1, 2).unsqueeze(-1); x = inputs_[:, :input_dim]
    # In the channels-last layout that is just a feature-axis slice.
    x_in = inputs[..., :input_dim].astype(jnp.float32)
    B, N, _ = x_in.shape

    kparams = prepare_params(params)
    dout = params[5].shape[1]            # p_out output channels
    cin_p = kparams[0].shape[0]          # padded K of p_in
    headp = kparams[6].shape[1]          # lane-padded head width (multiple of 128)

    if cin_p != input_dim:
        x_in = jnp.pad(x_in, ((0, 0), (0, 0), (0, cin_p - input_dim)))

    if tb is None:
        # ~1024 rows per grid step fills the MXU pushes and amortizes the
        # per-step overhead while keeping the live f32 working set a few MiB
        # (safe under every generation's scoped-VMEM default, incl. v7x).
        tb = max(1, min(B, pl.cdiv(1024, N)))
        if B > 1:
            # Keep >= 2 grid steps so dimension_semantics=("parallel",) can
            # shard the batch across both v7x TensorCores.
            tb = min(tb, pl.cdiv(B, 2))
    bp = pl.cdiv(B, tb) * tb
    if bp != B:
        x_in = jnp.pad(x_in, ((0, bp - B), (0, 0), (0, 0)))
    grid = (bp // tb,)

    def _const_map(ndim):
        return lambda b: (0,) * ndim

    # Parameter blocks use constant index maps; their DMA is issued once and
    # the ~0.5 MiB (incl. default double-buffering) is negligible, so explicit
    # pl.Buffered(1) single-buffering is not worth the extra plumbing here.
    in_specs = [pl.BlockSpec((tb, N, cin_p), lambda b: (b, 0, 0))]
    in_specs += [pl.BlockSpec(p.shape, _const_map(p.ndim)) for p in kparams]
    out_specs = pl.BlockSpec((tb, N, headp), lambda b: (b, 0, 0))
    out_shape = jax.ShapeDtypeStruct((bp, N, headp), jnp.float32)

    packed = pl.pallas_call(
        functools.partial(_aganet_kernel, dout),
        grid=grid,
        in_specs=in_specs,
        out_specs=out_specs,
        out_shape=out_shape,
        compiler_params=pltpu.CompilerParams(
            dimension_semantics=("parallel",),
            vmem_limit_bytes=32 * 1024 * 1024),
    )(x_in, *kparams)

    packed = packed[:B]
    # Match the PyTorch output shapes (B, N, output_dim, 1).
    return packed[..., :dout, None], packed[..., dout:2 * dout, None]


# ---------------------------------------------------------------------------
# Deterministic parameter init (shapes from AGANet.__init__; synthetic weights)
# ---------------------------------------------------------------------------
def init_params(key, input_dim, output_dim, blocks=5):
    n_stage = 2 * blocks
    keys = jax.random.split(key, 9)

    def nrm(k, shape, scale=0.1):
        return scale * jax.random.normal(k, shape, dtype=jnp.float32)

    pin_w = nrm(keys[0], (input_dim, HID), 0.3)          # Conv2d(input_dim,128,1) weight^T
    pin_b = nrm(keys[1], (1, HID))
    res_w = nrm(keys[2], (n_stage, HID, HID), 0.08)      # 5 blocks x 2 Conv2d(128,128,1)
    res_b = nrm(keys[3], (n_stage, 1, HID))
    res_bn = jnp.stack([
        1.0 + nrm(keys[4], (n_stage, HID)),                                   # gamma
        nrm(keys[5], (n_stage, HID)),                                         # beta
        nrm(keys[6], (n_stage, HID)),                                         # running_mean
        1.0 + 0.5 * jax.random.uniform(keys[7], (n_stage, HID),
                                       dtype=jnp.float32),                    # running_var
    ], axis=1)                                            # (n_stage, 4, HID)

    kk = jax.random.split(keys[8], 8)
    pout_w = nrm(kk[0], (HID, output_dim), 0.2)           # p_out
    pout_b = nrm(kk[1], (1, output_dim))
    pout2_w = nrm(kk[2], (HID, output_dim), 0.2)          # p_out2 (separate_weights)
    pout2_b = nrm(kk[3], (1, output_dim))
    gan_w = nrm(kk[4], (HID, HID), 0.08)                  # GAN_Block conv
    gan_b = nrm(kk[5], (1, HID))
    gan_bn = jnp.stack([
        1.0 + nrm(kk[6], (HID,)),
        nrm(kk[7], (HID,)),
        jnp.zeros((HID,), jnp.float32),
        jnp.ones((HID,), jnp.float32),
    ], axis=0)                                            # (4, HID)

    return (pin_w, pin_b, res_w, res_b, res_bn,
            pout_w, pout_b, pout2_w, pout2_b, gan_w, gan_b, gan_bn)


# ---------------------------------------------------------------------------
if __name__ == "__main__":
    key = jax.random.PRNGKey(0)
    B, N = 2, 8                      # batch, number of "nodes" (spatial H, W=1)
    input_dim, output_dim = 4, 4

    k_in, k_par = jax.random.split(key)
    inputs = jax.random.normal(k_in, (B, N, input_dim), dtype=jnp.float32)
    params = init_params(k_par, input_dim, output_dim, blocks=5)

    log_ng, log_ng2 = aganet_pallas(inputs, params, input_dim)
    jax.block_until_ready((log_ng, log_ng2))

    # Pure-JAX reference (same shared math on the full batch) for a sanity check.
    kparams = prepare_params(params)
    cin_p = kparams[0].shape[0]
    x_ref = inputs[..., :input_dim].astype(jnp.float32)
    if cin_p != input_dim:
        x_ref = jnp.pad(x_ref, ((0, 0), (0, 0), (0, cin_p - input_dim)))
    ref = _forward_batch(x_ref, kparams, output_dim)
    ref_ng = ref[..., :output_dim]
    ref_ng2 = ref[..., output_dim:2 * output_dim]
    np.testing.assert_allclose(np.asarray(log_ng[..., 0]), np.asarray(ref_ng),
                               rtol=5e-3, atol=5e-3)
    np.testing.assert_allclose(np.asarray(log_ng2[..., 0]), np.asarray(ref_ng2),
                               rtol=5e-3, atol=5e-3)

    assert log_ng.shape == (B, N, output_dim, 1)
    assert log_ng2.shape == (B, N, output_dim, 1)
    print("KERNEL_OK")
</pallas_src>

<mosaic_0001>
module attributes {stable_mosaic.version = 11 : i64} {
  func.func @_aganet_kernel(%arg0: i32, %arg1: memref<1x8x8xf32, #tpu.memory_space<vmem>>, %arg2: memref<8x128xbf16, #tpu.memory_space<vmem>>, %arg3: memref<1x128xf32, #tpu.memory_space<vmem>>, %arg4: memref<10x128x128xbf16, #tpu.memory_space<vmem>>, %arg5: memref<10x1x128xf32, #tpu.memory_space<vmem>>, %arg6: memref<10x1x128xf32, #tpu.memory_space<vmem>>, %arg7: memref<10x1x128xf32, #tpu.memory_space<vmem>>, %arg8: memref<128x128xbf16, #tpu.memory_space<vmem>>, %arg9: memref<1x128xf32, #tpu.memory_space<vmem>>, %arg10: memref<128x128xbf16, #tpu.memory_space<vmem>>, %arg11: memref<1x128xf32, #tpu.memory_space<vmem>>, %arg12: memref<1x8x128xf32, #tpu.memory_space<vmem>>) attributes {dimension_semantics = [#tpu.dimension_semantics<parallel>], iteration_bounds = array<i64: 2>, scalar_prefetch = 0 : i64, scratch_operands = 0 : i64, tpu.core_type = #tpu.core_type<tc>, window_params = [{transform_indices = @transform_0, window_bounds = array<i64: 1, 8, 8>}, {pipeline_mode = #tpu.pipeline_mode<synchronous>, transform_indices = @transform_1, window_bounds = array<i64: 8, 128>}, {pipeline_mode = #tpu.pipeline_mode<synchronous>, transform_indices = @transform_2, window_bounds = array<i64: 1, 128>}, {pipeline_mode = #tpu.pipeline_mode<synchronous>, transform_indices = @transform_3, window_bounds = array<i64: 10, 128, 128>}, {pipeline_mode = #tpu.pipeline_mode<synchronous>, transform_indices = @transform_4, window_bounds = array<i64: 10, 1, 128>}, {pipeline_mode = #tpu.pipeline_mode<synchronous>, transform_indices = @transform_5, window_bounds = array<i64: 10, 1, 128>}, {pipeline_mode = #tpu.pipeline_mode<synchronous>, transform_indices = @transform_6, window_bounds = array<i64: 10, 1, 128>}, {pipeline_mode = #tpu.pipeline_mode<synchronous>, transform_indices = @transform_7, window_bounds = array<i64: 128, 128>}, {pipeline_mode = #tpu.pipeline_mode<synchronous>, transform_indices = @transform_8, window_bounds = array<i64: 1, 128>}, {pipeline_mode = #tpu.pipeline_mode<synchronous>, transform_indices = @transform_9, window_bounds = array<i64: 128, 128>}, {pipeline_mode = #tpu.pipeline_mode<synchronous>, transform_indices = @transform_10, window_bounds = array<i64: 1, 128>}, {transform_indices = @transform_11, window_bounds = array<i64: 1, 8, 128>}]} {
    %c0 = arith.constant 0 : index
    %c0_0 = arith.constant 0 : index
    %0 = vector.load %arg2[%c0, %c0_0] : memref<8x128xbf16, #tpu.memory_space<vmem>>, vector<8x128xbf16>
    %c0_1 = arith.constant 0 : index
    %c0_2 = arith.constant 0 : index
    %1 = vector.load %arg3[%c0_1, %c0_2] : memref<1x128xf32, #tpu.memory_space<vmem>>, vector<1x128xf32>
    %c0_3 = arith.constant 0 : index
    %c0_4 = arith.constant 0 : index
    %2 = vector.load %arg8[%c0_3, %c0_4] : memref<128x128xbf16, #tpu.memory_space<vmem>>, vector<128x128xbf16>
    %c0_5 = arith.constant 0 : index
    %c0_6 = arith.constant 0 : index
    %3 = vector.load %arg9[%c0_5, %c0_6] : memref<1x128xf32, #tpu.memory_space<vmem>>, vector<1x128xf32>
    %c0_7 = arith.constant 0 : index
    %c0_8 = arith.constant 0 : index
    %4 = vector.load %arg10[%c0_7, %c0_8] : memref<128x128xbf16, #tpu.memory_space<vmem>>, vector<128x128xbf16>
    %c0_9 = arith.constant 0 : index
    %c0_10 = arith.constant 0 : index
    %5 = vector.load %arg11[%c0_9, %c0_10] : memref<1x128xf32, #tpu.memory_space<vmem>>, vector<1x128xf32>
    %c0_11 = arith.constant 0 : index
    %c0_12 = arith.constant 0 : index
    %c0_13 = arith.constant 0 : index
    %6 = vector.load %arg1[%c0_11, %c0_12, %c0_13] : memref<1x8x8xf32, #tpu.memory_space<vmem>>, vector<1x8x8xf32>
    %7 = vector.shape_cast %6 : vector<1x8x8xf32> to vector<8x8xf32>
    %8 = arith.truncf %7 : vector<8x8xf32> to vector<8x8xbf16>
    %cst = arith.constant dense<0.000000e+00> : vector<8x128xf32>
    %9 = tpu.matmul %8, %0, %cst {dimension_numbers = #tpu.dot_dimension_numbers<[1], [0], [0], [1], [0, 0, 1, 1], [], []>} : vector<8x8xbf16>, vector<8x128xbf16>, vector<8x128xf32> -> vector<8x128xf32>
    %10 = vector.broadcast %1 : vector<1x128xf32> to vector<8x128xf32>
    %11 = arith.addf %9, %10 : vector<8x128xf32>
    %12 = vector.shape_cast %11 : vector<8x128xf32> to vector<1x8x128xf32>
    %cst_14 = arith.constant 0.000000e+00 : f32
    %13 = vector.broadcast %cst_14 : f32 to vector<1x8x128xf32>
    %14 = arith.maximumf %12, %13 : vector<1x8x128xf32>
    %c0_15 = arith.constant 0 : index
    %c0_16 = arith.constant 0 : index
    %c0_17 = arith.constant 0 : index
    %15 = vector.load %arg4[%c0_15, %c0_16, %c0_17] : memref<10x128x128xbf16, #tpu.memory_space<vmem>>, vector<1x128x128xbf16>
    %16 = vector.shape_cast %15 : vector<1x128x128xbf16> to vector<128x128xbf16>
    %c0_18 = arith.constant 0 : index
    %c0_19 = arith.constant 0 : index
    %c0_20 = arith.constant 0 : index
    %17 = vector.load %arg5[%c0_18, %c0_19, %c0_20] : memref<10x1x128xf32, #tpu.memory_space<vmem>>, vector<1x1x128xf32>
    %18 = vector.shape_cast %17 : vector<1x1x128xf32> to vector<1x128xf32>
    %19 = vector.shape_cast %14 : vector<1x8x128xf32> to vector<8x128xf32>
    %20 = arith.truncf %19 : vector<8x128xf32> to vector<8x128xbf16>
    %cst_21 = arith.constant dense<0.000000e+00> : vector<8x128xf32>
    %21 = tpu.matmul %20, %16, %cst_21 {dimension_numbers = #tpu.dot_dimension_numbers<[1], [0], [0], [1], [0, 0, 1, 1], [], []>} : vector<8x128xbf16>, vector<128x128xbf16>, vector<8x128xf32> -> vector<8x128xf32>
    %22 = vector.broadcast %18 : vector<1x128xf32> to vector<8x128xf32>
    %23 = arith.addf %21, %22 : vector<8x128xf32>
    %24 = vector.shape_cast %23 : vector<8x128xf32> to vector<1x8x128xf32>
    %cst_22 = arith.constant dense<0.000000e+00> : vector<1x128xf32>
    %25 = vector.multi_reduction <add>, %24, %cst_22 [1] : vector<1x8x128xf32> to vector<1x128xf32>
    %26 = vector.shape_cast %25 : vector<1x128xf32> to vector<1x1x128xf32>
    %cst_23 = arith.constant 8.000000e+00 : f32
    %27 = vector.broadcast %cst_23 : f32 to vector<1x1x128xf32>
    %28 = arith.divf %26, %27 : vector<1x1x128xf32>
    %29 = arith.mulf %24, %24 : vector<1x8x128xf32>
    %cst_24 = arith.constant dense<0.000000e+00> : vector<1x128xf32>
    %30 = vector.multi_reduction <add>, %29, %cst_24 [1] : vector<1x8x128xf32> to vector<1x128xf32>
    %31 = vector.shape_cast %30 : vector<1x128xf32> to vector<1x1x128xf32>
    %cst_25 = arith.constant 8.000000e+00 : f32
    %32 = vector.broadcast %cst_25 : f32 to vector<1x1x128xf32>
    %33 = arith.divf %31, %32 : vector<1x1x128xf32>
    %34 = arith.mulf %28, %28 : vector<1x1x128xf32>
    %35 = arith.subf %33, %34 : vector<1x1x128xf32>
    %cst_26 = arith.constant 0.000000e+00 : f32
    %36 = vector.broadcast %cst_26 : f32 to vector<1x1x128xf32>
    %37 = arith.maximumf %35, %36 : vector<1x1x128xf32>
    %cst_27 = arith.constant 9.99999974E-6 : f32
    %38 = vector.broadcast %cst_27 : f32 to vector<1x1x128xf32>
    %39 = arith.addf %37, %38 : vector<1x1x128xf32>
    %40 = math.rsqrt %39 : vector<1x1x128xf32>
    %c0_28 = arith.constant 0 : index
    %c0_29 = arith.constant 0 : index
    %c0_30 = arith.constant 0 : index
    %41 = vector.load %arg6[%c0_28, %c0_29, %c0_30] : memref<10x1x128xf32, #tpu.memory_space<vmem>>, vector<1x1x128xf32>
    %42 = vector.shape_cast %41 : vector<1x1x128xf32> to vector<1x128xf32>
    %43 = vector.shape_cast %42 : vector<1x128xf32> to vector<1x1x128xf32>
    %44 = arith.mulf %40, %43 : vector<1x1x128xf32>
    %c0_31 = arith.constant 0 : index
    %c0_32 = arith.constant 0 : index
    %c0_33 = arith.constant 0 : index
    %45 = vector.load %arg7[%c0_31, %c0_32, %c0_33] : memref<10x1x128xf32, #tpu.memory_space<vmem>>, vector<1x1x128xf32>
    %46 = vector.shape_cast %45 : vector<1x1x128xf32> to vector<1x128xf32>
    %47 = arith.mulf %28, %44 : vector<1x1x128xf32>
    %48 = vector.shape_cast %46 : vector<1x128xf32> to vector<1x1x128xf32>
    %49 = arith.subf %48, %47 : vector<1x1x128xf32>
    %50 = vector.broadcast %44 : vector<1x1x128xf32> to vector<1x8x128xf32>
    %51 = arith.mulf %24, %50 : vector<1x8x128xf32>
    %52 = vector.broadcast %49 : vector<1x1x128xf32> to vector<1x8x128xf32>
    %53 = arith.addf %51, %52 : vector<1x8x128xf32>
    %cst_34 = arith.constant 0.000000e+00 : f32
    %54 = vector.broadcast %cst_34 : f32 to vector<1x8x128xf32>
    %55 = arith.maximumf %53, %54 : vector<1x8x128xf32>
    %c1 = arith.constant 1 : index
    %c0_35 = arith.constant 0 : index
    %c0_36 = arith.constant 0 : index
    %56 = vector.load %arg4[%c1, %c0_35, %c0_36] : memref<10x128x128xbf16, #tpu.memory_space<vmem>>, vector<1x128x128xbf16>
    %57 = vector.shape_cast %56 : vector<1x128x128xbf16> to vector<128x128xbf16>
    %c1_37 = arith.constant 1 : index
    %c0_38 = arith.constant 0 : index
    %c0_39 = arith.constant 0 : index
    %58 = vector.load %arg5[%c1_37, %c0_38, %c0_39] : memref<10x1x128xf32, #tpu.memory_space<vmem>>, vector<1x1x128xf32>
    %59 = vector.shape_cast %58 : vector<1x1x128xf32> to vector<1x128xf32>
    %60 = vector.shape_cast %55 : vector<1x8x128xf32> to vector<8x128xf32>
    %61 = arith.truncf %60 : vector<8x128xf32> to vector<8x128xbf16>
    %cst_40 = arith.constant dense<0.000000e+00> : vector<8x128xf32>
    %62 = tpu.matmul %61, %57, %cst_40 {dimension_numbers = #tpu.dot_dimension_numbers<[1], [0], [0], [1], [0, 0, 1, 1], [], []>} : vector<8x128xbf16>, vector<128x128xbf16>, vector<8x128xf32> -> vector<8x128xf32>
    %63 = vector.broadcast %59 : vector<1x128xf32> to vector<8x128xf32>
    %64 = arith.addf %62, %63 : vector<8x128xf32>
    %65 = vector.shape_cast %64 : vector<8x128xf32> to vector<1x8x128xf32>
    %cst_41 = arith.constant dense<0.000000e+00> : vector<1x128xf32>
    %66 = vector.multi_reduction <add>, %65, %cst_41 [1] : vector<1x8x128xf32> to vector<1x128xf32>
    %67 = vector.shape_cast %66 : vector<1x128xf32> to vector<1x1x128xf32>
    %cst_42 = arith.constant 8.000000e+00 : f32
    %68 = vector.broadcast %cst_42 : f32 to vector<1x1x128xf32>
    %69 = arith.divf %67, %68 : vector<1x1x128xf32>
    %70 = arith.mulf %65, %65 : vector<1x8x128xf32>
    %cst_43 = arith.constant dense<0.000000e+00> : vector<1x128xf32>
    %71 = vector.multi_reduction <add>, %70, %cst_43 [1] : vector<1x8x128xf32> to vector<1x128xf32>
    %72 = vector.shape_cast %71 : vector<1x128xf32> to vector<1x1x128xf32>
    %cst_44 = arith.constant 8.000000e+00 : f32
    %73 = vector.broadcast %cst_44 : f32 to vector<1x1x128xf32>
    %74 = arith.divf %72, %73 : vector<1x1x128xf32>
    %75 = arith.mulf %69, %69 : vector<1x1x128xf32>
    %76 = arith.subf %74, %75 : vector<1x1x128xf32>
    %cst_45 = arith.constant 0.000000e+00 : f32
    %77 = vector.broadcast %cst_45 : f32 to vector<1x1x128xf32>
    %78 = arith.maximumf %76, %77 : vector<1x1x128xf32>
    %cst_46 = arith.constant 9.99999974E-6 : f32
    %79 = vector.broadcast %cst_46 : f32 to vector<1x1x128xf32>
    %80 = arith.addf %78, %79 : vector<1x1x128xf32>
    %81 = math.rsqrt %80 : vector<1x1x128xf32>
    %c1_47 = arith.constant 1 : index
    %c0_48 = arith.constant 0 : index
    %c0_49 = arith.constant 0 : index
    %82 = vector.load %arg6[%c1_47, %c0_48, %c0_49] : memref<10x1x128xf32, #tpu.memory_space<vmem>>, vector<1x1x128xf32>
    %83 = vector.shape_cast %82 : vector<1x1x128xf32> to vector<1x128xf32>
    %84 = vector.shape_cast %83 : vector<1x128xf32> to vector<1x1x128xf32>
    %85 = arith.mulf %81, %84 : vector<1x1x128xf32>
    %c1_50 = arith.constant 1 : index
    %c0_51 = arith.constant 0 : index
    %c0_52 = arith.constant 0 : index
    %86 = vector.load %arg7[%c1_50, %c0_51, %c0_52] : memref<10x1x128xf32, #tpu.memory_space<vmem>>, vector<1x1x128xf32>
    %87 = vector.shape_cast %86 : vector<1x1x128xf32> to vector<1x128xf32>
    %88 = arith.mulf %69, %85 : vector<1x1x128xf32>
    %89 = vector.shape_cast %87 : vector<1x128xf32> to vector<1x1x128xf32>
    %90 = arith.subf %89, %88 : vector<1x1x128xf32>
    %91 = vector.broadcast %85 : vector<1x1x128xf32> to vector<1x8x128xf32>
    %92 = arith.mulf %65, %91 : vector<1x8x128xf32>
    %93 = vector.broadcast %90 : vector<1x1x128xf32> to vector<1x8x128xf32>
    %94 = arith.addf %92, %93 : vector<1x8x128xf32>
    %cst_53 = arith.constant 0.000000e+00 : f32
    %95 = vector.broadcast %cst_53 : f32 to vector<1x8x128xf32>
    %96 = arith.maximumf %94, %95 : vector<1x8x128xf32>
    %97 = arith.addf %96, %14 : vector<1x8x128xf32>
    %c2 = arith.constant 2 : index
    %c0_54 = arith.constant 0 : index
    %c0_55 = arith.constant 0 : index
    %98 = vector.load %arg4[%c2, %c0_54, %c0_55] : memref<10x128x128xbf16, #tpu.memory_space<vmem>>, vector<1x128x128xbf16>
    %99 = vector.shape_cast %98 : vector<1x128x128xbf16> to vector<128x128xbf16>
    %c2_56 = arith.constant 2 : index
    %c0_57 = arith.constant 0 : index
    %c0_58 = arith.constant 0 : index
    %100 = vector.load %arg5[%c2_56, %c0_57, %c0_58] : memref<10x1x128xf32, #tpu.memory_space<vmem>>, vector<1x1x128xf32>
    %101 = vector.shape_cast %100 : vector<1x1x128xf32> to vector<1x128xf32>
    %102 = vector.shape_cast %97 : vector<1x8x128xf32> to vector<8x128xf32>
    %103 = arith.truncf %102 : vector<8x128xf32> to vector<8x128xbf16>
    %cst_59 = arith.constant dense<0.000000e+00> : vector<8x128xf32>
    %104 = tpu.matmul %103, %99, %cst_59 {dimension_numbers = #tpu.dot_dimension_numbers<[1], [0], [0], [1], [0, 0, 1, 1], [], []>} : vector<8x128xbf16>, vector<128x128xbf16>, vector<8x128xf32> -> vector<8x128xf32>
    %105 = vector.broadcast %101 : vector<1x128xf32> to vector<8x128xf32>
    %106 = arith.addf %104, %105 : vector<8x128xf32>
    %107 = vector.shape_cast %106 : vector<8x128xf32> to vector<1x8x128xf32>
    %cst_60 = arith.constant dense<0.000000e+00> : vector<1x128xf32>
    %108 = vector.multi_reduction <add>, %107, %cst_60 [1] : vector<1x8x128xf32> to vector<1x128xf32>
    %109 = vector.shape_cast %108 : vector<1x128xf32> to vector<1x1x128xf32>
    %cst_61 = arith.constant 8.000000e+00 : f32
    %110 = vector.broadcast %cst_61 : f32 to vector<1x1x128xf32>
    %111 = arith.divf %109, %110 : vector<1x1x128xf32>
    %112 = arith.mulf %107, %107 : vector<1x8x128xf32>
    %cst_62 = arith.constant dense<0.000000e+00> : vector<1x128xf32>
    %113 = vector.multi_reduction <add>, %112, %cst_62 [1] : vector<1x8x128xf32> to vector<1x128xf32>
    %114 = vector.shape_cast %113 : vector<1x128xf32> to vector<1x1x128xf32>
    %cst_63 = arith.constant 8.000000e+00 : f32
    %115 = vector.broadcast %cst_63 : f32 to vector<1x1x128xf32>
    %116 = arith.divf %114, %115 : vector<1x1x128xf32>
    %117 = arith.mulf %111, %111 : vector<1x1x128xf32>
    %118 = arith.subf %116, %117 : vector<1x1x128xf32>
    %cst_64 = arith.constant 0.000000e+00 : f32
    %119 = vector.broadcast %cst_64 : f32 to vector<1x1x128xf32>
    %120 = arith.maximumf %118, %119 : vector<1x1x128xf32>
    %cst_65 = arith.constant 9.99999974E-6 : f32
    %121 = vector.broadcast %cst_65 : f32 to vector<1x1x128xf32>
    %122 = arith.addf %120, %121 : vector<1x1x128xf32>
    %123 = math.rsqrt %122 : vector<1x1x128xf32>
    %c2_66 = arith.constant 2 : index
    %c0_67 = arith.constant 0 : index
    %c0_68 = arith.constant 0 : index
    %124 = vector.load %arg6[%c2_66, %c0_67, %c0_68] : memref<10x1x128xf32, #tpu.memory_space<vmem>>, vector<1x1x128xf32>
    %125 = vector.shape_cast %124 : vector<1x1x128xf32> to vector<1x128xf32>
    %126 = vector.shape_cast %125 : vector<1x128xf32> to vector<1x1x128xf32>
    %127 = arith.mulf %123, %126 : vector<1x1x128xf32>
    %c2_69 = arith.constant 2 : index
    %c0_70 = arith.constant 0 : index
    %c0_71 = arith.constant 0 : index
    %128 = vector.load %arg7[%c2_69, %c0_70, %c0_71] : memref<10x1x128xf32, #tpu.memory_space<vmem>>, vector<1x1x128xf32>
    %129 = vector.shape_cast %128 : vector<1x1x128xf32> to vector<1x128xf32>
    %130 = arith.mulf %111, %127 : vector<1x1x128xf32>
    %131 = vector.shape_cast %129 : vector<1x128xf32> to vector<1x1x128xf32>
    %132 = arith.subf %131, %130 : vector<1x1x128xf32>
    %133 = vector.broadcast %127 : vector<1x1x128xf32> to vector<1x8x128xf32>
    %134 = arith.mulf %107, %133 : vector<1x8x128xf32>
    %135 = vector.broadcast %132 : vector<1x1x128xf32> to vector<1x8x128xf32>
    %136 = arith.addf %134, %135 : vector<1x8x128xf32>
    %cst_72 = arith.constant 0.000000e+00 : f32
    %137 = vector.broadcast %cst_72 : f32 to vector<1x8x128xf32>
    %138 = arith.maximumf %136, %137 : vector<1x8x128xf32>
    %c3 = arith.constant 3 : index
    %c0_73 = arith.constant 0 : index
    %c0_74 = arith.constant 0 : index
    %139 = vector.load %arg4[%c3, %c0_73, %c0_74] : memref<10x128x128xbf16, #tpu.memory_space<vmem>>, vector<1x128x128xbf16>
    %140 = vector.shape_cast %139 : vector<1x128x128xbf16> to vector<128x128xbf16>
    %c3_75 = arith.constant 3 : index
    %c0_76 = arith.constant 0 : index
    %c0_77 = arith.constant 0 : index
    %141 = vector.load %arg5[%c3_75, %c0_76, %c0_77] : memref<10x1x128xf32, #tpu.memory_space<vmem>>, vector<1x1x128xf32>
    %142 = vector.shape_cast %141 : vector<1x1x128xf32> to vector<1x128xf32>
    %143 = vector.shape_cast %138 : vector<1x8x128xf32> to vector<8x128xf32>
    %144 = arith.truncf %143 : vector<8x128xf32> to vector<8x128xbf16>
    %cst_78 = arith.constant dense<0.000000e+00> : vector<8x128xf32>
    %145 = tpu.matmul %144, %140, %cst_78 {dimension_numbers = #tpu.dot_dimension_numbers<[1], [0], [0], [1], [0, 0, 1, 1], [], []>} : vector<8x128xbf16>, vector<128x128xbf16>, vector<8x128xf32> -> vector<8x128xf32>
    %146 = vector.broadcast %142 : vector<1x128xf32> to vector<8x128xf32>
    %147 = arith.addf %145, %146 : vector<8x128xf32>
    %148 = vector.shape_cast %147 : vector<8x128xf32> to vector<1x8x128xf32>
    %cst_79 = arith.constant dense<0.000000e+00> : vector<1x128xf32>
    %149 = vector.multi_reduction <add>, %148, %cst_79 [1] : vector<1x8x128xf32> to vector<1x128xf32>
    %150 = vector.shape_cast %149 : vector<1x128xf32> to vector<1x1x128xf32>
    %cst_80 = arith.constant 8.000000e+00 : f32
    %151 = vector.broadcast %cst_80 : f32 to vector<1x1x128xf32>
    %152 = arith.divf %150, %151 : vector<1x1x128xf32>
    %153 = arith.mulf %148, %148 : vector<1x8x128xf32>
    %cst_81 = arith.constant dense<0.000000e+00> : vector<1x128xf32>
    %154 = vector.multi_reduction <add>, %153, %cst_81 [1] : vector<1x8x128xf32> to vector<1x128xf32>
    %155 = vector.shape_cast %154 : vector<1x128xf32> to vector<1x1x128xf32>
    %cst_82 = arith.constant 8.000000e+00 : f32
    %156 = vector.broadcast %cst_82 : f32 to vector<1x1x128xf32>
    %157 = arith.divf %155, %156 : vector<1x1x128xf32>
    %158 = arith.mulf %152, %152 : vector<1x1x128xf32>
    %159 = arith.subf %157, %158 : vector<1x1x128xf32>
    %cst_83 = arith.constant 0.000000e+00 : f32
    %160 = vector.broadcast %cst_83 : f32 to vector<1x1x128xf32>
    %161 = arith.maximumf %159, %160 : vector<1x1x128xf32>
    %cst_84 = arith.constant 9.99999974E-6 : f32
    %162 = vector.broadcast %cst_84 : f32 to vector<1x1x128xf32>
    %163 = arith.addf %161, %162 : vector<1x1x128xf32>
    %164 = math.rsqrt %163 : vector<1x1x128xf32>
    %c3_85 = arith.constant 3 : index
    %c0_86 = arith.constant 0 : index
    %c0_87 = arith.constant 0 : index
    %165 = vector.load %arg6[%c3_85, %c0_86, %c0_87] : memref<10x1x128xf32, #tpu.memory_space<vmem>>, vector<1x1x128xf32>
    %166 = vector.shape_cast %165 : vector<1x1x128xf32> to vector<1x128xf32>
    %167 = vector.shape_cast %166 : vector<1x128xf32> to vector<1x1x128xf32>
    %168 = arith.mulf %164, %167 : vector<1x1x128xf32>
    %c3_88 = arith.constant 3 : index
    %c0_89 = arith.constant 0 : index
    %c0_90 = arith.constant 0 : index
    %169 = vector.load %arg7[%c3_88, %c0_89, %c0_90] : memref<10x1x128xf32, #tpu.memory_space<vmem>>, vector<1x1x128xf32>
    %170 = vector.shape_cast %169 : vector<1x1x128xf32> to vector<1x128xf32>
    %171 = arith.mulf %152, %168 : vector<1x1x128xf32>
    %172 = vector.shape_cast %170 : vector<1x128xf32> to vector<1x1x128xf32>
    %173 = arith.subf %172, %171 : vector<1x1x128xf32>
    %174 = vector.broadcast %168 : vector<1x1x128xf32> to vector<1x8x128xf32>
    %175 = arith.mulf %148, %174 : vector<1x8x128xf32>
    %176 = vector.broadcast %173 : vector<1x1x128xf32> to vector<1x8x128xf32>
    %177 = arith.addf %175, %176 : vector<1x8x128xf32>
    %cst_91 = arith.constant 0.000000e+00 : f32
    %178 = vector.broadcast %cst_91 : f32 to vector<1x8x128xf32>
    %179 = arith.maximumf %177, %178 : vector<1x8x128xf32>
    %180 = arith.addf %179, %97 : vector<1x8x128xf32>
    %c4 = arith.constant 4 : index
    %c0_92 = arith.constant 0 : index
    %c0_93 = arith.constant 0 : index
    %181 = vector.load %arg4[%c4, %c0_92, %c0_93] : memref<10x128x128xbf16, #tpu.memory_space<vmem>>, vector<1x128x128xbf16>
    %182 = vector.shape_cast %181 : vector<1x128x128xbf16> to vector<128x128xbf16>
    %c4_94 = arith.constant 4 : index
    %c0_95 = arith.constant 0 : index
    %c0_96 = arith.constant 0 : index
    %183 = vector.load %arg5[%c4_94, %c0_95, %c0_96] : memref<10x1x128xf32, #tpu.memory_space<vmem>>, vector<1x1x128xf32>
    %184 = vector.shape_cast %183 : vector<1x1x128xf32> to vector<1x128xf32>
    %185 = vector.shape_cast %180 : vector<1x8x128xf32> to vector<8x128xf32>
    %186 = arith.truncf %185 : vector<8x128xf32> to vector<8x128xbf16>
    %cst_97 = arith.constant dense<0.000000e+00> : vector<8x128xf32>
    %187 = tpu.matmul %186, %182, %cst_97 {dimension_numbers = #tpu.dot_dimension_numbers<[1], [0], [0], [1], [0, 0, 1, 1], [], []>} : vector<8x128xbf16>, vector<128x128xbf16>, vector<8x128xf32> -> vector<8x128xf32>
    %188 = vector.broadcast %184 : vector<1x128xf32> to vector<8x128xf32>
    %189 = arith.addf %187, %188 : vector<8x128xf32>
    %190 = vector.shape_cast %189 : vector<8x128xf32> to vector<1x8x128xf32>
    %cst_98 = arith.constant dense<0.000000e+00> : vector<1x128xf32>
    %191 = vector.multi_reduction <add>, %190, %cst_98 [1] : vector<1x8x128xf32> to vector<1x128xf32>
    %192 = vector.shape_cast %191 : vector<1x128xf32> to vector<1x1x128xf32>
    %cst_99 = arith.constant 8.000000e+00 : f32
    %193 = vector.broadcast %cst_99 : f32 to vector<1x1x128xf32>
    %194 = arith.divf %192, %193 : vector<1x1x128xf32>
    %195 = arith.mulf %190, %190 : vector<1x8x128xf32>
    %cst_100 = arith.constant dense<0.000000e+00> : vector<1x128xf32>
    %196 = vector.multi_reduction <add>, %195, %cst_100 [1] : vector<1x8x128xf32> to vector<1x128xf32>
    %197 = vector.shape_cast %196 : vector<1x128xf32> to vector<1x1x128xf32>
    %cst_101 = arith.constant 8.000000e+00 : f32
    %198 = vector.broadcast %cst_101 : f32 to vector<1x1x128xf32>
    %199 = arith.divf %197, %198 : vector<1x1x128xf32>
    %200 = arith.mulf %194, %194 : vector<1x1x128xf32>
    %201 = arith.subf %199, %200 : vector<1x1x128xf32>
    %cst_102 = arith.constant 0.000000e+00 : f32
    %202 = vector.broadcast %cst_102 : f32 to vector<1x1x128xf32>
    %203 = arith.maximumf %201, %202 : vector<1x1x128xf32>
    %cst_103 = arith.constant 9.99999974E-6 : f32
    %204 = vector.broadcast %cst_103 : f32 to vector<1x1x128xf32>
    %205 = arith.addf %203, %204 : vector<1x1x128xf32>
    %206 = math.rsqrt %205 : vector<1x1x128xf32>
    %c4_104 = arith.constant 4 : index
    %c0_105 = arith.constant 0 : index
    %c0_106 = arith.constant 0 : index
    %207 = vector.load %arg6[%c4_104, %c0_105, %c0_106] : memref<10x1x128xf32, #tpu.memory_space<vmem>>, vector<1x1x128xf32>
    %208 = vector.shape_cast %207 : vector<1x1x128xf32> to vector<1x128xf32>
    %209 = vector.shape_cast %208 : vector<1x128xf32> to vector<1x1x128xf32>
    %210 = arith.mulf %206, %209 : vector<1x1x128xf32>
    %c4_107 = arith.constant 4 : index
    %c0_108 = arith.constant 0 : index
    %c0_109 = arith.constant 0 : index
    %211 = vector.load %arg7[%c4_107, %c0_108, %c0_109] : memref<10x1x128xf32, #tpu.memory_space<vmem>>, vector<1x1x128xf32>
    %212 = vector.shape_cast %211 : vector<1x1x128xf32> to vector<1x128xf32>
    %213 = arith.mulf %194, %210 : vector<1x1x128xf32>
    %214 = vector.shape_cast %212 : vector<1x128xf32> to vector<1x1x128xf32>
    %215 = arith.subf %214, %213 : vector<1x1x128xf32>
    %216 = vector.broadcast %210 : vector<1x1x128xf32> to vector<1x8x128xf32>
    %217 = arith.mulf %190, %216 : vector<1x8x128xf32>
    %218 = vector.broadcast %215 : vector<1x1x128xf32> to vector<1x8x128xf32>
    %219 = arith.addf %217, %218 : vector<1x8x128xf32>
    %cst_110 = arith.constant 0.000000e+00 : f32
    %220 = vector.broadcast %cst_110 : f32 to vector<1x8x128xf32>
    %221 = arith.maximumf %219, %220 : vector<1x8x128xf32>
    %c5 = arith.constant 5 : index
    %c0_111 = arith.constant 0 : index
    %c0_112 = arith.constant 0 : index
    %222 = vector.load %arg4[%c5, %c0_111, %c0_112] : memref<10x128x128xbf16, #tpu.memory_space<vmem>>, vector<1x128x128xbf16>
    %223 = vector.shape_cast %222 : vector<1x128x128xbf16> to vector<128x128xbf16>
    %c5_113 = arith.constant 5 : index
    %c0_114 = arith.constant 0 : index
    %c0_115 = arith.constant 0 : index
    %224 = vector.load %arg5[%c5_113, %c0_114, %c0_115] : memref<10x1x128xf32, #tpu.memory_space<vmem>>, vector<1x1x128xf32>
    %225 = vector.shape_cast %224 : vector<1x1x128xf32> to vector<1x128xf32>
    %226 = vector.shape_cast %221 : vector<1x8x128xf32> to vector<8x128xf32>
    %227 = arith.truncf %226 : vector<8x128xf32> to vector<8x128xbf16>
    %cst_116 = arith.constant dense<0.000000e+00> : vector<8x128xf32>
    %228 = tpu.matmul %227, %223, %cst_116 {dimension_numbers = #tpu.dot_dimension_numbers<[1], [0], [0], [1], [0, 0, 1, 1], [], []>} : vector<8x128xbf16>, vector<128x128xbf16>, vector<8x128xf32> -> vector<8x128xf32>
    %229 = vector.broadcast %225 : vector<1x128xf32> to vector<8x128xf32>
    %230 = arith.addf %228, %229 : vector<8x128xf32>
    %231 = vector.shape_cast %230 : vector<8x128xf32> to vector<1x8x128xf32>
    %cst_117 = arith.constant dense<0.000000e+00> : vector<1x128xf32>
    %232 = vector.multi_reduction <add>, %231, %cst_117 [1] : vector<1x8x128xf32> to vector<1x128xf32>
    %233 = vector.shape_cast %232 : vector<1x128xf32> to vector<1x1x128xf32>
    %cst_118 = arith.constant 8.000000e+00 : f32
    %234 = vector.broadcast %cst_118 : f32 to vector<1x1x128xf32>
    %235 = arith.divf %233, %234 : vector<1x1x128xf32>
    %236 = arith.mulf %231, %231 : vector<1x8x128xf32>
    %cst_119 = arith.constant dense<0.000000e+00> : vector<1x128xf32>
    %237 = vector.multi_reduction <add>, %236, %cst_119 [1] : vector<1x8x128xf32> to vector<1x128xf32>
    %238 = vector.shape_cast %237 : vector<1x128xf32> to vector<1x1x128xf32>
    %cst_120 = arith.constant 8.000000e+00 : f32
    %239 = vector.broadcast %cst_120 : f32 to vector<1x1x128xf32>
    %240 = arith.divf %238, %239 : vector<1x1x128xf32>
    %241 = arith.mulf %235, %235 : vector<1x1x128xf32>
    %242 = arith.subf %240, %241 : vector<1x1x128xf32>
    %cst_121 = arith.constant 0.000000e+00 : f32
    %243 = vector.broadcast %cst_121 : f32 to vector<1x1x128xf32>
    %244 = arith.maximumf %242, %243 : vector<1x1x128xf32>
    %cst_122 = arith.constant 9.99999974E-6 : f32
    %245 = vector.broadcast %cst_122 : f32 to vector<1x1x128xf32>
    %246 = arith.addf %244, %245 : vector<1x1x128xf32>
    %247 = math.rsqrt %246 : vector<1x1x128xf32>
    %c5_123 = arith.constant 5 : index
    %c0_124 = arith.constant 0 : index
    %c0_125 = arith.constant 0 : index
    %248 = vector.load %arg6[%c5_123, %c0_124, %c0_125] : memref<10x1x128xf32, #tpu.memory_space<vmem>>, vector<1x1x128xf32>
    %249 = vector.shape_cast %248 : vector<1x1x128xf32> to vector<1x128xf32>
    %250 = vector.shape_cast %249 : vector<1x128xf32> to vector<1x1x128xf32>
    %251 = arith.mulf %247, %250 : vector<1x1x128xf32>
    %c5_126 = arith.constant 5 : index
    %c0_127 = arith.constant 0 : index
    %c0_128 = arith.constant 0 : index
    %252 = vector.load %arg7[%c5_126, %c0_127, %c0_128] : memref<10x1x128xf32, #tpu.memory_space<vmem>>, vector<1x1x128xf32>
    %253 = vector.shape_cast %252 : vector<1x1x128xf32> to vector<1x128xf32>
    %254 = arith.mulf %235, %251 : vector<1x1x128xf32>
    %255 = vector.shape_cast %253 : vector<1x128xf32> to vector<1x1x128xf32>
    %256 = arith.subf %255, %254 : vector<1x1x128xf32>
    %257 = vector.broadcast %251 : vector<1x1x128xf32> to vector<1x8x128xf32>
    %258 = arith.mulf %231, %257 : vector<1x8x128xf32>
    %259 = vector.broadcast %256 : vector<1x1x128xf32> to vector<1x8x128xf32>
    %260 = arith.addf %258, %259 : vector<1x8x128xf32>
    %cst_129 = arith.constant 0.000000e+00 : f32
    %261 = vector.broadcast %cst_129 : f32 to vector<1x8x128xf32>
    %262 = arith.maximumf %260, %261 : vector<1x8x128xf32>
    %263 = arith.addf %262, %180 : vector<1x8x128xf32>
    %c6 = arith.constant 6 : index
    %c0_130 = arith.constant 0 : index
    %c0_131 = arith.constant 0 : index
    %264 = vector.load %arg4[%c6, %c0_130, %c0_131] : memref<10x128x128xbf16, #tpu.memory_space<vmem>>, vector<1x128x128xbf16>
    %265 = vector.shape_cast %264 : vector<1x128x128xbf16> to vector<128x128xbf16>
    %c6_132 = arith.constant 6 : index
    %c0_133 = arith.constant 0 : index
    %c0_134 = arith.constant 0 : index
    %266 = vector.load %arg5[%c6_132, %c0_133, %c0_134] : memref<10x1x128xf32, #tpu.memory_space<vmem>>, vector<1x1x128xf32>
    %267 = vector.shape_cast %266 : vector<1x1x128xf32> to vector<1x128xf32>
    %268 = vector.shape_cast %263 : vector<1x8x128xf32> to vector<8x128xf32>
    %269 = arith.truncf %268 : vector<8x128xf32> to vector<8x128xbf16>
    %cst_135 = arith.constant dense<0.000000e+00> : vector<8x128xf32>
    %270 = tpu.matmul %269, %265, %cst_135 {dimension_numbers = #tpu.dot_dimension_numbers<[1], [0], [0], [1], [0, 0, 1, 1], [], []>} : vector<8x128xbf16>, vector<128x128xbf16>, vector<8x128xf32> -> vector<8x128xf32>
    %271 = vector.broadcast %267 : vector<1x128xf32> to vector<8x128xf32>
    %272 = arith.addf %270, %271 : vector<8x128xf32>
    %273 = vector.shape_cast %272 : vector<8x128xf32> to vector<1x8x128xf32>
    %cst_136 = arith.constant dense<0.000000e+00> : vector<1x128xf32>
    %274 = vector.multi_reduction <add>, %273, %cst_136 [1] : vector<1x8x128xf32> to vector<1x128xf32>
    %275 = vector.shape_cast %274 : vector<1x128xf32> to vector<1x1x128xf32>
    %cst_137 = arith.constant 8.000000e+00 : f32
    %276 = vector.broadcast %cst_137 : f32 to vector<1x1x128xf32>
    %277 = arith.divf %275, %276 : vector<1x1x128xf32>
    %278 = arith.mulf %273, %273 : vector<1x8x128xf32>
    %cst_138 = arith.constant dense<0.000000e+00> : vector<1x128xf32>
    %279 = vector.multi_reduction <add>, %278, %cst_138 [1] : vector<1x8x128xf32> to vector<1x128xf32>
    %280 = vector.shape_cast %279 : vector<1x128xf32> to vector<1x1x128xf32>
    %cst_139 = arith.constant 8.000000e+00 : f32
    %281 = vector.broadcast %cst_139 : f32 to vector<1x1x128xf32>
    %282 = arith.divf %280, %281 : vector<1x1x128xf32>
    %283 = arith.mulf %277, %277 : vector<1x1x128xf32>
    %284 = arith.subf %282, %283 : vector<1x1x128xf32>
    %cst_140 = arith.constant 0.000000e+00 : f32
    %285 = vector.broadcast %cst_140 : f32 to vector<1x1x128xf32>
    %286 = arith.maximumf %284, %285 : vector<1x1x128xf32>
    %cst_141 = arith.constant 9.99999974E-6 : f32
    %287 = vector.broadcast %cst_141 : f32 to vector<1x1x128xf32>
    %288 = arith.addf %286, %287 : vector<1x1x128xf32>
    %289 = math.rsqrt %288 : vector<1x1x128xf32>
    %c6_142 = arith.constant 6 : index
    %c0_143 = arith.constant 0 : index
    %c0_144 = arith.constant 0 : index
    %290 = vector.load %arg6[%c6_142, %c0_143, %c0_144] : memref<10x1x128xf32, #tpu.memory_space<vmem>>, vector<1x1x128xf32>
    %291 = vector.shape_cast %290 : vector<1x1x128xf32> to vector<1x128xf32>
    %292 = vector.shape_cast %291 : vector<1x128xf32> to vector<1x1x128xf32>
    %293 = arith.mulf %289, %292 : vector<1x1x128xf32>
    %c6_145 = arith.constant 6 : index
    %c0_146 = arith.constant 0 : index
    %c0_147 = arith.constant 0 : index
    %294 = vector.load %arg7[%c6_145, %c0_146, %c0_147] : memref<10x1x128xf32, #tpu.memory_space<vmem>>, vector<1x1x128xf32>
    %295 = vector.shape_cast %294 : vector<1x1x128xf32> to vector<1x128xf32>
    %296 = arith.mulf %277, %293 : vector<1x1x128xf32>
    %297 = vector.shape_cast %295 : vector<1x128xf32> to vector<1x1x128xf32>
    %298 = arith.subf %297, %296 : vector<1x1x128xf32>
    %299 = vector.broadcast %293 : vector<1x1x128xf32> to vector<1x8x128xf32>
    %300 = arith.mulf %273, %299 : vector<1x8x128xf32>
    %301 = vector.broadcast %298 : vector<1x1x128xf32> to vector<1x8x128xf32>
    %302 = arith.addf %300, %301 : vector<1x8x128xf32>
    %cst_148 = arith.constant 0.000000e+00 : f32
    %303 = vector.broadcast %cst_148 : f32 to vector<1x8x128xf32>
    %304 = arith.maximumf %302, %303 : vector<1x8x128xf32>
    %c7 = arith.constant 7 : index
    %c0_149 = arith.constant 0 : index
    %c0_150 = arith.constant 0 : index
    %305 = vector.load %arg4[%c7, %c0_149, %c0_150] : memref<10x128x128xbf16, #tpu.memory_space<vmem>>, vector<1x128x128xbf16>
    %306 = vector.shape_cast %305 : vector<1x128x128xbf16> to vector<128x128xbf16>
    %c7_151 = arith.constant 7 : index
    %c0_152 = arith.constant 0 : index
    %c0_153 = arith.constant 0 : index
    %307 = vector.load %arg5[%c7_151, %c0_152, %c0_153] : memref<10x1x128xf32, #tpu.memory_space<vmem>>, vector<1x1x128xf32>
    %308 = vector.shape_cast %307 : vector<1x1x128xf32> to vector<1x128xf32>
    %309 = vector.shape_cast %304 : vector<1x8x128xf32> to vector<8x128xf32>
    %310 = arith.truncf %309 : vector<8x128xf32> to vector<8x128xbf16>
    %cst_154 = arith.constant dense<0.000000e+00> : vector<8x128xf32>
    %311 = tpu.matmul %310, %306, %cst_154 {dimension_numbers = #tpu.dot_dimension_numbers<[1], [0], [0], [1], [0, 0, 1, 1], [], []>} : vector<8x128xbf16>, vector<128x128xbf16>, vector<8x128xf32> -> vector<8x128xf32>
    %312 = vector.broadcast %308 : vector<1x128xf32> to vector<8x128xf32>
    %313 = arith.addf %311, %312 : vector<8x128xf32>
    %314 = vector.shape_cast %313 : vector<8x128xf32> to vector<1x8x128xf32>
    %cst_155 = arith.constant dense<0.000000e+00> : vector<1x128xf32>
    %315 = vector.multi_reduction <add>, %314, %cst_155 [1] : vector<1x8x128xf32> to vector<1x128xf32>
    %316 = vector.shape_cast %315 : vector<1x128xf32> to vector<1x1x128xf32>
    %cst_156 = arith.constant 8.000000e+00 : f32
    %317 = vector.broadcast %cst_156 : f32 to vector<1x1x128xf32>
    %318 = arith.divf %316, %317 : vector<1x1x128xf32>
    %319 = arith.mulf %314, %314 : vector<1x8x128xf32>
    %cst_157 = arith.constant dense<0.000000e+00> : vector<1x128xf32>
    %320 = vector.multi_reduction <add>, %319, %cst_157 [1] : vector<1x8x128xf32> to vector<1x128xf32>
    %321 = vector.shape_cast %320 : vector<1x128xf32> to vector<1x1x128xf32>
    %cst_158 = arith.constant 8.000000e+00 : f32
    %322 = vector.broadcast %cst_158 : f32 to vector<1x1x128xf32>
    %323 = arith.divf %321, %322 : vector<1x1x128xf32>
    %324 = arith.mulf %318, %318 : vector<1x1x128xf32>
    %325 = arith.subf %323, %324 : vector<1x1x128xf32>
    %cst_159 = arith.constant 0.000000e+00 : f32
    %326 = vector.broadcast %cst_159 : f32 to vector<1x1x128xf32>
    %327 = arith.maximumf %325, %326 : vector<1x1x128xf32>
    %cst_160 = arith.constant 9.99999974E-6 : f32
    %328 = vector.broadcast %cst_160 : f32 to vector<1x1x128xf32>
    %329 = arith.addf %327, %328 : vector<1x1x128xf32>
    %330 = math.rsqrt %329 : vector<1x1x128xf32>
    %c7_161 = arith.constant 7 : index
    %c0_162 = arith.constant 0 : index
    %c0_163 = arith.constant 0 : index
    %331 = vector.load %arg6[%c7_161, %c0_162, %c0_163] : memref<10x1x128xf32, #tpu.memory_space<vmem>>, vector<1x1x128xf32>
    %332 = vector.shape_cast %331 : vector<1x1x128xf32> to vector<1x128xf32>
    %333 = vector.shape_cast %332 : vector<1x128xf32> to vector<1x1x128xf32>
    %334 = arith.mulf %330, %333 : vector<1x1x128xf32>
    %c7_164 = arith.constant 7 : index
    %c0_165 = arith.constant 0 : index
    %c0_166 = arith.constant 0 : index
    %335 = vector.load %arg7[%c7_164, %c0_165, %c0_166] : memref<10x1x128xf32, #tpu.memory_space<vmem>>, vector<1x1x128xf32>
    %336 = vector.shape_cast %335 : vector<1x1x128xf32> to vector<1x128xf32>
    %337 = arith.mulf %318, %334 : vector<1x1x128xf32>
    %338 = vector.shape_cast %336 : vector<1x128xf32> to vector<1x1x128xf32>
    %339 = arith.subf %338, %337 : vector<1x1x128xf32>
    %340 = vector.broadcast %334 : vector<1x1x128xf32> to vector<1x8x128xf32>
    %341 = arith.mulf %314, %340 : vector<1x8x128xf32>
    %342 = vector.broadcast %339 : vector<1x1x128xf32> to vector<1x8x128xf32>
    %343 = arith.addf %341, %342 : vector<1x8x128xf32>
    %cst_167 = arith.constant 0.000000e+00 : f32
    %344 = vector.broadcast %cst_167 : f32 to vector<1x8x128xf32>
    %345 = arith.maximumf %343, %344 : vector<1x8x128xf32>
    %346 = arith.addf %345, %263 : vector<1x8x128xf32>
    %c8 = arith.constant 8 : index
    %c0_168 = arith.constant 0 : index
    %c0_169 = arith.constant 0 : index
    %347 = vector.load %arg4[%c8, %c0_168, %c0_169] : memref<10x128x128xbf16, #tpu.memory_space<vmem>>, vector<1x128x128xbf16>
    %348 = vector.shape_cast %347 : vector<1x128x128xbf16> to vector<128x128xbf16>
    %c8_170 = arith.constant 8 : index
    %c0_171 = arith.constant 0 : index
    %c0_172 = arith.constant 0 : index
    %349 = vector.load %arg5[%c8_170, %c0_171, %c0_172] : memref<10x1x128xf32, #tpu.memory_space<vmem>>, vector<1x1x128xf32>
    %350 = vector.shape_cast %349 : vector<1x1x128xf32> to vector<1x128xf32>
    %351 = vector.shape_cast %346 : vector<1x8x128xf32> to vector<8x128xf32>
    %352 = arith.truncf %351 : vector<8x128xf32> to vector<8x128xbf16>
    %cst_173 = arith.constant dense<0.000000e+00> : vector<8x128xf32>
    %353 = tpu.matmul %352, %348, %cst_173 {dimension_numbers = #tpu.dot_dimension_numbers<[1], [0], [0], [1], [0, 0, 1, 1], [], []>} : vector<8x128xbf16>, vector<128x128xbf16>, vector<8x128xf32> -> vector<8x128xf32>
    %354 = vector.broadcast %350 : vector<1x128xf32> to vector<8x128xf32>
    %355 = arith.addf %353, %354 : vector<8x128xf32>
    %356 = vector.shape_cast %355 : vector<8x128xf32> to vector<1x8x128xf32>
    %cst_174 = arith.constant dense<0.000000e+00> : vector<1x128xf32>
    %357 = vector.multi_reduction <add>, %356, %cst_174 [1] : vector<1x8x128xf32> to vector<1x128xf32>
    %358 = vector.shape_cast %357 : vector<1x128xf32> to vector<1x1x128xf32>
    %cst_175 = arith.constant 8.000000e+00 : f32
    %359 = vector.broadcast %cst_175 : f32 to vector<1x1x128xf32>
    %360 = arith.divf %358, %359 : vector<1x1x128xf32>
    %361 = arith.mulf %356, %356 : vector<1x8x128xf32>
    %cst_176 = arith.constant dense<0.000000e+00> : vector<1x128xf32>
    %362 = vector.multi_reduction <add>, %361, %cst_176 [1] : vector<1x8x128xf32> to vector<1x128xf32>
    %363 = vector.shape_cast %362 : vector<1x128xf32> to vector<1x1x128xf32>
    %cst_177 = arith.constant 8.000000e+00 : f32
    %364 = vector.broadcast %cst_177 : f32 to vector<1x1x128xf32>
    %365 = arith.divf %363, %364 : vector<1x1x128xf32>
    %366 = arith.mulf %360, %360 : vector<1x1x128xf32>
    %367 = arith.subf %365, %366 : vector<1x1x128xf32>
    %cst_178 = arith.constant 0.000000e+00 : f32
    %368 = vector.broadcast %cst_178 : f32 to vector<1x1x128xf32>
    %369 = arith.maximumf %367, %368 : vector<1x1x128xf32>
    %cst_179 = arith.constant 9.99999974E-6 : f32
    %370 = vector.broadcast %cst_179 : f32 to vector<1x1x128xf32>
    %371 = arith.addf %369, %370 : vector<1x1x128xf32>
    %372 = math.rsqrt %371 : vector<1x1x128xf32>
    %c8_180 = arith.constant 8 : index
    %c0_181 = arith.constant 0 : index
    %c0_182 = arith.constant 0 : index
    %373 = vector.load %arg6[%c8_180, %c0_181, %c0_182] : memref<10x1x128xf32, #tpu.memory_space<vmem>>, vector<1x1x128xf32>
    %374 = vector.shape_cast %373 : vector<1x1x128xf32> to vector<1x128xf32>
    %375 = vector.shape_cast %374 : vector<1x128xf32> to vector<1x1x128xf32>
    %376 = arith.mulf %372, %375 : vector<1x1x128xf32>
    %c8_183 = arith.constant 8 : index
    %c0_184 = arith.constant 0 : index
    %c0_185 = arith.constant 0 : index
    %377 = vector.load %arg7[%c8_183, %c0_184, %c0_185] : memref<10x1x128xf32, #tpu.memory_space<vmem>>, vector<1x1x128xf32>
    %378 = vector.shape_cast %377 : vector<1x1x128xf32> to vector<1x128xf32>
    %379 = arith.mulf %360, %376 : vector<1x1x128xf32>
    %380 = vector.shape_cast %378 : vector<1x128xf32> to vector<1x1x128xf32>
    %381 = arith.subf %380, %379 : vector<1x1x128xf32>
    %382 = vector.broadcast %376 : vector<1x1x128xf32> to vector<1x8x128xf32>
    %383 = arith.mulf %356, %382 : vector<1x8x128xf32>
    %384 = vector.broadcast %381 : vector<1x1x128xf32> to vector<1x8x128xf32>
    %385 = arith.addf %383, %384 : vector<1x8x128xf32>
    %cst_186 = arith.constant 0.000000e+00 : f32
    %386 = vector.broadcast %cst_186 : f32 to vector<1x8x128xf32>
    %387 = arith.maximumf %385, %386 : vector<1x8x128xf32>
    %c9 = arith.constant 9 : index
    %c0_187 = arith.constant 0 : index
    %c0_188 = arith.constant 0 : index
    %388 = vector.load %arg4[%c9, %c0_187, %c0_188] : memref<10x128x128xbf16, #tpu.memory_space<vmem>>, vector<1x128x128xbf16>
    %389 = vector.shape_cast %388 : vector<1x128x128xbf16> to vector<128x128xbf16>
    %c9_189 = arith.constant 9 : index
    %c0_190 = arith.constant 0 : index
    %c0_191 = arith.constant 0 : index
    %390 = vector.load %arg5[%c9_189, %c0_190, %c0_191] : memref<10x1x128xf32, #tpu.memory_space<vmem>>, vector<1x1x128xf32>
    %391 = vector.shape_cast %390 : vector<1x1x128xf32> to vector<1x128xf32>
    %392 = vector.shape_cast %387 : vector<1x8x128xf32> to vector<8x128xf32>
    %393 = arith.truncf %392 : vector<8x128xf32> to vector<8x128xbf16>
    %cst_192 = arith.constant dense<0.000000e+00> : vector<8x128xf32>
    %394 = tpu.matmul %393, %389, %cst_192 {dimension_numbers = #tpu.dot_dimension_numbers<[1], [0], [0], [1], [0, 0, 1, 1], [], []>} : vector<8x128xbf16>, vector<128x128xbf16>, vector<8x128xf32> -> vector<8x128xf32>
    %395 = vector.broadcast %391 : vector<1x128xf32> to vector<8x128xf32>
    %396 = arith.addf %394, %395 : vector<8x128xf32>
    %397 = vector.shape_cast %396 : vector<8x128xf32> to vector<1x8x128xf32>
    %cst_193 = arith.constant dense<0.000000e+00> : vector<1x128xf32>
    %398 = vector.multi_reduction <add>, %397, %cst_193 [1] : vector<1x8x128xf32> to vector<1x128xf32>
    %399 = vector.shape_cast %398 : vector<1x128xf32> to vector<1x1x128xf32>
    %cst_194 = arith.constant 8.000000e+00 : f32
    %400 = vector.broadcast %cst_194 : f32 to vector<1x1x128xf32>
    %401 = arith.divf %399, %400 : vector<1x1x128xf32>
    %402 = arith.mulf %397, %397 : vector<1x8x128xf32>
    %cst_195 = arith.constant dense<0.000000e+00> : vector<1x128xf32>
    %403 = vector.multi_reduction <add>, %402, %cst_195 [1] : vector<1x8x128xf32> to vector<1x128xf32>
    %404 = vector.shape_cast %403 : vector<1x128xf32> to vector<1x1x128xf32>
    %cst_196 = arith.constant 8.000000e+00 : f32
    %405 = vector.broadcast %cst_196 : f32 to vector<1x1x128xf32>
    %406 = arith.divf %404, %405 : vector<1x1x128xf32>
    %407 = arith.mulf %401, %401 : vector<1x1x128xf32>
    %408 = arith.subf %406, %407 : vector<1x1x128xf32>
    %cst_197 = arith.constant 0.000000e+00 : f32
    %409 = vector.broadcast %cst_197 : f32 to vector<1x1x128xf32>
    %410 = arith.maximumf %408, %409 : vector<1x1x128xf32>
    %cst_198 = arith.constant 9.99999974E-6 : f32
    %411 = vector.broadcast %cst_198 : f32 to vector<1x1x128xf32>
    %412 = arith.addf %410, %411 : vector<1x1x128xf32>
    %413 = math.rsqrt %412 : vector<1x1x128xf32>
    %c9_199 = arith.constant 9 : index
    %c0_200 = arith.constant 0 : index
    %c0_201 = arith.constant 0 : index
    %414 = vector.load %arg6[%c9_199, %c0_200, %c0_201] : memref<10x1x128xf32, #tpu.memory_space<vmem>>, vector<1x1x128xf32>
    %415 = vector.shape_cast %414 : vector<1x1x128xf32> to vector<1x128xf32>
    %416 = vector.shape_cast %415 : vector<1x128xf32> to vector<1x1x128xf32>
    %417 = arith.mulf %413, %416 : vector<1x1x128xf32>
    %c9_202 = arith.constant 9 : index
    %c0_203 = arith.constant 0 : index
    %c0_204 = arith.constant 0 : index
    %418 = vector.load %arg7[%c9_202, %c0_203, %c0_204] : memref<10x1x128xf32, #tpu.memory_space<vmem>>, vector<1x1x128xf32>
    %419 = vector.shape_cast %418 : vector<1x1x128xf32> to vector<1x128xf32>
    %420 = arith.mulf %401, %417 : vector<1x1x128xf32>
    %421 = vector.shape_cast %419 : vector<1x128xf32> to vector<1x1x128xf32>
    %422 = arith.subf %421, %420 : vector<1x1x128xf32>
    %423 = vector.broadcast %417 : vector<1x1x128xf32> to vector<1x8x128xf32>
    %424 = arith.mulf %397, %423 : vector<1x8x128xf32>
    %425 = vector.broadcast %422 : vector<1x1x128xf32> to vector<1x8x128xf32>
    %426 = arith.addf %424, %425 : vector<1x8x128xf32>
    %cst_205 = arith.constant 0.000000e+00 : f32
    %427 = vector.broadcast %cst_205 : f32 to vector<1x8x128xf32>
    %428 = arith.maximumf %426, %427 : vector<1x8x128xf32>
    %429 = arith.addf %428, %346 : vector<1x8x128xf32>
    %430 = vector.extract_strided_slice %2 {offsets = [0, 0], sizes = [128, 4], strides = [1, 1]} : vector<128x128xbf16> to vector<128x4xbf16>
    %431 = vector.extract_strided_slice %3 {offsets = [0, 0], sizes = [1, 4], strides = [1, 1]} : vector<1x128xf32> to vector<1x4xf32>
    %432 = vector.shape_cast %429 : vector<1x8x128xf32> to vector<8x128xf32>
    %433 = arith.truncf %432 : vector<8x128xf32> to vector<8x128xbf16>
    %cst_206 = arith.constant dense<0.000000e+00> : vector<8x4xf32>
    %434 = tpu.matmul %433, %430, %cst_206 {dimension_numbers = #tpu.dot_dimension_numbers<[1], [0], [0], [1], [0, 0, 1, 1], [], []>} : vector<8x128xbf16>, vector<128x4xbf16>, vector<8x4xf32> -> vector<8x4xf32>
    %435 = vector.broadcast %431 : vector<1x4xf32> to vector<8x4xf32>
    %436 = arith.addf %434, %435 : vector<8x4xf32>
    %437 = vector.shape_cast %436 : vector<8x4xf32> to vector<1x8x4xf32>
    %438 = math.tanh %437 : vector<1x8x4xf32>
    %cst_207 = arith.constant 0.000000e+00 : f32
    %439 = vector.broadcast %cst_207 : f32 to vector<1x8x4xf32>
    %440 = arith.maximumf %438, %439 : vector<1x8x4xf32>
    %441 = arith.mulf %440, %440 : vector<1x8x4xf32>
    %cst_208 = arith.constant dense<0.000000e+00> : vector<1xf32>
    %442 = vector.multi_reduction <add>, %441, %cst_208 [1, 2] : vector<1x8x4xf32> to vector<1xf32>
    %443 = vector.shape_cast %442 : vector<1xf32> to vector<1x1x1xf32>
    %cst_209 = arith.constant dense<0.000000e+00> : vector<1x128xf32>
    %444 = vector.multi_reduction <add>, %429, %cst_209 [1] : vector<1x8x128xf32> to vector<1x128xf32>
    %445 = vector.shape_cast %444 : vector<1x128xf32> to vector<1x1x128xf32>
    %446 = vector.broadcast %443 : vector<1x1x1xf32> to vector<1x1x128xf32>
    %447 = arith.mulf %446, %445 : vector<1x1x128xf32>
    %448 = vector.broadcast %447 : vector<1x1x128xf32> to vector<1x8x128xf32>
    %449 = arith.addf %448, %429 : vector<1x8x128xf32>
    %cst_210 = arith.constant 8.000000e+00 : f32
    %450 = vector.broadcast %cst_210 : f32 to vector<1x1x1xf32>
    %451 = arith.mulf %450, %443 : vector<1x1x1xf32>
    %cst_211 = arith.constant 1.000000e+00 : f32
    %452 = vector.broadcast %cst_211 : f32 to vector<1x1x1xf32>
    %453 = arith.addf %451, %452 : vector<1x1x1xf32>
    %cst_212 = arith.constant 1.000000e+00 : f32
    %454 = vector.broadcast %cst_212 : f32 to vector<1x1x1xf32>
    %455 = arith.divf %454, %453 : vector<1x1x1xf32>
    %456 = vector.broadcast %455 : vector<1x1x1xf32> to vector<1x8x128xf32>
    %457 = arith.mulf %449, %456 : vector<1x8x128xf32>
    %458 = vector.shape_cast %457 : vector<1x8x128xf32> to vector<8x128xf32>
    %459 = arith.truncf %458 : vector<8x128xf32> to vector<8x128xbf16>
    %cst_213 = arith.constant dense<0.000000e+00> : vector<8x128xf32>
    %460 = tpu.matmul %459, %4, %cst_213 {dimension_numbers = #tpu.dot_dimension_numbers<[1], [0], [0], [1], [0, 0, 1, 1], [], []>} : vector<8x128xbf16>, vector<128x128xbf16>, vector<8x128xf32> -> vector<8x128xf32>
    %461 = vector.broadcast %5 : vector<1x128xf32> to vector<8x128xf32>
    %462 = arith.addf %460, %461 : vector<8x128xf32>
    %463 = vector.shape_cast %462 : vector<8x128xf32> to vector<1x8x128xf32>
    %cst_214 = arith.constant 0.000000e+00 : f32
    %464 = vector.broadcast %cst_214 : f32 to vector<1x8x128xf32>
    %465 = arith.maximumf %463, %464 : vector<1x8x128xf32>
    %466 = arith.addf %465, %429 : vector<1x8x128xf32>
    %467 = vector.shape_cast %466 : vector<1x8x128xf32> to vector<8x128xf32>
    %468 = arith.truncf %467 : vector<8x128xf32> to vector<8x128xbf16>
    %cst_215 = arith.constant dense<0.000000e+00> : vector<8x128xf32>
    %469 = tpu.matmul %468, %2, %cst_215 {dimension_numbers = #tpu.dot_dimension_numbers<[1], [0], [0], [1], [0, 0, 1, 1], [], []>} : vector<8x128xbf16>, vector<128x128xbf16>, vector<8x128xf32> -> vector<8x128xf32>
    %470 = vector.broadcast %3 : vector<1x128xf32> to vector<8x128xf32>
    %471 = arith.addf %469, %470 : vector<8x128xf32>
    %472 = vector.shape_cast %471 : vector<8x128xf32> to vector<1x8x128xf32>
    %cst_216 = arith.constant 0.000000e+00 : f32
    %473 = vector.broadcast %cst_216 : f32 to vector<1x8x128xf32>
    %474 = arith.minimumf %472, %473 : vector<1x8x128xf32>
    %475 = math.absf %472 : vector<1x8x128xf32>
    %cst_217 = arith.constant 0.000000e+00 : f32
    %476 = vector.broadcast %cst_217 : f32 to vector<1x8x128xf32>
    %477 = arith.subf %476, %475 : vector<1x8x128xf32>
    %478 = math.exp %477 : vector<1x8x128xf32>
    %cst_218 = arith.constant 1.000000e+00 : f32
    %479 = vector.broadcast %cst_218 : f32 to vector<1x8x128xf32>
    %480 = arith.addf %479, %478 : vector<1x8x128xf32>
    %481 = math.log %480 : vector<1x8x128xf32>
    %482 = arith.subf %474, %481 : vector<1x8x128xf32>
    %483 = tpu.iota {dimensions = array<i32: 2>} : vector<1x8x128xi32>
    %cst_219 = arith.constant dense<0xFF800000> : vector<1x128xf32>
    %484 = vector.multi_reduction <maximumf>, %482, %cst_219 [1] : vector<1x8x128xf32> to vector<1x128xf32>
    %485 = vector.shape_cast %484 : vector<1x128xf32> to vector<1x1x128xf32>
    %486 = vector.broadcast %485 : vector<1x1x128xf32> to vector<1x8x128xf32>
    %487 = arith.subf %482, %486 : vector<1x8x128xf32>
    %488 = math.exp %487 : vector<1x8x128xf32>
    %cst_220 = arith.constant dense<0.000000e+00> : vector<1x128xf32>
    %489 = vector.multi_reduction <add>, %488, %cst_220 [1] : vector<1x8x128xf32> to vector<1x128xf32>
    %490 = vector.shape_cast %489 : vector<1x128xf32> to vector<1x1x128xf32>
    %491 = math.log %490 : vector<1x1x128xf32>
    %492 = arith.addf %485, %491 : vector<1x1x128xf32>
    %493 = vector.broadcast %492 : vector<1x1x128xf32> to vector<1x8x128xf32>
    %494 = arith.subf %482, %493 : vector<1x8x128xf32>
    %c4_i32 = arith.constant 4 : i32
    %495 = vector.broadcast %c4_i32 : i32 to vector<1x8x128xi32>
    %496 = arith.cmpi sge, %483, %495 : vector<1x8x128xi32>
    %c8_i32 = arith.constant 8 : i32
    %497 = vector.broadcast %c8_i32 : i32 to vector<1x8x128xi32>
    %498 = arith.cmpi slt, %483, %497 : vector<1x8x128xi32>
    %499 = arith.andi %496, %498 : vector<1x8x128xi1>
    %cst_221 = arith.constant 0xFF800000 : f32
    %500 = vector.broadcast %cst_221 : f32 to vector<1x8x128xf32>
    %501 = arith.select %499, %482, %500 : vector<1x8x128xi1>, vector<1x8x128xf32>
    %cst_222 = arith.constant dense<0xFF800000> : vector<1x8xf32>
    %502 = vector.multi_reduction <maximumf>, %501, %cst_222 [2] : vector<1x8x128xf32> to vector<1x8xf32>
    %503 = vector.shape_cast %502 : vector<1x8xf32> to vector<1x8x1xf32>
    %504 = vector.broadcast %503 : vector<1x8x1xf32> to vector<1x8x128xf32>
    %505 = arith.subf %501, %504 : vector<1x8x128xf32>
    %506 = math.exp %505 : vector<1x8x128xf32>
    %cst_223 = arith.constant dense<0.000000e+00> : vector<1x8xf32>
    %507 = vector.multi_reduction <add>, %506, %cst_223 [2] : vector<1x8x128xf32> to vector<1x8xf32>
    %508 = vector.shape_cast %507 : vector<1x8xf32> to vector<1x8x1xf32>
    %509 = math.log %508 : vector<1x8x1xf32>
    %510 = arith.addf %503, %509 : vector<1x8x1xf32>
    %511 = vector.broadcast %510 : vector<1x8x1xf32> to vector<1x8x128xf32>
    %512 = arith.subf %482, %511 : vector<1x8x128xf32>
    %c4_i32_224 = arith.constant 4 : i32
    %513 = vector.broadcast %c4_i32_224 : i32 to vector<1x8x128xi32>
    %514 = arith.cmpi slt, %483, %513 : vector<1x8x128xi32>
    %515 = arith.select %514, %494, %512 : vector<1x8x128xi1>, vector<1x8x128xf32>
    %c0_225 = arith.constant 0 : index
    %c0_226 = arith.constant 0 : index
    %c0_227 = arith.constant 0 : index
    %516 = vector.load %arg12[%c0_225, %c0_226, %c0_227] : memref<1x8x128xf32, #tpu.memory_space<vmem>>, vector<1x8x128xf32>
    tpu.vector_store %arg12[%c0_225, %c0_226, %c0_227], %515 {strides = array<i32>} : memref<1x8x128xf32, #tpu.memory_space<vmem>>, vector<1x8x128xf32>,
    return
  }
  func.func @transform_0(%arg0: i32) -> (i32, i32, i32) {
    %c0_i32 = arith.constant 0 : i32
    %c0_i32_0 = arith.constant 0 : i32
    %c0_i32_1 = arith.constant 0 : i32
    return %arg0, %c0_i32, %c0_i32_0 : i32, i32, i32
  }
  func.func @transform_1(%arg0: i32) -> (i32, i32) {
    %c0_i32 = arith.constant 0 : i32
    %c0_i32_0 = arith.constant 0 : i32
    %c0_i32_1 = arith.constant 0 : i32
    return %c0_i32, %c0_i32_0 : i32, i32
  }
  func.func @transform_2(%arg0: i32) -> (i32, i32) {
    %c0_i32 = arith.constant 0 : i32
    %c0_i32_0 = arith.constant 0 : i32
    %c0_i32_1 = arith.constant 0 : i32
    return %c0_i32, %c0_i32_0 : i32, i32
  }
  func.func @transform_3(%arg0: i32) -> (i32, i32, i32) {
    %c0_i32 = arith.constant 0 : i32
    %c0_i32_0 = arith.constant 0 : i32
    %c0_i32_1 = arith.constant 0 : i32
    %c0_i32_2 = arith.constant 0 : i32
    return %c0_i32, %c0_i32_0, %c0_i32_1 : i32, i32, i32
  }
  func.func @transform_4(%arg0: i32) -> (i32, i32, i32) {
    %c0_i32 = arith.constant 0 : i32
    %c0_i32_0 = arith.constant 0 : i32
    %c0_i32_1 = arith.constant 0 : i32
    %c0_i32_2 = arith.constant 0 : i32
    return %c0_i32, %c0_i32_0, %c0_i32_1 : i32, i32, i32
  }
  func.func @transform_5(%arg0: i32) -> (i32, i32, i32) {
    %c0_i32 = arith.constant 0 : i32
    %c0_i32_0 = arith.constant 0 : i32
    %c0_i32_1 = arith.constant 0 : i32
    %c0_i32_2 = arith.constant 0 : i32
    return %c0_i32, %c0_i32_0, %c0_i32_1 : i32, i32, i32
  }
  func.func @transform_6(%arg0: i32) -> (i32, i32, i32) {
    %c0_i32 = arith.constant 0 : i32
    %c0_i32_0 = arith.constant 0 : i32
    %c0_i32_1 = arith.constant 0 : i32
    %c0_i32_2 = arith.constant 0 : i32
    return %c0_i32, %c0_i32_0, %c0_i32_1 : i32, i32, i32
  }
  func.func @transform_7(%arg0: i32) -> (i32, i32) {
    %c0_i32 = arith.constant 0 : i32
    %c0_i32_0 = arith.constant 0 : i32
    %c0_i32_1 = arith.constant 0 : i32
    return %c0_i32, %c0_i32_0 : i32, i32
  }
  func.func @transform_8(%arg0: i32) -> (i32, i32) {
    %c0_i32 = arith.constant 0 : i32
    %c0_i32_0 = arith.constant 0 : i32
    %c0_i32_1 = arith.constant 0 : i32
    return %c0_i32, %c0_i32_0 : i32, i32
  }
  func.func @transform_9(%arg0: i32) -> (i32, i32) {
    %c0_i32 = arith.constant 0 : i32
    %c0_i32_0 = arith.constant 0 : i32
    %c0_i32_1 = arith.constant 0 : i32
    return %c0_i32, %c0_i32_0 : i32, i32
  }
  func.func @transform_10(%arg0: i32) -> (i32, i32) {
    %c0_i32 = arith.constant 0 : i32
    %c0_i32_0 = arith.constant 0 : i32
    %c0_i32_1 = arith.constant 0 : i32
    return %c0_i32, %c0_i32_0 : i32, i32
  }
  func.func @transform_11(%arg0: i32) -> (i32, i32, i32) {
    %c0_i32 = arith.constant 0 : i32
    %c0_i32_0 = arith.constant 0 : i32
    %c0_i32_1 = arith.constant 0 : i32
    return %arg0, %c0_i32, %c0_i32_0 : i32, i32, i32
  }
}

</mosaic_0001>

<llo_original>
// kernel: tpu_custom_call.1
$region0: #{tpu_custom_call.1}
  #allocation0 [shape = 'u32[]', space=smem, size = 0x4, offset = 0x4, fixed_abs, tag = 'smem constant byte address 0x4 - core index']
  #allocation1 [shape = 'u32[144,128]{1,0:T(1,128)}', space=vmem, size = 0x12000, scoped, tag = 'internal scratch']
  %s0 = inlined_call_operand.hbm [shape: f32[2,8,8], index: 0, kind: input, shape index: {}]
  %s1 = inlined_call_operand.hbm [shape: bf16[8,128], index: 1, kind: input, shape index: {}]
  %s2 = inlined_call_operand.hbm [shape: f32[1,128], index: 2, kind: input, shape index: {}]
  %s3 = inlined_call_operand.hbm [shape: bf16[10,128,128], index: 3, kind: input, shape index: {}]
  %s4 = inlined_call_operand.hbm [shape: f32[10,1,128], index: 4, kind: input, shape index: {}]
  %s5 = inlined_call_operand.hbm [shape: f32[10,1,128], index: 5, kind: input, shape index: {}]
  %s6 = inlined_call_operand.vmem [shape: f32[10,1,128], index: 6, kind: input, shape index: {}]
  %s7 = inlined_call_operand.hbm [shape: bf16[128,128], index: 7, kind: input, shape index: {}]
  %s8 = inlined_call_operand.vmem [shape: f32[1,128], index: 8, kind: input, shape index: {}]
  %s9 = inlined_call_operand.hbm [shape: bf16[128,128], index: 9, kind: input, shape index: {}]
  %s10 = inlined_call_operand.vmem [shape: f32[1,128], index: 10, kind: input, shape index: {}]
  %s11 = inlined_call_operand.hbm [shape: f32[2,8,128], index: 11, kind: output, shape index: {}]
  %s12 = sld [smem:[#allocation0]]
  $region109: #{tpu_custom_call.1} parent=0
    _
  %s14 = ssub.s32 1, %s12
  %s15 = scalar_select 0, %s14, %s12
  $region1: #{tpu_custom_call.1} parent=0
    #allocation2 [shape = 'u8[8192]{0}', space=vmem, size = 0x2000, scoped, tag = 'input window, operand 0']
    #allocation3 [shape = 's32[2]{0}', space=sflag, size = 0x8, scoped, tag = 'scoped memory for tpu_custom_call.1']
    #allocation4 [shape = 's32[2]{0}', space=sflag, size = 0x8, scoped, tag = 'scoped memory for tpu_custom_call.1']
    #allocation5 [shape = 'u8[2048]{0}', space=vmem, size = 0x800, scoped, tag = 'input window, operand 1, single buffered']
    #allocation6 [shape = 's32[1]{0}', space=sflag, size = 0x4, scoped, tag = 'scoped memory for tpu_custom_call.1']
    #allocation7 [shape = 'u8[512]{0}', space=vmem, size = 0x400, scoped, tag = 'input window, operand 2, single buffered']
    #allocation8 [shape = 'u8[327680]{0}', space=vmem, size = 0x50000, scoped, tag = 'input window, operand 3, single buffered']
    #allocation9 [shape = 's32[1]{0}', space=sflag, size = 0x4, scoped, tag = 'scoped memory for tpu_custom_call.1']
    #allocation10 [shape = 'u8[5120]{0}', space=vmem, size = 0x1400, scoped, tag = 'input window, operand 4, single buffered']
    #allocation11 [shape = 'u8[5120]{0}', space=vmem, size = 0x1400, scoped, tag = 'input window, operand 5, single buffered']
    #allocation12 [shape = 's32[1]{0}', space=sflag, size = 0x4, scoped, tag = 'scoped memory for tpu_custom_call.1']
    #allocation13 [shape = 'u8[32768]{0}', space=vmem, size = 0x8000, scoped, tag = 'input window, operand 7, single buffered']
    #allocation14 [shape = 'u8[32768]{0}', space=vmem, size = 0x8000, scoped, tag = 'input window, operand 9, single buffered']
    #allocation15 [shape = 's32[1]{0}', space=sflag, size = 0x4, scoped, tag = 'scoped memory for tpu_custom_call.1']
    #allocation16 [shape = 'u8[8192]{0}', space=vmem, size = 0x2000, scoped, tag = 'output window, operand 0']
    %16 = vsyncpa [#allocation3], 0
    %s17 = scalar_lea.sflag [#allocation3], 1
    %18 = vsyncpa %s17, 0
    %19 = vsyncpa [#allocation6], 0
    %20 = vsyncpa [#allocation9], 0
    %21 = vsyncpa [#allocation12], 0
    %22 = vsyncpa [#allocation15], 0
    %23 = vsyncpa [#allocation4], 0
    %s24 = scalar_lea.sflag [#allocation4], 1
    %25 = vsyncpa %s24, 0
    loop: start=0, step=1, limit=4
    $region2: #{tpu_custom_call.1} parent=1 // loop_pre_header
      _
    $region3: #{tpu_custom_call.1} parent=1 // loop_header
      %s27 = sphi 0, %s31
      %p28 = scmp.ge.s32.totalorder %s27, 4
      %s37 = sphi 0, %s39
      %s40 = sphi 0, %s37
      %s41 = sphi 0, %s40
      %s57 = sphi 0, %s41
      %s61 = sphi 0, %s61
      %s63 = sphi 0, %s61
      %s64 = sphi 0, %s63
      %s78 = sphi 0, %s64
      %s82 = sphi 0, %s82
      %s84 = sphi 0, %s82
      %s85 = sphi 0, %s84
      %s99 = sphi 0, %s85
      %s103 = sphi 0, %s103
      %s105 = sphi 0, %s103
      %s106 = sphi 0, %s105
      %s120 = sphi 0, %s106
      %s124 = sphi 0, %s124
      %s126 = sphi 0, %s124
      %s127 = sphi 0, %s126
      %s141 = sphi 0, %s127
      %s145 = sphi 0, %s145
      %s147 = sphi 0, %s145
      %s148 = sphi 0, %s147
      %s162 = sphi 0, %s148
      %s166 = sphi 0, %s166
      %s168 = sphi 0, %s166
      %s169 = sphi 0, %s168
      %s183 = sphi 0, %s169
      %s187 = sphi 0, %s187
      %s189 = sphi 0, %s187
      %s190 = sphi 0, %s189
      %s204 = sphi 0, %s190
      %s208 = sphi 0, %s208
      %s210 = sphi 0, %s208
      %s211 = sphi 0, %s210
      %s225 = sphi 0, %s211
      %s229 = sphi 0, %s229
      %s231 = sphi 0, %s229
      %s232 = sphi 0, %s231
      %s246 = sphi 0, %s232
      %s250 = sphi 0, %s250
      %s252 = sphi 0, %s250
      %s253 = sphi 0, %s252
      %s267 = sphi 0, %s253
      %s273 = sphi 0, %s275
      %s276 = sphi 0, %s273
      %s277 = sphi 0, %s276
      %s293 = sphi 0, %s277
    $region4: #{tpu_custom_call.1} parent=1 // loop_header_branch
      %30 = sbr.rel (%p28) target = $region8
    $region5: #{tpu_custom_call.1} parent=1 // loop_body
      %s32 = ssub.s32 %s27, 1
      %s33 = ssub.s32 %s27, 2
      %s34 = sadd.s32 %s27, 1
      %s35 = ssub.s32 %s27, %s34
      %p36 = scmp.eq.s32.totalorder %s35, 0
      %s38 = sadd.s32 %s37, 1
      %s39 = scalar_select %p36, %s37, %s38
      %p42 = pneg %p36
      %p43 = scmp.eq.s32.totalorder %s27, 1
      %p44 = por %p42, %p43
      %p45 = scmp.ne.s32.totalorder %s37, %s40
      %p46 = scmp.eq.s32.totalorder %s27, 0
      %p47 = por %p45, %p46
      %p48 = scmp.ne.s32.totalorder %s37, %s40
      %p49 = scmp.eq.s32.totalorder %s32, 1
      %p50 = por %p48, %p49
      %p51 = scmp.ne.s32.totalorder %s40, %s41
      %p52 = scmp.eq.s32.totalorder %s32, 0
      %p53 = por %p51, %p52
      %p54 = scmp.ne.s32.totalorder %s40, %s41
      %p55 = scmp.eq.s32.totalorder %s33, 1
      %p56 = por %p54, %p55
      %p58 = scmp.ne.s32.totalorder %s41, %s57
      %p59 = scmp.eq.s32.totalorder %s33, 0
      %p60 = por %p58, %p59
      %s62 = sadd.s32 %s61, 1
      %p65 = scmp.eq.s32.totalorder %s27, 1
      %p66 = scmp.ne.s32.totalorder %s61, %s63
      %p67 = scmp.eq.s32.totalorder %s27, 0
      %p68 = por %p66, %p67
      %p69 = scmp.ne.s32.totalorder %s61, %s63
      %p70 = scmp.eq.s32.totalorder %s32, 1
      %p71 = por %p69, %p70
      %p72 = scmp.ne.s32.totalorder %s63, %s64
      %p73 = scmp.eq.s32.totalorder %s32, 0
      %p74 = por %p72, %p73
      %p75 = scmp.ne.s32.totalorder %s63, %s64
      %p76 = scmp.eq.s32.totalorder %s33, 1
      %p77 = por %p75, %p76
      %p79 = scmp.ne.s32.totalorder %s64, %s78
      %p80 = scmp.eq.s32.totalorder %s33, 0
      %p81 = por %p79, %p80
      %s83 = sadd.s32 %s82, 1
      %p86 = scmp.eq.s32.totalorder %s27, 1
      %p87 = scmp.ne.s32.totalorder %s82, %s84
      %p88 = scmp.eq.s32.totalorder %s27, 0
      %p89 = por %p87, %p88
      %p90 = scmp.ne.s32.totalorder %s82, %s84
      %p91 = scmp.eq.s32.totalorder %s32, 1
      %p92 = por %p90, %p91
      %p93 = scmp.ne.s32.totalorder %s84, %s85
      %p94 = scmp.eq.s32.totalorder %s32, 0
      %p95 = por %p93, %p94
      %p96 = scmp.ne.s32.totalorder %s84, %s85
      %p97 = scmp.eq.s32.totalorder %s33, 1
      %p98 = por %p96, %p97
      %p100 = scmp.ne.s32.totalorder %s85, %s99
      %p101 = scmp.eq.s32.totalorder %s33, 0
      %p102 = por %p100, %p101
      %s104 = sadd.s32 %s103, 1
      %p107 = scmp.eq.s32.totalorder %s27, 1
      %p108 = scmp.ne.s32.totalorder %s103, %s105
      %p109 = scmp.eq.s32.totalorder %s27, 0
      %p110 = por %p108, %p109
      %p111 = scmp.ne.s32.totalorder %s103, %s105
      %p112 = scmp.eq.s32.totalorder %s32, 1
      %p113 = por %p111, %p112
      %p114 = scmp.ne.s32.totalorder %s105, %s106
      %p115 = scmp.eq.s32.totalorder %s32, 0
      %p116 = por %p114, %p115
      %p117 = scmp.ne.s32.totalorder %s105, %s106
      %p118 = scmp.eq.s32.totalorder %s33, 1
      %p119 = por %p117, %p118
      %p121 = scmp.ne.s32.totalorder %s106, %s120
      %p122 = scmp.eq.s32.totalorder %s33, 0
      %p123 = por %p121, %p122
      %s125 = sadd.s32 %s124, 1
      %p128 = scmp.eq.s32.totalorder %s27, 1
      %p129 = scmp.ne.s32.totalorder %s124, %s126
      %p130 = scmp.eq.s32.totalorder %s27, 0
      %p131 = por %p129, %p130
      %p132 = scmp.ne.s32.totalorder %s124, %s126
      %p133 = scmp.eq.s32.totalorder %s32, 1
      %p134 = por %p132, %p133
      %p135 = scmp.ne.s32.totalorder %s126, %s127
      %p136 = scmp.eq.s32.totalorder %s32, 0
      %p137 = por %p135, %p136
      %p138 = scmp.ne.s32.totalorder %s126, %s127
      %p139 = scmp.eq.s32.totalorder %s33, 1
      %p140 = por %p138, %p139
      %p142 = scmp.ne.s32.totalorder %s127, %s141
      %p143 = scmp.eq.s32.totalorder %s33, 0
      %p144 = por %p142, %p143
      %s146 = sadd.s32 %s145, 1
      %p149 = scmp.eq.s32.totalorder %s27, 1
      %p150 = scmp.ne.s32.totalorder %s145, %s147
      %p151 = scmp.eq.s32.totalorder %s27, 0
      %p152 = por %p150, %p151
      %p153 = scmp.ne.s32.totalorder %s145, %s147
      %p154 = scmp.eq.s32.totalorder %s32, 1
      %p155 = por %p153, %p154
      %p156 = scmp.ne.s32.totalorder %s147, %s148
      %p157 = scmp.eq.s32.totalorder %s32, 0
      %p158 = por %p156, %p157
      %p159 = scmp.ne.s32.totalorder %s147, %s148
      %p160 = scmp.eq.s32.totalorder %s33, 1
      %p161 = por %p159, %p160
      %p163 = scmp.ne.s32.totalorder %s148, %s162
      %p164 = scmp.eq.s32.totalorder %s33, 0
      %p165 = por %p163, %p164
      %s167 = sadd.s32 %s166, 1
      %p170 = scmp.eq.s32.totalorder %s27, 1
      %p171 = scmp.ne.s32.totalorder %s166, %s168
      %p172 = scmp.eq.s32.totalorder %s27, 0
      %p173 = por %p171, %p172
      %p174 = scmp.ne.s32.totalorder %s166, %s168
      %p175 = scmp.eq.s32.totalorder %s32, 1
      %p176 = por %p174, %p175
      %p177 = scmp.ne.s32.totalorder %s168, %s169
      %p178 = scmp.eq.s32.totalorder %s32, 0
      %p179 = por %p177, %p178
      %p180 = scmp.ne.s32.totalorder %s168, %s169
      %p181 = scmp.eq.s32.totalorder %s33, 1
      %p182 = por %p180, %p181
      %p184 = scmp.ne.s32.totalorder %s169, %s183
      %p185 = scmp.eq.s32.totalorder %s33, 0
      %p186 = por %p184, %p185
      %s188 = sadd.s32 %s187, 1
      %p191 = scmp.eq.s32.totalorder %s27, 1
      %p192 = scmp.ne.s32.totalorder %s187, %s189
      %p193 = scmp.eq.s32.totalorder %s27, 0
      %p194 = por %p192, %p193
      %p195 = scmp.ne.s32.totalorder %s187, %s189
      %p196 = scmp.eq.s32.totalorder %s32, 1
      %p197 = por %p195, %p196
      %p198 = scmp.ne.s32.totalorder %s189, %s190
      %p199 = scmp.eq.s32.totalorder %s32, 0
      %p200 = por %p198, %p199
      %p201 = scmp.ne.s32.totalorder %s189, %s190
      %p202 = scmp.eq.s32.totalorder %s33, 1
      %p203 = por %p201, %p202
      %p205 = scmp.ne.s32.totalorder %s190, %s204
      %p206 = scmp.eq.s32.totalorder %s33, 0
      %p207 = por %p205, %p206
      %s209 = sadd.s32 %s208, 1
      %p212 = scmp.eq.s32.totalorder %s27, 1
      %p213 = scmp.ne.s32.totalorder %s208, %s210
      %p214 = scmp.eq.s32.totalorder %s27, 0
      %p215 = por %p213, %p214
      %p216 = scmp.ne.s32.totalorder %s208, %s210
      %p217 = scmp.eq.s32.totalorder %s32, 1
      %p218 = por %p216, %p217
      %p219 = scmp.ne.s32.totalorder %s210, %s211
      %p220 = scmp.eq.s32.totalorder %s32, 0
      %p221 = por %p219, %p220
      %p222 = scmp.ne.s32.totalorder %s210, %s211
      %p223 = scmp.eq.s32.totalorder %s33, 1
      %p224 = por %p222, %p223
      %p226 = scmp.ne.s32.totalorder %s211, %s225
      %p227 = scmp.eq.s32.totalorder %s33, 0
      %p228 = por %p226, %p227
      %s230 = sadd.s32 %s229, 1
      %p233 = scmp.eq.s32.totalorder %s27, 1
      %p234 = scmp.ne.s32.totalorder %s229, %s231
      %p235 = scmp.eq.s32.totalorder %s27, 0
      %p236 = por %p234, %p235
      %p237 = scmp.ne.s32.totalorder %s229, %s231
      %p238 = scmp.eq.s32.totalorder %s32, 1
      %p239 = por %p237, %p238
      %p240 = scmp.ne.s32.totalorder %s231, %s232
      %p241 = scmp.eq.s32.totalorder %s32, 0
      %p242 = por %p240, %p241
      %p243 = scmp.ne.s32.totalorder %s231, %s232
      %p244 = scmp.eq.s32.totalorder %s33, 1
      %p245 = por %p243, %p244
      %p247 = scmp.ne.s32.totalorder %s232, %s246
      %p248 = scmp.eq.s32.totalorder %s33, 0
      %p249 = por %p247, %p248
      %s251 = sadd.s32 %s250, 1
      %p254 = scmp.eq.s32.totalorder %s27, 1
      %p255 = scmp.ne.s32.totalorder %s250, %s252
      %p256 = scmp.eq.s32.totalorder %s27, 0
      %p257 = por %p255, %p256
      %p258 = scmp.ne.s32.totalorder %s250, %s252
      %p259 = scmp.eq.s32.totalorder %s32, 1
      %p260 = por %p258, %p259
      %p261 = scmp.ne.s32.totalorder %s252, %s253
      %p262 = scmp.eq.s32.totalorder %s32, 0
      %p263 = por %p261, %p262
      %p264 = scmp.ne.s32.totalorder %s252, %s253
      %p265 = scmp.eq.s32.totalorder %s33, 1
      %p266 = por %p264, %p265
      %p268 = scmp.ne.s32.totalorder %s253, %s267
      %p269 = scmp.eq.s32.totalorder %s33, 0
      %p270 = por %p268, %p269
      %s271 = ssub.s32 %s27, %s34
      %p272 = scmp.eq.s32.totalorder %s271, 0
      %s274 = sadd.s32 %s273, 1
      %s275 = scalar_select %p272, %s273, %s274
      %p278 = pneg %p272
      %p279 = scmp.eq.s32.totalorder %s27, 1
      %p280 = por %p278, %p279
      %p281 = scmp.ne.s32.totalorder %s273, %s276
      %p282 = scmp.eq.s32.totalorder %s27, 0
      %p283 = por %p281, %p282
      %p284 = scmp.ne.s32.totalorder %s273, %s276
      %p285 = scmp.eq.s32.totalorder %s32, 1
      %p286 = por %p284, %p285
      %p287 = scmp.ne.s32.totalorder %s276, %s277
      %p288 = scmp.eq.s32.totalorder %s32, 0
      %p289 = por %p287, %p288
      %p290 = scmp.ne.s32.totalorder %s276, %s277
      %p291 = scmp.eq.s32.totalorder %s33, 1
      %p292 = por %p290, %p291
      %p294 = scmp.ne.s32.totalorder %s277, %s293
      %p295 = scmp.eq.s32.totalorder %s33, 0
      %p296 = por %p294, %p295
      %p297 = scmp.le.s32.totalorder 1, %s27
      %p298 = scmp.lt.s32.totalorder %s27, 3
      %p299 = pnand %p297, %p298
      %p300 = pneg %p299
      // Predicated region
      $region9: #{tpu_custom_call.1} parent=5 // pred_check
        _
      $region10: #{tpu_custom_call.1} parent=5 // pred_check_branch
        %302 = sbr.rel (%p299) target = $region12
      $region11: #{tpu_custom_call.1} parent=5 // pred_region
        %s303 = ssub.s32 %s27, 1
        // Predicated region
        $region13: #{tpu_custom_call.1} parent=11 // pred_check
          %p304 = pneg %p74
        $region14: #{tpu_custom_call.1} parent=11 // pred_check_branch
          %306 = sbr.rel (%p304) target = $region16
        $region15: #{tpu_custom_call.1} parent=11 // pred_region
          %s308 = ssub.s32 64, 64
          %309 = vsyncadd [#allocation6], %s308
          %s311 = sshll.u32 [#allocation5], 4
          %s312 = int_to_ptr.vmem [resolvable:$true] %s311
          %314 = dma.hbm_to_vmem [thread:$0]  %s1, 64, %s312, [#allocation6]
        $region16: #{tpu_custom_call.1} parent=11 // pred_fallthru
          _
        // Predicated region
        $region17: #{tpu_custom_call.1} parent=11 // pred_check
          %p315 = pneg %p95
        $region18: #{tpu_custom_call.1} parent=11 // pred_check_branch
          %317 = sbr.rel (%p315) target = $region20
        $region19: #{tpu_custom_call.1} parent=11 // pred_region
          %s319 = ssub.s32 16, 16
          %320 = vsyncadd [#allocation6], %s319
          %s322 = sshll.u32 [#allocation7], 4
          %s323 = int_to_ptr.vmem [resolvable:$true] %s322
          %325 = dma.hbm_to_vmem [thread:$0]  %s2, 16, %s323, [#allocation6]
        $region20: #{tpu_custom_call.1} parent=11 // pred_fallthru
          _
        // Predicated region
        $region21: #{tpu_custom_call.1} parent=11 // pred_check
          %p326 = pneg %p116
        $region22: #{tpu_custom_call.1} parent=11 // pred_check_branch
          %328 = sbr.rel (%p326) target = $region24
        $region23: #{tpu_custom_call.1} parent=11 // pred_region
          %s330 = ssub.s32 10240, 10240
          %331 = vsyncadd [#allocation9], %s330
          %s332 = sshll.u32 [#allocation8], 4
          %s333 = int_to_ptr.vmem [resolvable:$true] %s332
          %338 = dma.hbm_to_vmem [thread:$0]  %s3, 10240, %s333, [#allocation9], 64, 64, 4
        $region24: #{tpu_custom_call.1} parent=11 // pred_fallthru
          _
        // Predicated region
        $region25: #{tpu_custom_call.1} parent=11 // pred_check
          %p339 = pneg %p137
        $region26: #{tpu_custom_call.1} parent=11 // pred_check_branch
          %341 = sbr.rel (%p339) target = $region28
        $region27: #{tpu_custom_call.1} parent=11 // pred_region
          %s343 = ssub.s32 160, 160
          %344 = vsyncadd [#allocation9], %s343
          %s345 = sshll.u32 [#allocation10], 4
          %s346 = int_to_ptr.vmem [resolvable:$true] %s345
          %351 = dma.hbm_to_vmem [thread:$0]  %s4, 160, %s346, [#allocation9], 16, 16, 1
        $region28: #{tpu_custom_call.1} parent=11 // pred_fallthru
          _
        // Predicated region
        $region29: #{tpu_custom_call.1} parent=11 // pred_check
          %p352 = pneg %p158
        $region30: #{tpu_custom_call.1} parent=11 // pred_check_branch
          %354 = sbr.rel (%p352) target = $region32
        $region31: #{tpu_custom_call.1} parent=11 // pred_region
          %s356 = ssub.s32 160, 160
          %357 = vsyncadd [#allocation12], %s356
          %s358 = sshll.u32 [#allocation11], 4
          %s359 = int_to_ptr.vmem [resolvable:$true] %s358
          %364 = dma.hbm_to_vmem [thread:$0]  %s5, 160, %s359, [#allocation12], 16, 16, 1
        $region32: #{tpu_custom_call.1} parent=11 // pred_fallthru
          _
        // Predicated region
        $region33: #{tpu_custom_call.1} parent=11 // pred_check
          %p365 = pneg %p179
        $region34: #{tpu_custom_call.1} parent=11 // pred_check_branch
          %367 = sbr.rel (%p365) target = $region36
        $region35: #{tpu_custom_call.1} parent=11 // pred_region
          _
        $region36: #{tpu_custom_call.1} parent=11 // pred_fallthru
          _
        // Predicated region
        $region37: #{tpu_custom_call.1} parent=11 // pred_check
          %p368 = pneg %p200
        $region38: #{tpu_custom_call.1} parent=11 // pred_check_branch
          %370 = sbr.rel (%p368) target = $region40
        $region39: #{tpu_custom_call.1} parent=11 // pred_region
          %s372 = ssub.s32 1024, 1024
          %373 = vsyncadd [#allocation12], %s372
          %s374 = sshll.u32 [#allocation13], 4
          %s375 = int_to_ptr.vmem [resolvable:$true] %s374
          %380 = dma.hbm_to_vmem [thread:$0]  %s7, 1024, %s375, [#allocation12], 64, 64, 4
        $region40: #{tpu_custom_call.1} parent=11 // pred_fallthru
          _
        // Predicated region
        $region41: #{tpu_custom_call.1} parent=11 // pred_check
          %p381 = pneg %p221
        $region42: #{tpu_custom_call.1} parent=11 // pred_check_branch
          %383 = sbr.rel (%p381) target = $region44
        $region43: #{tpu_custom_call.1} parent=11 // pred_region
          _
        $region44: #{tpu_custom_call.1} parent=11 // pred_fallthru
          _
        // Predicated region
        $region45: #{tpu_custom_call.1} parent=11 // pred_check
          %p384 = pneg %p242
        $region46: #{tpu_custom_call.1} parent=11 // pred_check_branch
          %386 = sbr.rel (%p384) target = $region48
        $region47: #{tpu_custom_call.1} parent=11 // pred_region
          %s388 = ssub.s32 1024, 1024
          %389 = vsyncadd [#allocation15], %s388
          %s390 = sshll.u32 [#allocation14], 4
          %s391 = int_to_ptr.vmem [resolvable:$true] %s390
          %396 = dma.hbm_to_vmem [thread:$0]  %s9, 1024, %s391, [#allocation15], 64, 64, 4
        $region48: #{tpu_custom_call.1} parent=11 // pred_fallthru
          _
        // Predicated region
        $region49: #{tpu_custom_call.1} parent=11 // pred_check
          %p397 = pneg %p263
        $region50: #{tpu_custom_call.1} parent=11 // pred_check_branch
          %399 = sbr.rel (%p397) target = $region52
        $region51: #{tpu_custom_call.1} parent=11 // pred_region
          _
        $region52: #{tpu_custom_call.1} parent=11 // pred_fallthru
          _
      $region12: #{tpu_custom_call.1} parent=5 // pred_fallthru
        _
      %p400 = scmp.lt.s32.totalorder %s27, 2
      // Predicated region
      $region53: #{tpu_custom_call.1} parent=5 // pred_check
        %p401 = pneg %p400
      $region54: #{tpu_custom_call.1} parent=5 // pred_check_branch
        %403 = sbr.rel (%p401) target = $region56
      $region55: #{tpu_custom_call.1} parent=5 // pred_region
        // Predicated region
        $region57: #{tpu_custom_call.1} parent=55 // pred_check
          %p404 = pneg %p47
        $region58: #{tpu_custom_call.1} parent=55 // pred_check_branch
          %406 = sbr.rel (%p404) target = $region60
        $region59: #{tpu_custom_call.1} parent=55 // pred_region
          %s407 = sand.u32 %s37, 1
          %s408 = scalar_lea.sflag [#allocation3], %s407
          %s409 = sand.u32 %s37, 1
          %s410 = smul.addr %s409, 8
          %s411 = scalar_lea.vmem [#allocation2], %s410
          %s413 = ssub.s32 128, 128
          %414 = vsyncadd %s408, %s413
          %s415 = smul.addr %s27, 128
          %s416 = scalar_lea.hbm %s0, %s415
          %s418 = sshll.u32 %s411, 4
          %s419 = int_to_ptr.vmem [resolvable:$true] %s418
          %421 = dma.hbm_to_vmem [thread:$0]  %s416, 128, %s419, %s408
        $region60: #{tpu_custom_call.1} parent=55 // pred_fallthru
          _
      $region56: #{tpu_custom_call.1} parent=5 // pred_fallthru
        _
      %p422 = scmp.le.s32.totalorder 1, %s27
      %p423 = scmp.lt.s32.totalorder %s27, 3
      %p424 = pnand %p422, %p423
      %p425 = pneg %p424
      // Predicated region
      $region61: #{tpu_custom_call.1} parent=5 // pred_check
        _
      $region62: #{tpu_custom_call.1} parent=5 // pred_check_branch
        %427 = sbr.rel (%p424) target = $region64
      $region63: #{tpu_custom_call.1} parent=5 // pred_region
        %s428 = ssub.s32 %s27, 1
        %s429 = sand.u32 %s40, 1
        %s430 = scalar_lea.sflag [#allocation3], %s429
        %s431 = sand.u32 %s40, 1
        %s432 = smul.addr %s431, 8
        %s433 = scalar_lea.vmem [#allocation2], %s432
        // Predicated region
        $region65: #{tpu_custom_call.1} parent=63 // pred_check
          %p434 = pneg %p53
        $region66: #{tpu_custom_call.1} parent=63 // pred_check_branch
          %436 = sbr.rel (%p434) target = $region68
        $region67: #{tpu_custom_call.1} parent=63 // pred_region
          %437 = dma.done %s430, 128
        $region68: #{tpu_custom_call.1} parent=63 // pred_fallthru
          _
        // Predicated region
        $region69: #{tpu_custom_call.1} parent=63 // pred_check
          %p438 = pneg %p74
        $region70: #{tpu_custom_call.1} parent=63 // pred_check_branch
          %440 = sbr.rel (%p438) target = $region72
        $region71: #{tpu_custom_call.1} parent=63 // pred_region
          %441 = dma.done [#allocation6], 64
        $region72: #{tpu_custom_call.1} parent=63 // pred_fallthru
          _
        // Predicated region
        $region73: #{tpu_custom_call.1} parent=63 // pred_check
          %p442 = pneg %p95
        $region74: #{tpu_custom_call.1} parent=63 // pred_check_branch
          %444 = sbr.rel (%p442) target = $region76
        $region75: #{tpu_custom_call.1} parent=63 // pred_region
          %445 = dma.done [#allocation6], 16
        $region76: #{tpu_custom_call.1} parent=63 // pred_fallthru
          _
        // Predicated region
        $region77: #{tpu_custom_call.1} parent=63 // pred_check
          %p446 = pneg %p116
        $region78: #{tpu_custom_call.1} parent=63 // pred_check_branch
          %448 = sbr.rel (%p446) target = $region80
        $region79: #{tpu_custom_call.1} parent=63 // pred_region
          %449 = dma.done [#allocation9], 10240
        $region80: #{tpu_custom_call.1} parent=63 // pred_fallthru
          _
        // Predicated region
        $region81: #{tpu_custom_call.1} parent=63 // pred_check
          %p450 = pneg %p137
        $region82: #{tpu_custom_call.1} parent=63 // pred_check_branch
          %452 = sbr.rel (%p450) target = $region84
        $region83: #{tpu_custom_call.1} parent=63 // pred_region
          %453 = dma.done [#allocation9], 160
        $region84: #{tpu_custom_call.1} parent=63 // pred_fallthru
          _
        // Predicated region
        $region85: #{tpu_custom_call.1} parent=63 // pred_check
          %p454 = pneg %p158
        $region86: #{tpu_custom_call.1} parent=63 // pred_check_branch
          %456 = sbr.rel (%p454) target = $region88
        $region87: #{tpu_custom_call.1} parent=63 // pred_region
          %457 = dma.done [#allocation12], 160
        $region88: #{tpu_custom_call.1} parent=63 // pred_fallthru
          _
        // Predicated region
        $region89: #{tpu_custom_call.1} parent=63 // pred_check
          %p458 = pneg %p200
        $region90: #{tpu_custom_call.1} parent=63 // pred_check_branch
          %460 = sbr.rel (%p458) target = $region92
        $region91: #{tpu_custom_call.1} parent=63 // pred_region
          %461 = dma.done [#allocation12], 1024
        $region92: #{tpu_custom_call.1} parent=63 // pred_fallthru
          _
        // Predicated region
        $region93: #{tpu_custom_call.1} parent=63 // pred_check
          %p462 = pneg %p242
        $region94: #{tpu_custom_call.1} parent=63 // pred_check_branch
          %464 = sbr.rel (%p462) target = $region96
        $region95: #{tpu_custom_call.1} parent=63 // pred_region
          %465 = dma.done [#allocation15], 1024
        $region96: #{tpu_custom_call.1} parent=63 // pred_fallthru
          _
        %s466 = sand.u32 %s40, 1
        %s467 = scalar_lea.sflag [#allocation3], %s466
        %s468 = sand.u32 %s40, 1
        %s469 = smul.addr %s468, 8
        %s470 = scalar_lea.vmem [#allocation2], %s469
        %p471 = pneg %p53
        %p472 = pneg %p50
        %p473 = pneg %p74
        %p474 = pneg %p71
        %p475 = pneg %p95
        %p476 = pneg %p92
        %p477 = pneg %p116
        %p478 = pneg %p113
        %p479 = pneg %p137
        %p480 = pneg %p134
        %p481 = pneg %p158
        %p482 = pneg %p155
        %p483 = pneg %p179
        %p484 = pneg %p176
        %p485 = pneg %p200
        %p486 = pneg %p197
        %p487 = pneg %p221
        %p488 = pneg %p218
        %p489 = pneg %p242
        %p490 = pneg %p239
        %p491 = pneg %p263
        %p492 = pneg %p260
        %p493 = pneg %p289
        %p494 = pneg %p286
        %s495 = sand.u32 %s276, 1
        %s496 = scalar_lea.sflag [#allocation4], %s495
        %s497 = sand.u32 %s276, 1
        %s498 = smul.addr %s497, 8
        %s499 = scalar_lea.vmem [#allocation16], %s498
        %v501 = vld [vmem:[#allocation5] sm:$0xf]
        %v502 = vld [vmem:[#allocation7] sm:$0x1]
        %v503 = vld [vmem:[#allocation13] sm:$0xf]
        %v504 = vld [vmem:[#allocation13 + $0x4] sm:$0xf]
        %v505 = vld [vmem:[#allocation13 + $0x8] sm:$0xf]
        %v506 = vld [vmem:[#allocation13 + $0xc] sm:$0xf]
        %v507 = vld [vmem:[#allocation13 + $0x10] sm:$0xf]
        %v508 = vld [vmem:[#allocation13 + $0x14] sm:$0xf]
        %v509 = vld [vmem:[#allocation13 + $0x18] sm:$0xf]
        %v510 = vld [vmem:[#allocation13 + $0x1c] sm:$0xf]
        %v511 = vld [vmem:[#allocation13 + $0x20] sm:$0xf]
        %v512 = vld [vmem:[#allocation13 + $0x24] sm:$0xf]
        %v513 = vld [vmem:[#allocation13 + $0x28] sm:$0xf]
        %v514 = vld [vmem:[#allocation13 + $0x2c] sm:$0xf]
        %v515 = vld [vmem:[#allocation13 + $0x30] sm:$0xf]
        %v516 = vld [vmem:[#allocation13 + $0x34] sm:$0xf]
        %v517 = vld [vmem:[#allocation13 + $0x38] sm:$0xf]
        %v518 = vld [vmem:[#allocation13 + $0x3c] sm:$0xf]
        %v519 = vld [vmem:[%s8] sm:$0x1]
        %v520 = vld [vmem:[#allocation14] sm:$0xf]
        %v521 = vld [vmem:[#allocation14 + $0x4] sm:$0xf]
        %v522 = vld [vmem:[#allocation14 + $0x8] sm:$0xf]
        %v523 = vld [vmem:[#allocation14 + $0xc] sm:$0xf]
        %v524 = vld [vmem:[#allocation14 + $0x10] sm:$0xf]
        %v525 = vld [vmem:[#allocation14 + $0x14] sm:$0xf]
        %v526 = vld [vmem:[#allocation14 + $0x18] sm:$0xf]
        %v527 = vld [vmem:[#allocation14 + $0x1c] sm:$0xf]
        %v528 = vld [vmem:[#allocation14 + $0x20] sm:$0xf]
        %v529 = vld [vmem:[#allocation14 + $0x24] sm:$0xf]
        %v530 = vld [vmem:[#allocation14 + $0x28] sm:$0xf]
        %v531 = vld [vmem:[#allocation14 + $0x2c] sm:$0xf]
        %v532 = vld [vmem:[#allocation14 + $0x30] sm:$0xf]
        %v533 = vld [vmem:[#allocation14 + $0x34] sm:$0xf]
        %v534 = vld [vmem:[#allocation14 + $0x38] sm:$0xf]
        %v535 = vld [vmem:[#allocation14 + $0x3c] sm:$0xf]
        %v536 = vld [vmem:[%s10] sm:$0x1]
        %v537 = vld [vmem:[%s433] sm:$0xff]
        %v538 = vpack.c.bf16 %v537, %v537
        %v540 = vlaneseq
        %v541 = vshrl.u32 %v540, 7
        %v542 = vsub.s32 0, %v541
        %v543 = vrot.slane %v502, %v542
        %vm545 = vcmask 64512
        %v547 = vsel %vm545, %v538, 0
        %vm549 = vcmask 1043456
        %v551 = vsel %vm549, %v501, 0
        %553 = vmatprep.subr.bf16.mxu0 0
        %554 = vmatpush1.bf16.msra.mxu0 0
        %555 = vmatprep.subr.bf16.mxu0 0
        %556 = vmatpush1.bf16.msra.mxu0 0
        %557 = vmatprep.subr.bf16.mxu0 0
        %558 = vmatpush1.bf16.msra.mxu0 0
        %559 = vmatprep.subr.bf16.mxu0 0
        %560 = vmatpush1.bf16.msra.mxu0 0
        %561 = vmatprep.subr.bf16.mxu0 0
        %562 = vmatpush1.bf16.msra.mxu0 0
        %563 = vmatprep.subr.bf16.mxu0 0
        %564 = vmatpush1.bf16.msra.mxu0 0
        %565 = vmatprep.subr.bf16.mxu0 0
        %566 = vmatpush1.bf16.msra.mxu0 0
        %567 = vmatprep.subr.bf16.mxu0 0
        %568 = vmatpush1.bf16.msra.mxu0 %v551
        %569 = vmatprep.subr.bf16.mxu0 0
        %570 = vmatpush2.bf16.msra.mxu0 0
        %571 = vmatprep.subr.bf16.mxu0 0
        %572 = vmatpush2.bf16.msra.mxu0 0
        %573 = vmatprep.subr.bf16.mxu0 0
        %574 = vmatpush2.bf16.msra.mxu0 0
        %575 = vmatprep.subr.bf16.mxu0 0
        %576 = vmatpush2.bf16.msra.mxu0 0
        %577 = vmatprep.subr.bf16.mxu0 0
        %578 = vmatpush2.bf16.msra.mxu0 0
        %579 = vmatprep.subr.bf16.mxu0 0
        %580 = vmatpush2.bf16.msra.mxu0 0
        %581 = vmatprep.subr.bf16.mxu0 0
        %582 = vmatpush2.bf16.msra.mxu0 0
        %583 = vmatprep.subr.bf16.mxu0 0
        %584 = vmatpush2.bf16.msra.mxu0 0
        %585 = vmatprep.mubr.bf16.mxu0 0
        %586 = vmatmul.mubr.bf16.gmra.mxu0 %v547
        %v587 = vpop.f32.mrf.mxu0
        %v588 = vadd.f32 %v543, %v587
        %v589 = vpop.f32.mrf.mxu0
        %v590 = vpop.f32.mrf.mxu0
        %v591 = vpop.f32.mrf.mxu0
        %592 = vdwg.mxu0
        %v593 = vmax.f32 %v588, 0.0
        %v594 = vld [vmem:[#allocation8] sm:$0xf]
        %v595 = vld [vmem:[#allocation8 + $0x4] sm:$0xf]
        %v596 = vld [vmem:[#allocation8 + $0x8] sm:$0xf]
        %v597 = vld [vmem:[#allocation8 + $0xc] sm:$0xf]
        %v598 = vld [vmem:[#allocation8 + $0x10] sm:$0xf]
        %v599 = vld [vmem:[#allocation8 + $0x14] sm:$0xf]
        %v600 = vld [vmem:[#allocation8 + $0x18] sm:$0xf]
        %v601 = vld [vmem:[#allocation8 + $0x1c] sm:$0xf]
        %v602 = vld [vmem:[#allocation8 + $0x20] sm:$0xf]
        %v603 = vld [vmem:[#allocation8 + $0x24] sm:$0xf]
        %v604 = vld [vmem:[#allocation8 + $0x28] sm:$0xf]
        %v605 = vld [vmem:[#allocation8 + $0x2c] sm:$0xf]
        %v606 = vld [vmem:[#allocation8 + $0x30] sm:$0xf]
        %v607 = vld [vmem:[#allocation8 + $0x34] sm:$0xf]
        %v608 = vld [vmem:[#allocation8 + $0x38] sm:$0xf]
        %v609 = vld [vmem:[#allocation8 + $0x3c] sm:$0xf]
        %v610 = vld [vmem:[#allocation10] sm:$0x1]
        %v611 = vpack.c.bf16 %v593, %v593
        %v613 = vlaneseq
        %v614 = vshrl.u32 %v613, 7
        %v615 = vsub.s32 0, %v614
        %v616 = vrot.slane %v610, %v615
        %v634 = vunpack.c.l.b16 %v594
        %v635 = vunpack.c.l.b16 %v595
        %v636 = vunpack.c.l.b16 %v596
        %v637 = vunpack.c.l.b16 %v597
        %v638 = vunpack.c.l.b16 %v598
        %v639 = vunpack.c.l.b16 %v599
        %v640 = vunpack.c.l.b16 %v600
        %v641 = vunpack.c.l.b16 %v601
        %v642 = vunpack.c.l.b16 %v602
        %v643 = vunpack.c.l.b16 %v603
        %v644 = vunpack.c.l.b16 %v604
        %v645 = vunpack.c.l.b16 %v605
        %v646 = vunpack.c.l.b16 %v606
        %v647 = vunpack.c.l.b16 %v607
        %v648 = vunpack.c.l.b16 %v608
        %v649 = vunpack.c.l.b16 %v609
        %v650 = vpack.c.b16 %v635, %v634
        %v651 = vpack.c.b16 %v637, %v636
        %v652 = vpack.c.b16 %v639, %v638
        %v653 = vpack.c.b16 %v641, %v640
        %v654 = vpack.c.b16 %v643, %v642
        %v655 = vpack.c.b16 %v645, %v644
        %v656 = vpack.c.b16 %v647, %v646
        %v657 = vpack.c.b16 %v649, %v648
        %666 = vmatprep.subr.bf16.mxu0 0
        %667 = vmatpush1.bf16.msra.mxu0 %v657
        %668 = vmatprep.subr.bf16.mxu0 0
        %669 = vmatpush1.bf16.msra.mxu0 %v656
        %670 = vmatprep.subr.bf16.mxu0 0
        %671 = vmatpush1.bf16.msra.mxu0 %v655
        %672 = vmatprep.subr.bf16.mxu0 0
        %673 = vmatpush1.bf16.msra.mxu0 %v654
        %674 = vmatprep.subr.bf16.mxu0 0
        %675 = vmatpush1.bf16.msra.mxu0 %v653
        %676 = vmatprep.subr.bf16.mxu0 0
        %677 = vmatpush1.bf16.msra.mxu0 %v652
        %678 = vmatprep.subr.bf16.mxu0 0
        %679 = vmatpush1.bf16.msra.mxu0 %v651
        %680 = vmatprep.subr.bf16.mxu0 0
        %681 = vmatpush1.bf16.msra.mxu0 %v650
        %682 = vmatprep.subr.bf16.mxu0 0
        %683 = vmatpush2.bf16.msra.mxu0 0
        %684 = vmatprep.subr.bf16.mxu0 0
        %685 = vmatpush2.bf16.msra.mxu0 0
        %686 = vmatprep.subr.bf16.mxu0 0
        %687 = vmatpush2.bf16.msra.mxu0 0
        %688 = vmatprep.subr.bf16.mxu0 0
        %689 = vmatpush2.bf16.msra.mxu0 0
        %690 = vmatprep.subr.bf16.mxu0 0
        %691 = vmatpush2.bf16.msra.mxu0 0
        %692 = vmatprep.subr.bf16.mxu0 0
        %693 = vmatpush2.bf16.msra.mxu0 0
        %694 = vmatprep.subr.bf16.mxu0 0
        %695 = vmatpush2.bf16.msra.mxu0 0
        %696 = vmatprep.subr.bf16.mxu0 0
        %697 = vmatpush2.bf16.msra.mxu0 0
        %698 = vmatprep.mubr.bf16.mxu0 0
        %699 = vmatmul.mubr.bf16.gmra.mxu0 %v611
        %v700 = vpop.f32.mrf.mxu0
        %v701 = vadd.f32 %v616, %v700
        %v702 = vpop.f32.mrf.mxu0
        %v703 = vpop.f32.mrf.mxu0
        %v704 = vpop.f32.mrf.mxu0
        %705 = vdwg.mxu0
        %v706 = vrot.slane %v701, 4
        %v707 = vadd.f32 %v701, %v706
        %v708 = vrot.slane %v707, 2
        %v709 = vadd.f32 %v707, %v708
        %v710 = vrot.slane %v709, 1
        %v711 = vadd.f32 %v709, %v710
        %v712 = vrcp.pop 8.0
        %v713 = vmul.f32 %v711, %v712
        %v714 = vmul.f32 %v701, %v701
        %v715 = vrot.slane %v714, 4
        %v716 = vadd.f32 %v714, %v715
        %v717 = vrot.slane %v716, 2
        %v718 = vadd.f32 %v716, %v717
        %v719 = vrot.slane %v718, 1
        %v720 = vadd.f32 %v718, %v719
        %v721 = vmul.f32 %v720, %v712
        %v722 = vmul.f32 %v713, %v713
        %v723 = vsub.f32 %v721, %v722
        %v724 = vmax.f32 %v723, 0.0
        %v725 = vadd.f32 %v724, 1e-05
        %v726 = vrsqrt.pop %v725
        %v727 = vld [vmem:[#allocation11] sm:$0x1]
        %v728 = vmul.f32 %v726, %v727
        %v729 = vld [vmem:[%s6] sm:$0x1]
        %v730 = vmul.f32 %v713, %v728
        %v731 = vsub.f32 %v729, %v730
        %v732 = vlaneseq
        %v733 = vshrl.u32 %v732, 7
        %v734 = vsub.s32 0, %v733
        %v735 = vrot.slane %v728, %v734
        %v736 = vmul.f32 %v701, %v735
        %v738 = vlaneseq
        %v739 = vshrl.u32 %v738, 7
        %v740 = vsub.s32 0, %v739
        %v741 = vrot.slane %v731, %v740
        %v743 = vadd.f32 %v736, %v741
        %v744 = vmax.f32 %v743, 0.0
        %s745 = scalar_lea.vmem [#allocation8], 64
        %v746 = vld [vmem:[%s745] sm:$0xf]
        %v747 = vld [vmem:[%s745 + $0x4] sm:$0xf]
        %v748 = vld [vmem:[%s745 + $0x8] sm:$0xf]
        %v749 = vld [vmem:[%s745 + $0xc] sm:$0xf]
        %v750 = vld [vmem:[%s745 + $0x10] sm:$0xf]
        %v751 = vld [vmem:[%s745 + $0x14] sm:$0xf]
        %v752 = vld [vmem:[%s745 + $0x18] sm:$0xf]
        %v753 = vld [vmem:[%s745 + $0x1c] sm:$0xf]
        %v754 = vld [vmem:[%s745 + $0x20] sm:$0xf]
        %v755 = vld [vmem:[%s745 + $0x24] sm:$0xf]
        %v756 = vld [vmem:[%s745 + $0x28] sm:$0xf]
        %v757 = vld [vmem:[%s745 + $0x2c] sm:$0xf]
        %v758 = vld [vmem:[%s745 + $0x30] sm:$0xf]
        %v759 = vld [vmem:[%s745 + $0x34] sm:$0xf]
        %v760 = vld [vmem:[%s745 + $0x38] sm:$0xf]
        %v761 = vld [vmem:[%s745 + $0x3c] sm:$0xf]
        %s762 = scalar_lea.vmem [#allocation10], 1
        %v763 = vld [vmem:[%s762] sm:$0x1]
        %v764 = vpack.c.bf16 %v744, %v744
        %v766 = vlaneseq
        %v767 = vshrl.u32 %v766, 7
        %v768 = vsub.s32 0, %v767
        %v769 = vrot.slane %v763, %v768
        %v787 = vunpack.c.l.b16 %v746
        %v788 = vunpack.c.l.b16 %v747
        %v789 = vunpack.c.l.b16 %v748
        %v790 = vunpack.c.l.b16 %v749
        %v791 = vunpack.c.l.b16 %v750
        %v792 = vunpack.c.l.b16 %v751
        %v793 = vunpack.c.l.b16 %v752
        %v794 = vunpack.c.l.b16 %v753
        %v795 = vunpack.c.l.b16 %v754
        %v796 = vunpack.c.l.b16 %v755
        %v797 = vunpack.c.l.b16 %v756
        %v798 = vunpack.c.l.b16 %v757
        %v799 = vunpack.c.l.b16 %v758
        %v800 = vunpack.c.l.b16 %v759
        %v801 = vunpack.c.l.b16 %v760
        %v802 = vunpack.c.l.b16 %v761
        %v803 = vpack.c.b16 %v788, %v787
        %v804 = vpack.c.b16 %v790, %v789
        %v805 = vpack.c.b16 %v792, %v791
        %v806 = vpack.c.b16 %v794, %v793
        %v807 = vpack.c.b16 %v796, %v795
        %v808 = vpack.c.b16 %v798, %v797
        %v809 = vpack.c.b16 %v800, %v799
        %v810 = vpack.c.b16 %v802, %v801
        %819 = vmatprep.subr.bf16.mxu0 0
        %820 = vmatpush1.bf16.msra.mxu0 %v810
        %821 = vmatprep.subr.bf16.mxu0 0
        %822 = vmatpush1.bf16.msra.mxu0 %v809
        %823 = vmatprep.subr.bf16.mxu0 0
        %824 = vmatpush1.bf16.msra.mxu0 %v808
        %825 = vmatprep.subr.bf16.mxu0 0
        %826 = vmatpush1.bf16.msra.mxu0 %v807
        %827 = vmatprep.subr.bf16.mxu0 0
        %828 = vmatpush1.bf16.msra.mxu0 %v806
        %829 = vmatprep.subr.bf16.mxu0 0
        %830 = vmatpush1.bf16.msra.mxu0 %v805
        %831 = vmatprep.subr.bf16.mxu0 0
        %832 = vmatpush1.bf16.msra.mxu0 %v804
        %833 = vmatprep.subr.bf16.mxu0 0
        %834 = vmatpush1.bf16.msra.mxu0 %v803
        %835 = vmatprep.subr.bf16.mxu0 0
        %836 = vmatpush2.bf16.msra.mxu0 0
        %837 = vmatprep.subr.bf16.mxu0 0
        %838 = vmatpush2.bf16.msra.mxu0 0
        %839 = vmatprep.subr.bf16.mxu0 0
        %840 = vmatpush2.bf16.msra.mxu0 0
        %841 = vmatprep.subr.bf16.mxu0 0
        %842 = vmatpush2.bf16.msra.mxu0 0
        %843 = vmatprep.subr.bf16.mxu0 0
        %844 = vmatpush2.bf16.msra.mxu0 0
        %845 = vmatprep.subr.bf16.mxu0 0
        %846 = vmatpush2.bf16.msra.mxu0 0
        %847 = vmatprep.subr.bf16.mxu0 0
        %848 = vmatpush2.bf16.msra.mxu0 0
        %849 = vmatprep.subr.bf16.mxu0 0
        %850 = vmatpush2.bf16.msra.mxu0 0
        %851 = vmatprep.mubr.bf16.mxu0 0
        %852 = vmatmul.mubr.bf16.gmra.mxu0 %v764
        %v853 = vpop.f32.mrf.mxu0
        %v854 = vadd.f32 %v769, %v853
        %v855 = vpop.f32.mrf.mxu0
        %v856 = vpop.f32.mrf.mxu0
        %v857 = vpop.f32.mrf.mxu0
        %858 = vdwg.mxu0
        %v859 = vrot.slane %v854, 4
        %v860 = vadd.f32 %v854, %v859
        %v861 = vrot.slane %v860, 2
        %v862 = vadd.f32 %v860, %v861
        %v863 = vrot.slane %v862, 1
        %v864 = vadd.f32 %v862, %v863
        %v865 = vmul.f32 %v864, %v712
        %v866 = vmul.f32 %v854, %v854
        %v867 = vrot.slane %v866, 4
        %v868 = vadd.f32 %v866, %v867
        %v869 = vrot.slane %v868, 2
        %v870 = vadd.f32 %v868, %v869
        %v871 = vrot.slane %v870, 1
        %v872 = vadd.f32 %v870, %v871
        %v873 = vmul.f32 %v872, %v712
        %v874 = vmul.f32 %v865, %v865
        %v875 = vsub.f32 %v873, %v874
        %v876 = vmax.f32 %v875, 0.0
        %v877 = vadd.f32 %v876, 1e-05
        %v878 = vrsqrt.pop %v877
        %s879 = scalar_lea.vmem [#allocation11], 1
        %v880 = vld [vmem:[%s879] sm:$0x1]
        %v881 = vmul.f32 %v878, %v880
        %s882 = scalar_lea.vmem %s6, 1
        %v883 = vld [vmem:[%s882] sm:$0x1]
        %v884 = vmul.f32 %v865, %v881
        %v885 = vsub.f32 %v883, %v884
        %v886 = vlaneseq
        %v887 = vshrl.u32 %v886, 7
        %v888 = vsub.s32 0, %v887
        %v889 = vrot.slane %v881, %v888
        %v890 = vmul.f32 %v854, %v889
        %v892 = vlaneseq
        %v893 = vshrl.u32 %v892, 7
        %v894 = vsub.s32 0, %v893
        %v895 = vrot.slane %v885, %v894
        %v897 = vadd.f32 %v890, %v895
        %v898 = vmax.f32 %v897, 0.0
        %v899 = vadd.f32 %v898, %v593
        %s900 = scalar_lea.vmem [#allocation8], 128
        %v901 = vld [vmem:[%s900] sm:$0xf]
        %v902 = vld [vmem:[%s900 + $0x4] sm:$0xf]
        %v903 = vld [vmem:[%s900 + $0x8] sm:$0xf]
        %v904 = vld [vmem:[%s900 + $0xc] sm:$0xf]
        %v905 = vld [vmem:[%s900 + $0x10] sm:$0xf]
        %v906 = vld [vmem:[%s900 + $0x14] sm:$0xf]
        %v907 = vld [vmem:[%s900 + $0x18] sm:$0xf]
        %v908 = vld [vmem:[%s900 + $0x1c] sm:$0xf]
        %v909 = vld [vmem:[%s900 + $0x20] sm:$0xf]
        %v910 = vld [vmem:[%s900 + $0x24] sm:$0xf]
        %v911 = vld [vmem:[%s900 + $0x28] sm:$0xf]
        %v912 = vld [vmem:[%s900 + $0x2c] sm:$0xf]
        %v913 = vld [vmem:[%s900 + $0x30] sm:$0xf]
        %v914 = vld [vmem:[%s900 + $0x34] sm:$0xf]
        %v915 = vld [vmem:[%s900 + $0x38] sm:$0xf]
        %v916 = vld [vmem:[%s900 + $0x3c] sm:$0xf]
        %s917 = scalar_lea.vmem [#allocation10], 2
        %v918 = vld [vmem:[%s917] sm:$0x1]
        %v919 = vpack.c.bf16 %v899, %v899
        %v921 = vlaneseq
        %v922 = vshrl.u32 %v921, 7
        %v923 = vsub.s32 0, %v922
        %v924 = vrot.slane %v918, %v923
        %v942 = vunpack.c.l.b16 %v901
        %v943 = vunpack.c.l.b16 %v902
        %v944 = vunpack.c.l.b16 %v903
        %v945 = vunpack.c.l.b16 %v904
        %v946 = vunpack.c.l.b16 %v905
        %v947 = vunpack.c.l.b16 %v906
        %v948 = vunpack.c.l.b16 %v907
        %v949 = vunpack.c.l.b16 %v908
        %v950 = vunpack.c.l.b16 %v909
        %v951 = vunpack.c.l.b16 %v910
        %v952 = vunpack.c.l.b16 %v911
        %v953 = vunpack.c.l.b16 %v912
        %v954 = vunpack.c.l.b16 %v913
        %v955 = vunpack.c.l.b16 %v914
        %v956 = vunpack.c.l.b16 %v915
        %v957 = vunpack.c.l.b16 %v916
        %v958 = vpack.c.b16 %v943, %v942
        %v959 = vpack.c.b16 %v945, %v944
        %v960 = vpack.c.b16 %v947, %v946
        %v961 = vpack.c.b16 %v949, %v948
        %v962 = vpack.c.b16 %v951, %v950
        %v963 = vpack.c.b16 %v953, %v952
        %v964 = vpack.c.b16 %v955, %v954
        %v965 = vpack.c.b16 %v957, %v956
        %974 = vmatprep.subr.bf16.mxu0 0
        %975 = vmatpush1.bf16.msra.mxu0 %v965
        %976 = vmatprep.subr.bf16.mxu0 0
        %977 = vmatpush1.bf16.msra.mxu0 %v964
        %978 = vmatprep.subr.bf16.mxu0 0
        %979 = vmatpush1.bf16.msra.mxu0 %v963
        %980 = vmatprep.subr.bf16.mxu0 0
        %981 = vmatpush1.bf16.msra.mxu0 %v962
        %982 = vmatprep.subr.bf16.mxu0 0
        %983 = vmatpush1.bf16.msra.mxu0 %v961
        %984 = vmatprep.subr.bf16.mxu0 0
        %985 = vmatpush1.bf16.msra.mxu0 %v960
        %986 = vmatprep.subr.bf16.mxu0 0
        %987 = vmatpush1.bf16.msra.mxu0 %v959
        %988 = vmatprep.subr.bf16.mxu0 0
        %989 = vmatpush1.bf16.msra.mxu0 %v958
        %990 = vmatprep.subr.bf16.mxu0 0
        %991 = vmatpush2.bf16.msra.mxu0 0
        %992 = vmatprep.subr.bf16.mxu0 0
        %993 = vmatpush2.bf16.msra.mxu0 0
        %994 = vmatprep.subr.bf16.mxu0 0
        %995 = vmatpush2.bf16.msra.mxu0 0
        %996 = vmatprep.subr.bf16.mxu0 0
        %997 = vmatpush2.bf16.msra.mxu0 0
        %998 = vmatprep.subr.bf16.mxu0 0
        %999 = vmatpush2.bf16.msra.mxu0 0
        %1000 = vmatprep.subr.bf16.mxu0 0
        %1001 = vmatpush2.bf16.msra.mxu0 0
        %1002 = vmatprep.subr.bf16.mxu0 0
        %1003 = vmatpush2.bf16.msra.mxu0 0
        %1004 = vmatprep.subr.bf16.mxu0 0
        %1005 = vmatpush2.bf16.msra.mxu0 0
        %1006 = vmatprep.mubr.bf16.mxu0 0
        %1007 = vmatmul.mubr.bf16.gmra.mxu0 %v919
        %v1008 = vpop.f32.mrf.mxu0
        %v1009 = vadd.f32 %v924, %v1008
        %v1010 = vpop.f32.mrf.mxu0
        %v1011 = vpop.f32.mrf.mxu0
        %v1012 = vpop.f32.mrf.mxu0
        %1013 = vdwg.mxu0
        %v1014 = vrot.slane %v1009, 4
        %v1015 = vadd.f32 %v1009, %v1014
        %v1016 = vrot.slane %v1015, 2
        %v1017 = vadd.f32 %v1015, %v1016
        %v1018 = vrot.slane %v1017, 1
        %v1019 = vadd.f32 %v1017, %v1018
        %v1020 = vmul.f32 %v1019, %v712
        %v1021 = vmul.f32 %v1009, %v1009
        %v1022 = vrot.slane %v1021, 4
        %v1023 = vadd.f32 %v1021, %v1022
        %v1024 = vrot.slane %v1023, 2
        %v1025 = vadd.f32 %v1023, %v1024
        %v1026 = vrot.slane %v1025, 1
        %v1027 = vadd.f32 %v1025, %v1026
        %v1028 = vmul.f32 %v1027, %v712
        %v1029 = vmul.f32 %v1020, %v1020
        %v1030 = vsub.f32 %v1028, %v1029
        %v1031 = vmax.f32 %v1030, 0.0
        %v1032 = vadd.f32 %v1031, 1e-05
        %v1033 = vrsqrt.pop %v1032
        %s1034 = scalar_lea.vmem [#allocation11], 2
        %v1035 = vld [vmem:[%s1034] sm:$0x1]
        %v1036 = vmul.f32 %v1033, %v1035
        %s1037 = scalar_lea.vmem %s6, 2
        %v1038 = vld [vmem:[%s1037] sm:$0x1]
        %v1039 = vmul.f32 %v1020, %v1036
        %v1040 = vsub.f32 %v1038, %v1039
        %v1041 = vlaneseq
        %v1042 = vshrl.u32 %v1041, 7
        %v1043 = vsub.s32 0, %v1042
        %v1044 = vrot.slane %v1036, %v1043
        %v1045 = vmul.f32 %v1009, %v1044
        %v1047 = vlaneseq
        %v1048 = vshrl.u32 %v1047, 7
        %v1049 = vsub.s32 0, %v1048
        %v1050 = vrot.slane %v1040, %v1049
        %v1052 = vadd.f32 %v1045, %v1050
        %v1053 = vmax.f32 %v1052, 0.0
        %s1054 = scalar_lea.vmem [#allocation8], 192
        %v1055 = vld [vmem:[%s1054] sm:$0xf]
        %v1056 = vld [vmem:[%s1054 + $0x4] sm:$0xf]
        %v1057 = vld [vmem:[%s1054 + $0x8] sm:$0xf]
        %v1058 = vld [vmem:[%s1054 + $0xc] sm:$0xf]
        %v1059 = vld [vmem:[%s1054 + $0x10] sm:$0xf]
        %v1060 = vld [vmem:[%s1054 + $0x14] sm:$0xf]
        %v1061 = vld [vmem:[%s1054 + $0x18] sm:$0xf]
        %v1062 = vld [vmem:[%s1054 + $0x1c] sm:$0xf]
        %v1063 = vld [vmem:[%s1054 + $0x20] sm:$0xf]
        %v1064 = vld [vmem:[%s1054 + $0x24] sm:$0xf]
        %v1065 = vld [vmem:[%s1054 + $0x28] sm:$0xf]
        %v1066 = vld [vmem:[%s1054 + $0x2c] sm:$0xf]
        %v1067 = vld [vmem:[%s1054 + $0x30] sm:$0xf]
        %v1068 = vld [vmem:[%s1054 + $0x34] sm:$0xf]
        %v1069 = vld [vmem:[%s1054 + $0x38] sm:$0xf]
        %v1070 = vld [vmem:[%s1054 + $0x3c] sm:$0xf]
        %s1071 = scalar_lea.vmem [#allocation10], 3
        %v1072 = vld [vmem:[%s1071] sm:$0x1]
        %v1073 = vpack.c.bf16 %v1053, %v1053
        %v1075 = vlaneseq
        %v1076 = vshrl.u32 %v1075, 7
        %v1077 = vsub.s32 0, %v1076
        %v1078 = vrot.slane %v1072, %v1077
        %v1096 = vunpack.c.l.b16 %v1055
        %v1097 = vunpack.c.l.b16 %v1056
        %v1098 = vunpack.c.l.b16 %v1057
        %v1099 = vunpack.c.l.b16 %v1058
        %v1100 = vunpack.c.l.b16 %v1059
        %v1101 = vunpack.c.l.b16 %v1060
        %v1102 = vunpack.c.l.b16 %v1061
        %v1103 = vunpack.c.l.b16 %v1062
        %v1104 = vunpack.c.l.b16 %v1063
        %v1105 = vunpack.c.l.b16 %v1064
        %v1106 = vunpack.c.l.b16 %v1065
        %v1107 = vunpack.c.l.b16 %v1066
        %v1108 = vunpack.c.l.b16 %v1067
        %v1109 = vunpack.c.l.b16 %v1068
        %v1110 = vunpack.c.l.b16 %v1069
        %v1111 = vunpack.c.l.b16 %v1070
        %v1112 = vpack.c.b16 %v1097, %v1096
        %v1113 = vpack.c.b16 %v1099, %v1098
        %v1114 = vpack.c.b16 %v1101, %v1100
        %v1115 = vpack.c.b16 %v1103, %v1102
        %v1116 = vpack.c.b16 %v1105, %v1104
        %v1117 = vpack.c.b16 %v1107, %v1106
        %v1118 = vpack.c.b16 %v1109, %v1108
        %v1119 = vpack.c.b16 %v1111, %v1110
        %1128 = vmatprep.subr.bf16.mxu0 0
        %1129 = vmatpush1.bf16.msra.mxu0 %v1119
        %1130 = vmatprep.subr.bf16.mxu0 0
        %1131 = vmatpush1.bf16.msra.mxu0 %v1118
        %1132 = vmatprep.subr.bf16.mxu0 0
        %1133 = vmatpush1.bf16.msra.mxu0 %v1117
        %1134 = vmatprep.subr.bf16.mxu0 0
        %1135 = vmatpush1.bf16.msra.mxu0 %v1116
        %1136 = vmatprep.subr.bf16.mxu0 0
        %1137 = vmatpush1.bf16.msra.mxu0 %v1115
        %1138 = vmatprep.subr.bf16.mxu0 0
        %1139 = vmatpush1.bf16.msra.mxu0 %v1114
        %1140 = vmatprep.subr.bf16.mxu0 0
        %1141 = vmatpush1.bf16.msra.mxu0 %v1113
        %1142 = vmatprep.subr.bf16.mxu0 0
        %1143 = vmatpush1.bf16.msra.mxu0 %v1112
        %1144 = vmatprep.subr.bf16.mxu0 0
        %1145 = vmatpush2.bf16.msra.mxu0 0
        %1146 = vmatprep.subr.bf16.mxu0 0
        %1147 = vmatpush2.bf16.msra.mxu0 0
        %1148 = vmatprep.subr.bf16.mxu0 0
        %1149 = vmatpush2.bf16.msra.mxu0 0
        %1150 = vmatprep.subr.bf16.mxu0 0
        %1151 = vmatpush2.bf16.msra.mxu0 0
        %1152 = vmatprep.subr.bf16.mxu0 0
        %1153 = vmatpush2.bf16.msra.mxu0 0
        %1154 = vmatprep.subr.bf16.mxu0 0
        %1155 = vmatpush2.bf16.msra.mxu0 0
        %1156 = vmatprep.subr.bf16.mxu0 0
        %1157 = vmatpush2.bf16.msra.mxu0 0
        %1158 = vmatprep.subr.bf16.mxu0 0
        %1159 = vmatpush2.bf16.msra.mxu0 0
        %1160 = vmatprep.mubr.bf16.mxu0 0
        %1161 = vmatmul.mubr.bf16.gmra.mxu0 %v1073
        %v1162 = vpop.f32.mrf.mxu0
        %v1163 = vadd.f32 %v1078, %v1162
        %v1164 = vpop.f32.mrf.mxu0
        %v1165 = vpop.f32.mrf.mxu0
        %v1166 = vpop.f32.mrf.mxu0
        %1167 = vdwg.mxu0
        %v1168 = vrot.slane %v1163, 4
        %v1169 = vadd.f32 %v1163, %v1168
        %v1170 = vrot.slane %v1169, 2
        %v1171 = vadd.f32 %v1169, %v1170
        %v1172 = vrot.slane %v1171, 1
        %v1173 = vadd.f32 %v1171, %v1172
        %v1174 = vmul.f32 %v1173, %v712
        %v1175 = vmul.f32 %v1163, %v1163
        %v1176 = vrot.slane %v1175, 4
        %v1177 = vadd.f32 %v1175, %v1176
        %v1178 = vrot.slane %v1177, 2
        %v1179 = vadd.f32 %v1177, %v1178
        %v1180 = vrot.slane %v1179, 1
        %v1181 = vadd.f32 %v1179, %v1180
        %v1182 = vmul.f32 %v1181, %v712
        %v1183 = vmul.f32 %v1174, %v1174
        %v1184 = vsub.f32 %v1182, %v1183
        %v1185 = vmax.f32 %v1184, 0.0
        %v1186 = vadd.f32 %v1185, 1e-05
        %v1187 = vrsqrt.pop %v1186
        %s1188 = scalar_lea.vmem [#allocation11], 3
        %v1189 = vld [vmem:[%s1188] sm:$0x1]
        %v1190 = vmul.f32 %v1187, %v1189
        %s1191 = scalar_lea.vmem %s6, 3
        %v1192 = vld [vmem:[%s1191] sm:$0x1]
        %v1193 = vmul.f32 %v1174, %v1190
        %v1194 = vsub.f32 %v1192, %v1193
        %v1195 = vlaneseq
        %v1196 = vshrl.u32 %v1195, 7
        %v1197 = vsub.s32 0, %v1196
        %v1198 = vrot.slane %v1190, %v1197
        %v1199 = vmul.f32 %v1163, %v1198
        %v1201 = vlaneseq
        %v1202 = vshrl.u32 %v1201, 7
        %v1203 = vsub.s32 0, %v1202
        %v1204 = vrot.slane %v1194, %v1203
        %v1206 = vadd.f32 %v1199, %v1204
        %v1207 = vmax.f32 %v1206, 0.0
        %v1208 = vadd.f32 %v1207, %v899
        %s1209 = scalar_lea.vmem [#allocation8], 256
        %v1210 = vld [vmem:[%s1209] sm:$0xf]
        %v1211 = vld [vmem:[%s1209 + $0x4] sm:$0xf]
        %v1212 = vld [vmem:[%s1209 + $0x8] sm:$0xf]
        %v1213 = vld [vmem:[%s1209 + $0xc] sm:$0xf]
        %v1214 = vld [vmem:[%s1209 + $0x10] sm:$0xf]
        %v1215 = vld [vmem:[%s1209 + $0x14] sm:$0xf]
        %v1216 = vld [vmem:[%s1209 + $0x18] sm:$0xf]
        %v1217 = vld [vmem:[%s1209 + $0x1c] sm:$0xf]
        %v1218 = vld [vmem:[%s1209 + $0x20] sm:$0xf]
        %v1219 = vld [vmem:[%s1209 + $0x24] sm:$0xf]
        %v1220 = vld [vmem:[%s1209 + $0x28] sm:$0xf]
        %v1221 = vld [vmem:[%s1209 + $0x2c] sm:$0xf]
        %v1222 = vld [vmem:[%s1209 + $0x30] sm:$0xf]
        %v1223 = vld [vmem:[%s1209 + $0x34] sm:$0xf]
        %v1224 = vld [vmem:[%s1209 + $0x38] sm:$0xf]
        %v1225 = vld [vmem:[%s1209 + $0x3c] sm:$0xf]
        %s1226 = scalar_lea.vmem [#allocation10], 4
        %v1227 = vld [vmem:[%s1226] sm:$0x1]
        %v1228 = vpack.c.bf16 %v1208, %v1208
        %v1230 = vlaneseq
        %v1231 = vshrl.u32 %v1230, 7
        %v1232 = vsub.s32 0, %v1231
        %v1233 = vrot.slane %v1227, %v1232
        %v1251 = vunpack.c.l.b16 %v1210
        %v1252 = vunpack.c.l.b16 %v1211
        %v1253 = vunpack.c.l.b16 %v1212
        %v1254 = vunpack.c.l.b16 %v1213
        %v1255 = vunpack.c.l.b16 %v1214
        %v1256 = vunpack.c.l.b16 %v1215
        %v1257 = vunpack.c.l.b16 %v1216
        %v1258 = vunpack.c.l.b16 %v1217
        %v1259 = vunpack.c.l.b16 %v1218
        %v1260 = vunpack.c.l.b16 %v1219
        %v1261 = vunpack.c.l.b16 %v1220
        %v1262 = vunpack.c.l.b16 %v1221
        %v1263 = vunpack.c.l.b16 %v1222
        %v1264 = vunpack.c.l.b16 %v1223
        %v1265 = vunpack.c.l.b16 %v1224
        %v1266 = vunpack.c.l.b16 %v1225
        %v1267 = vpack.c.b16 %v1252, %v1251
        %v1268 = vpack.c.b16 %v1254, %v1253
        %v1269 = vpack.c.b16 %v1256, %v1255
        %v1270 = vpack.c.b16 %v1258, %v1257
        %v1271 = vpack.c.b16 %v1260, %v1259
        %v1272 = vpack.c.b16 %v1262, %v1261
        %v1273 = vpack.c.b16 %v1264, %v1263
        %v1274 = vpack.c.b16 %v1266, %v1265
        %1283 = vmatprep.subr.bf16.mxu0 0
        %1284 = vmatpush1.bf16.msra.mxu0 %v1274
        %1285 = vmatprep.subr.bf16.mxu0 0
        %1286 = vmatpush1.bf16.msra.mxu0 %v1273
        %1287 = vmatprep.subr.bf16.mxu0 0
        %1288 = vmatpush1.bf16.msra.mxu0 %v1272
        %1289 = vmatprep.subr.bf16.mxu0 0
        %1290 = vmatpush1.bf16.msra.mxu0 %v1271
        %1291 = vmatprep.subr.bf16.mxu0 0
        %1292 = vmatpush1.bf16.msra.mxu0 %v1270
        %1293 = vmatprep.subr.bf16.mxu0 0
        %1294 = vmatpush1.bf16.msra.mxu0 %v1269
        %1295 = vmatprep.subr.bf16.mxu0 0
        %1296 = vmatpush1.bf16.msra.mxu0 %v1268
        %1297 = vmatprep.subr.bf16.mxu0 0
        %1298 = vmatpush1.bf16.msra.mxu0 %v1267
        %1299 = vmatprep.subr.bf16.mxu0 0
        %1300 = vmatpush2.bf16.msra.mxu0 0
        %1301 = vmatprep.subr.bf16.mxu0 0
        %1302 = vmatpush2.bf16.msra.mxu0 0
        %1303 = vmatprep.subr.bf16.mxu0 0
        %1304 = vmatpush2.bf16.msra.mxu0 0
        %1305 = vmatprep.subr.bf16.mxu0 0
        %1306 = vmatpush2.bf16.msra.mxu0 0
        %1307 = vmatprep.subr.bf16.mxu0 0
        %1308 = vmatpush2.bf16.msra.mxu0 0
        %1309 = vmatprep.subr.bf16.mxu0 0
        %1310 = vmatpush2.bf16.msra.mxu0 0
        %1311 = vmatprep.subr.bf16.mxu0 0
        %1312 = vmatpush2.bf16.msra.mxu0 0
        %1313 = vmatprep.subr.bf16.mxu0 0
        %1314 = vmatpush2.bf16.msra.mxu0 0
        %1315 = vmatprep.mubr.bf16.mxu0 0
        %1316 = vmatmul.mubr.bf16.gmra.mxu0 %v1228
        %v1317 = vpop.f32.mrf.mxu0
        %v1318 = vadd.f32 %v1233, %v1317
        %v1319 = vpop.f32.mrf.mxu0
        %v1320 = vpop.f32.mrf.mxu0
        %v1321 = vpop.f32.mrf.mxu0
        %1322 = vdwg.mxu0
        %v1323 = vrot.slane %v1318, 4
        %v1324 = vadd.f32 %v1318, %v1323
        %v1325 = vrot.slane %v1324, 2
        %v1326 = vadd.f32 %v1324, %v1325
        %v1327 = vrot.slane %v1326, 1
        %v1328 = vadd.f32 %v1326, %v1327
        %v1329 = vmul.f32 %v1328, %v712
        %v1330 = vmul.f32 %v1318, %v1318
        %v1331 = vrot.slane %v1330, 4
        %v1332 = vadd.f32 %v1330, %v1331
        %v1333 = vrot.slane %v1332, 2
        %v1334 = vadd.f32 %v1332, %v1333
        %v1335 = vrot.slane %v1334, 1
        %v1336 = vadd.f32 %v1334, %v1335
        %v1337 = vmul.f32 %v1336, %v712
        %v1338 = vmul.f32 %v1329, %v1329
        %v1339 = vsub.f32 %v1337, %v1338
        %v1340 = vmax.f32 %v1339, 0.0
        %v1341 = vadd.f32 %v1340, 1e-05
        %v1342 = vrsqrt.pop %v1341
        %s1343 = scalar_lea.vmem [#allocation11], 4
        %v1344 = vld [vmem:[%s1343] sm:$0x1]
        %v1345 = vmul.f32 %v1342, %v1344
        %s1346 = scalar_lea.vmem %s6, 4
        %v1347 = vld [vmem:[%s1346] sm:$0x1]
        %v1348 = vmul.f32 %v1329, %v1345
        %v1349 = vsub.f32 %v1347, %v1348
        %v1350 = vlaneseq
        %v1351 = vshrl.u32 %v1350, 7
        %v1352 = vsub.s32 0, %v1351
        %v1353 = vrot.slane %v1345, %v1352
        %v1354 = vmul.f32 %v1318, %v1353
        %v1356 = vlaneseq
        %v1357 = vshrl.u32 %v1356, 7
        %v1358 = vsub.s32 0, %v1357
        %v1359 = vrot.slane %v1349, %v1358
        %v1361 = vadd.f32 %v1354, %v1359
        %v1362 = vmax.f32 %v1361, 0.0
        %s1363 = scalar_lea.vmem [#allocation8], 320
        %v1364 = vld [vmem:[%s1363] sm:$0xf]
        %v1365 = vld [vmem:[%s1363 + $0x4] sm:$0xf]
        %v1366 = vld [vmem:[%s1363 + $0x8] sm:$0xf]
        %v1367 = vld [vmem:[%s1363 + $0xc] sm:$0xf]
        %v1368 = vld [vmem:[%s1363 + $0x10] sm:$0xf]
        %v1369 = vld [vmem:[%s1363 + $0x14] sm:$0xf]
        %v1370 = vld [vmem:[%s1363 + $0x18] sm:$0xf]
        %v1371 = vld [vmem:[%s1363 + $0x1c] sm:$0xf]
        %v1372 = vld [vmem:[%s1363 + $0x20] sm:$0xf]
        %v1373 = vld [vmem:[%s1363 + $0x24] sm:$0xf]
        %v1374 = vld [vmem:[%s1363 + $0x28] sm:$0xf]
        %v1375 = vld [vmem:[%s1363 + $0x2c] sm:$0xf]
        %v1376 = vld [vmem:[%s1363 + $0x30] sm:$0xf]
        %v1377 = vld [vmem:[%s1363 + $0x34] sm:$0xf]
        %v1378 = vld [vmem:[%s1363 + $0x38] sm:$0xf]
        %v1379 = vld [vmem:[%s1363 + $0x3c] sm:$0xf]
        %s1380 = scalar_lea.vmem [#allocation10], 5
        %v1381 = vld [vmem:[%s1380] sm:$0x1]
        %v1382 = vpack.c.bf16 %v1362, %v1362
        %v1384 = vlaneseq
        %v1385 = vshrl.u32 %v1384, 7
        %v1386 = vsub.s32 0, %v1385
        %v1387 = vrot.slane %v1381, %v1386
        %v1405 = vunpack.c.l.b16 %v1364
        %v1406 = vunpack.c.l.b16 %v1365
        %v1407 = vunpack.c.l.b16 %v1366
        %v1408 = vunpack.c.l.b16 %v1367
        %v1409 = vunpack.c.l.b16 %v1368
        %v1410 = vunpack.c.l.b16 %v1369
        %v1411 = vunpack.c.l.b16 %v1370
        %v1412 = vunpack.c.l.b16 %v1371
        %v1413 = vunpack.c.l.b16 %v1372
        %v1414 = vunpack.c.l.b16 %v1373
        %v1415 = vunpack.c.l.b16 %v1374
        %v1416 = vunpack.c.l.b16 %v1375
        %v1417 = vunpack.c.l.b16 %v1376
        %v1418 = vunpack.c.l.b16 %v1377
        %v1419 = vunpack.c.l.b16 %v1378
        %v1420 = vunpack.c.l.b16 %v1379
        %v1421 = vpack.c.b16 %v1406, %v1405
        %v1422 = vpack.c.b16 %v1408, %v1407
        %v1423 = vpack.c.b16 %v1410, %v1409
        %v1424 = vpack.c.b16 %v1412, %v1411
        %v1425 = vpack.c.b16 %v1414, %v1413
        %v1426 = vpack.c.b16 %v1416, %v1415
        %v1427 = vpack.c.b16 %v1418, %v1417
        %v1428 = vpack.c.b16 %v1420, %v1419
        %1437 = vmatprep.subr.bf16.mxu0 0
        %1438 = vmatpush1.bf16.msra.mxu0 %v1428
        %1439 = vmatprep.subr.bf16.mxu0 0
        %1440 = vmatpush1.bf16.msra.mxu0 %v1427
        %1441 = vmatprep.subr.bf16.mxu0 0
        %1442 = vmatpush1.bf16.msra.mxu0 %v1426
        %1443 = vmatprep.subr.bf16.mxu0 0
        %1444 = vmatpush1.bf16.msra.mxu0 %v1425
        %1445 = vmatprep.subr.bf16.mxu0 0
        %1446 = vmatpush1.bf16.msra.mxu0 %v1424
        %1447 = vmatprep.subr.bf16.mxu0 0
        %1448 = vmatpush1.bf16.msra.mxu0 %v1423
        %1449 = vmatprep.subr.bf16.mxu0 0
        %1450 = vmatpush1.bf16.msra.mxu0 %v1422
        %1451 = vmatprep.subr.bf16.mxu0 0
        %1452 = vmatpush1.bf16.msra.mxu0 %v1421
        %1453 = vmatprep.subr.bf16.mxu0 0
        %1454 = vmatpush2.bf16.msra.mxu0 0
        %1455 = vmatprep.subr.bf16.mxu0 0
        %1456 = vmatpush2.bf16.msra.mxu0 0
        %1457 = vmatprep.subr.bf16.mxu0 0
        %1458 = vmatpush2.bf16.msra.mxu0 0
        %1459 = vmatprep.subr.bf16.mxu0 0
        %1460 = vmatpush2.bf16.msra.mxu0 0
        %1461 = vmatprep.subr.bf16.mxu0 0
        %1462 = vmatpush2.bf16.msra.mxu0 0
        %1463 = vmatprep.subr.bf16.mxu0 0
        %1464 = vmatpush2.bf16.msra.mxu0 0
        %1465 = vmatprep.subr.bf16.mxu0 0
        %1466 = vmatpush2.bf16.msra.mxu0 0
        %1467 = vmatprep.subr.bf16.mxu0 0
        %1468 = vmatpush2.bf16.msra.mxu0 0
        %1469 = vmatprep.mubr.bf16.mxu0 0
        %1470 = vmatmul.mubr.bf16.gmra.mxu0 %v1382
        %v1471 = vpop.f32.mrf.mxu0
        %v1472 = vadd.f32 %v1387, %v1471
        %v1473 = vpop.f32.mrf.mxu0
        %v1474 = vpop.f32.mrf.mxu0
        %v1475 = vpop.f32.mrf.mxu0
        %1476 = vdwg.mxu0
        %v1477 = vrot.slane %v1472, 4
        %v1478 = vadd.f32 %v1472, %v1477
        %v1479 = vrot.slane %v1478, 2
        %v1480 = vadd.f32 %v1478, %v1479
        %v1481 = vrot.slane %v1480, 1
        %v1482 = vadd.f32 %v1480, %v1481
        %v1483 = vmul.f32 %v1482, %v712
        %v1484 = vmul.f32 %v1472, %v1472
        %v1485 = vrot.slane %v1484, 4
        %v1486 = vadd.f32 %v1484, %v1485
        %v1487 = vrot.slane %v1486, 2
        %v1488 = vadd.f32 %v1486, %v1487
        %v1489 = vrot.slane %v1488, 1
        %v1490 = vadd.f32 %v1488, %v1489
        %v1491 = vmul.f32 %v1490, %v712
        %v1492 = vmul.f32 %v1483, %v1483
        %v1493 = vsub.f32 %v1491, %v1492
        %v1494 = vmax.f32 %v1493, 0.0
        %v1495 = vadd.f32 %v1494, 1e-05
        %v1496 = vrsqrt.pop %v1495
        %s1497 = scalar_lea.vmem [#allocation11], 5
        %v1498 = vld [vmem:[%s1497] sm:$0x1]
        %v1499 = vmul.f32 %v1496, %v1498
        %s1500 = scalar_lea.vmem %s6, 5
        %v1501 = vld [vmem:[%s1500] sm:$0x1]
        %v1502 = vmul.f32 %v1483, %v1499
        %v1503 = vsub.f32 %v1501, %v1502
        %v1504 = vlaneseq
        %v1505 = vshrl.u32 %v1504, 7
        %v1506 = vsub.s32 0, %v1505
        %v1507 = vrot.slane %v1499, %v1506
        %v1508 = vmul.f32 %v1472, %v1507
        %v1510 = vlaneseq
        %v1511 = vshrl.u32 %v1510, 7
        %v1512 = vsub.s32 0, %v1511
        %v1513 = vrot.slane %v1503, %v1512
        %v1515 = vadd.f32 %v1508, %v1513
        %v1516 = vmax.f32 %v1515, 0.0
        %v1517 = vadd.f32 %v1516, %v1208
        %s1518 = scalar_lea.vmem [#allocation8], 384
        %v1519 = vld [vmem:[%s1518] sm:$0xf]
        %v1520 = vld [vmem:[%s1518 + $0x4] sm:$0xf]
        %v1521 = vld [vmem:[%s1518 + $0x8] sm:$0xf]
        %v1522 = vld [vmem:[%s1518 + $0xc] sm:$0xf]
        %v1523 = vld [vmem:[%s1518 + $0x10] sm:$0xf]
        %v1524 = vld [vmem:[%s1518 + $0x14] sm:$0xf]
        %v1525 = vld [vmem:[%s1518 + $0x18] sm:$0xf]
        %v1526 = vld [vmem:[%s1518 + $0x1c] sm:$0xf]
        %v1527 = vld [vmem:[%s1518 + $0x20] sm:$0xf]
        %v1528 = vld [vmem:[%s1518 + $0x24] sm:$0xf]
        %v1529 = vld [vmem:[%s1518 + $0x28] sm:$0xf]
        %v1530 = vld [vmem:[%s1518 + $0x2c] sm:$0xf]
        %v1531 = vld [vmem:[%s1518 + $0x30] sm:$0xf]
        %v1532 = vld [vmem:[%s1518 + $0x34] sm:$0xf]
        %v1533 = vld [vmem:[%s1518 + $0x38] sm:$0xf]
        %v1534 = vld [vmem:[%s1518 + $0x3c] sm:$0xf]
        %s1535 = scalar_lea.vmem [#allocation10], 6
        %v1536 = vld [vmem:[%s1535] sm:$0x1]
        %v1537 = vpack.c.bf16 %v1517, %v1517
        %v1539 = vlaneseq
        %v1540 = vshrl.u32 %v1539, 7
        %v1541 = vsub.s32 0, %v1540
        %v1542 = vrot.slane %v1536, %v1541
        %v1560 = vunpack.c.l.b16 %v1519
        %v1561 = vunpack.c.l.b16 %v1520
        %v1562 = vunpack.c.l.b16 %v1521
        %v1563 = vunpack.c.l.b16 %v1522
        %v1564 = vunpack.c.l.b16 %v1523
        %v1565 = vunpack.c.l.b16 %v1524
        %v1566 = vunpack.c.l.b16 %v1525
        %v1567 = vunpack.c.l.b16 %v1526
        %v1568 = vunpack.c.l.b16 %v1527
        %v1569 = vunpack.c.l.b16 %v1528
        %v1570 = vunpack.c.l.b16 %v1529
        %v1571 = vunpack.c.l.b16 %v1530
        %v1572 = vunpack.c.l.b16 %v1531
        %v1573 = vunpack.c.l.b16 %v1532
        %v1574 = vunpack.c.l.b16 %v1533
        %v1575 = vunpack.c.l.b16 %v1534
        %v1576 = vpack.c.b16 %v1561, %v1560
        %v1577 = vpack.c.b16 %v1563, %v1562
        %v1578 = vpack.c.b16 %v1565, %v1564
        %v1579 = vpack.c.b16 %v1567, %v1566
        %v1580 = vpack.c.b16 %v1569, %v1568
        %v1581 = vpack.c.b16 %v1571, %v1570
        %v1582 = vpack.c.b16 %v1573, %v1572
        %v1583 = vpack.c.b16 %v1575, %v1574
        %1592 = vmatprep.subr.bf16.mxu0 0
        %1593 = vmatpush1.bf16.msra.mxu0 %v1583
        %1594 = vmatprep.subr.bf16.mxu0 0
        %1595 = vmatpush1.bf16.msra.mxu0 %v1582
        %1596 = vmatprep.subr.bf16.mxu0 0
        %1597 = vmatpush1.bf16.msra.mxu0 %v1581
        %1598 = vmatprep.subr.bf16.mxu0 0
        %1599 = vmatpush1.bf16.msra.mxu0 %v1580
        %1600 = vmatprep.subr.bf16.mxu0 0
        %1601 = vmatpush1.bf16.msra.mxu0 %v1579
        %1602 = vmatprep.subr.bf16.mxu0 0
        %1603 = vmatpush1.bf16.msra.mxu0 %v1578
        %1604 = vmatprep.subr.bf16.mxu0 0
        %1605 = vmatpush1.bf16.msra.mxu0 %v1577
        %1606 = vmatprep.subr.bf16.mxu0 0
        %1607 = vmatpush1.bf16.msra.mxu0 %v1576
        %1608 = vmatprep.subr.bf16.mxu0 0
        %1609 = vmatpush2.bf16.msra.mxu0 0
        %1610 = vmatprep.subr.bf16.mxu0 0
        %1611 = vmatpush2.bf16.msra.mxu0 0
        %1612 = vmatprep.subr.bf16.mxu0 0
        %1613 = vmatpush2.bf16.msra.mxu0 0
        %1614 = vmatprep.subr.bf16.mxu0 0
        %1615 = vmatpush2.bf16.msra.mxu0 0
        %1616 = vmatprep.subr.bf16.mxu0 0
        %1617 = vmatpush2.bf16.msra.mxu0 0
        %1618 = vmatprep.subr.bf16.mxu0 0
        %1619 = vmatpush2.bf16.msra.mxu0 0
        %1620 = vmatprep.subr.bf16.mxu0 0
        %1621 = vmatpush2.bf16.msra.mxu0 0
        %1622 = vmatprep.subr.bf16.mxu0 0
        %1623 = vmatpush2.bf16.msra.mxu0 0
        %1624 = vmatprep.mubr.bf16.mxu0 0
        %1625 = vmatmul.mubr.bf16.gmra.mxu0 %v1537
        %v1626 = vpop.f32.mrf.mxu0
        %v1627 = vadd.f32 %v1542, %v1626
        %v1628 = vpop.f32.mrf.mxu0
        %v1629 = vpop.f32.mrf.mxu0
        %v1630 = vpop.f32.mrf.mxu0
        %1631 = vdwg.mxu0
        %v1632 = vrot.slane %v1627, 4
        %v1633 = vadd.f32 %v1627, %v1632
        %v1634 = vrot.slane %v1633, 2
        %v1635 = vadd.f32 %v1633, %v1634
        %v1636 = vrot.slane %v1635, 1
        %v1637 = vadd.f32 %v1635, %v1636
        %v1638 = vmul.f32 %v1637, %v712
        %v1639 = vmul.f32 %v1627, %v1627
        %v1640 = vrot.slane %v1639, 4
        %v1641 = vadd.f32 %v1639, %v1640
        %v1642 = vrot.slane %v1641, 2
        %v1643 = vadd.f32 %v1641, %v1642
        %v1644 = vrot.slane %v1643, 1
        %v1645 = vadd.f32 %v1643, %v1644
        %v1646 = vmul.f32 %v1645, %v712
        %v1647 = vmul.f32 %v1638, %v1638
        %v1648 = vsub.f32 %v1646, %v1647
        %v1649 = vmax.f32 %v1648, 0.0
        %v1650 = vadd.f32 %v1649, 1e-05
        %v1651 = vrsqrt.pop %v1650
        %s1652 = scalar_lea.vmem [#allocation11], 6
        %v1653 = vld [vmem:[%s1652] sm:$0x1]
        %v1654 = vmul.f32 %v1651, %v1653
        %s1655 = scalar_lea.vmem %s6, 6
        %v1656 = vld [vmem:[%s1655] sm:$0x1]
        %v1657 = vmul.f32 %v1638, %v1654
        %v1658 = vsub.f32 %v1656, %v1657
        %v1659 = vlaneseq
        %v1660 = vshrl.u32 %v1659, 7
        %v1661 = vsub.s32 0, %v1660
        %v1662 = vrot.slane %v1654, %v1661
        %v1663 = vmul.f32 %v1627, %v1662
        %v1665 = vlaneseq
        %v1666 = vshrl.u32 %v1665, 7
        %v1667 = vsub.s32 0, %v1666
        %v1668 = vrot.slane %v1658, %v1667
        %v1670 = vadd.f32 %v1663, %v1668
        %v1671 = vmax.f32 %v1670, 0.0
        %s1672 = scalar_lea.vmem [#allocation8], 448
        %v1673 = vld [vmem:[%s1672] sm:$0xf]
        %v1674 = vld [vmem:[%s1672 + $0x4] sm:$0xf]
        %v1675 = vld [vmem:[%s1672 + $0x8] sm:$0xf]
        %v1676 = vld [vmem:[%s1672 + $0xc] sm:$0xf]
        %v1677 = vld [vmem:[%s1672 + $0x10] sm:$0xf]
        %v1678 = vld [vmem:[%s1672 + $0x14] sm:$0xf]
        %v1679 = vld [vmem:[%s1672 + $0x18] sm:$0xf]
        %v1680 = vld [vmem:[%s1672 + $0x1c] sm:$0xf]
        %v1681 = vld [vmem:[%s1672 + $0x20] sm:$0xf]
        %v1682 = vld [vmem:[%s1672 + $0x24] sm:$0xf]
        %v1683 = vld [vmem:[%s1672 + $0x28] sm:$0xf]
        %v1684 = vld [vmem:[%s1672 + $0x2c] sm:$0xf]
        %v1685 = vld [vmem:[%s1672 + $0x30] sm:$0xf]
        %v1686 = vld [vmem:[%s1672 + $0x34] sm:$0xf]
        %v1687 = vld [vmem:[%s1672 + $0x38] sm:$0xf]
        %v1688 = vld [vmem:[%s1672 + $0x3c] sm:$0xf]
        %s1689 = scalar_lea.vmem [#allocation10], 7
        %v1690 = vld [vmem:[%s1689] sm:$0x1]
        %v1691 = vpack.c.bf16 %v1671, %v1671
        %v1693 = vlaneseq
        %v1694 = vshrl.u32 %v1693, 7
        %v1695 = vsub.s32 0, %v1694
        %v1696 = vrot.slane %v1690, %v1695
        %v1714 = vunpack.c.l.b16 %v1673
        %v1715 = vunpack.c.l.b16 %v1674
        %v1716 = vunpack.c.l.b16 %v1675
        %v1717 = vunpack.c.l.b16 %v1676
        %v1718 = vunpack.c.l.b16 %v1677
        %v1719 = vunpack.c.l.b16 %v1678
        %v1720 = vunpack.c.l.b16 %v1679
        %v1721 = vunpack.c.l.b16 %v1680
        %v1722 = vunpack.c.l.b16 %v1681
        %v1723 = vunpack.c.l.b16 %v1682
        %v1724 = vunpack.c.l.b16 %v1683
        %v1725 = vunpack.c.l.b16 %v1684
        %v1726 = vunpack.c.l.b16 %v1685
        %v1727 = vunpack.c.l.b16 %v1686
        %v1728 = vunpack.c.l.b16 %v1687
        %v1729 = vunpack.c.l.b16 %v1688
        %v1730 = vpack.c.b16 %v1715, %v1714
        %v1731 = vpack.c.b16 %v1717, %v1716
        %v1732 = vpack.c.b16 %v1719, %v1718
        %v1733 = vpack.c.b16 %v1721, %v1720
        %v1734 = vpack.c.b16 %v1723, %v1722
        %v1735 = vpack.c.b16 %v1725, %v1724
        %v1736 = vpack.c.b16 %v1727, %v1726
        %v1737 = vpack.c.b16 %v1729, %v1728
        %1746 = vmatprep.subr.bf16.mxu0 0
        %1747 = vmatpush1.bf16.msra.mxu0 %v1737
        %1748 = vmatprep.subr.bf16.mxu0 0
        %1749 = vmatpush1.bf16.msra.mxu0 %v1736
        %1750 = vmatprep.subr.bf16.mxu0 0
        %1751 = vmatpush1.bf16.msra.mxu0 %v1735
        %1752 = vmatprep.subr.bf16.mxu0 0
        %1753 = vmatpush1.bf16.msra.mxu0 %v1734
        %1754 = vmatprep.subr.bf16.mxu0 0
        %1755 = vmatpush1.bf16.msra.mxu0 %v1733
        %1756 = vmatprep.subr.bf16.mxu0 0
        %1757 = vmatpush1.bf16.msra.mxu0 %v1732
        %1758 = vmatprep.subr.bf16.mxu0 0
        %1759 = vmatpush1.bf16.msra.mxu0 %v1731
        %1760 = vmatprep.subr.bf16.mxu0 0
        %1761 = vmatpush1.bf16.msra.mxu0 %v1730
        %1762 = vmatprep.subr.bf16.mxu0 0
        %1763 = vmatpush2.bf16.msra.mxu0 0
        %1764 = vmatprep.subr.bf16.mxu0 0
        %1765 = vmatpush2.bf16.msra.mxu0 0
        %1766 = vmatprep.subr.bf16.mxu0 0
        %1767 = vmatpush2.bf16.msra.mxu0 0
        %1768 = vmatprep.subr.bf16.mxu0 0
        %1769 = vmatpush2.bf16.msra.mxu0 0
        %1770 = vmatprep.subr.bf16.mxu0 0
        %1771 = vmatpush2.bf16.msra.mxu0 0
        %1772 = vmatprep.subr.bf16.mxu0 0
        %1773 = vmatpush2.bf16.msra.mxu0 0
        %1774 = vmatprep.subr.bf16.mxu0 0
        %1775 = vmatpush2.bf16.msra.mxu0 0
        %1776 = vmatprep.subr.bf16.mxu0 0
        %1777 = vmatpush2.bf16.msra.mxu0 0
        %1778 = vmatprep.mubr.bf16.mxu0 0
        %1779 = vmatmul.mubr.bf16.gmra.mxu0 %v1691
        %v1780 = vpop.f32.mrf.mxu0
        %v1781 = vadd.f32 %v1696, %v1780
        %v1782 = vpop.f32.mrf.mxu0
        %v1783 = vpop.f32.mrf.mxu0
        %v1784 = vpop.f32.mrf.mxu0
        %1785 = vdwg.mxu0
        %v1786 = vrot.slane %v1781, 4
        %v1787 = vadd.f32 %v1781, %v1786
        %v1788 = vrot.slane %v1787, 2
        %v1789 = vadd.f32 %v1787, %v1788
        %v1790 = vrot.slane %v1789, 1
        %v1791 = vadd.f32 %v1789, %v1790
        %v1792 = vmul.f32 %v1791, %v712
        %v1793 = vmul.f32 %v1781, %v1781
        %v1794 = vrot.slane %v1793, 4
        %v1795 = vadd.f32 %v1793, %v1794
        %v1796 = vrot.slane %v1795, 2
        %v1797 = vadd.f32 %v1795, %v1796
        %v1798 = vrot.slane %v1797, 1
        %v1799 = vadd.f32 %v1797, %v1798
        %v1800 = vmul.f32 %v1799, %v712
        %v1801 = vmul.f32 %v1792, %v1792
        %v1802 = vsub.f32 %v1800, %v1801
        %v1803 = vmax.f32 %v1802, 0.0
        %v1804 = vadd.f32 %v1803, 1e-05
        %v1805 = vrsqrt.pop %v1804
        %s1806 = scalar_lea.vmem [#allocation11], 7
        %v1807 = vld [vmem:[%s1806] sm:$0x1]
        %v1808 = vmul.f32 %v1805, %v1807
        %s1809 = scalar_lea.vmem %s6, 7
        %v1810 = vld [vmem:[%s1809] sm:$0x1]
        %v1811 = vmul.f32 %v1792, %v1808
        %v1812 = vsub.f32 %v1810, %v1811
        %v1813 = vlaneseq
        %v1814 = vshrl.u32 %v1813, 7
        %v1815 = vsub.s32 0, %v1814
        %v1816 = vrot.slane %v1808, %v1815
        %v1817 = vmul.f32 %v1781, %v1816
        %v1819 = vlaneseq
        %v1820 = vshrl.u32 %v1819, 7
        %v1821 = vsub.s32 0, %v1820
        %v1822 = vrot.slane %v1812, %v1821
        %v1824 = vadd.f32 %v1817, %v1822
        %v1825 = vmax.f32 %v1824, 0.0
        %v1826 = vadd.f32 %v1825, %v1517
        %s1827 = scalar_lea.vmem [#allocation8], 512
        %v1828 = vld [vmem:[%s1827] sm:$0xf]
        %v1829 = vld [vmem:[%s1827 + $0x4] sm:$0xf]
        %v1830 = vld [vmem:[%s1827 + $0x8] sm:$0xf]
        %v1831 = vld [vmem:[%s1827 + $0xc] sm:$0xf]
        %v1832 = vld [vmem:[%s1827 + $0x10] sm:$0xf]
        %v1833 = vld [vmem:[%s1827 + $0x14] sm:$0xf]
        %v1834 = vld [vmem:[%s1827 + $0x18] sm:$0xf]
        %v1835 = vld [vmem:[%s1827 + $0x1c] sm:$0xf]
        %v1836 = vld [vmem:[%s1827 + $0x20] sm:$0xf]
        %v1837 = vld [vmem:[%s1827 + $0x24] sm:$0xf]
        %v1838 = vld [vmem:[%s1827 + $0x28] sm:$0xf]
        %v1839 = vld [vmem:[%s1827 + $0x2c] sm:$0xf]
        %v1840 = vld [vmem:[%s1827 + $0x30] sm:$0xf]
        %v1841 = vld [vmem:[%s1827 + $0x34] sm:$0xf]
        %v1842 = vld [vmem:[%s1827 + $0x38] sm:$0xf]
        %v1843 = vld [vmem:[%s1827 + $0x3c] sm:$0xf]
        %s1844 = scalar_lea.vmem [#allocation10], 8
        %v1845 = vld [vmem:[%s1844] sm:$0x1]
        %v1846 = vpack.c.bf16 %v1826, %v1826
        %v1848 = vlaneseq
        %v1849 = vshrl.u32 %v1848, 7
        %v1850 = vsub.s32 0, %v1849
        %v1851 = vrot.slane %v1845, %v1850
        %v1869 = vunpack.c.l.b16 %v1828
        %v1870 = vunpack.c.l.b16 %v1829
        %v1871 = vunpack.c.l.b16 %v1830
        %v1872 = vunpack.c.l.b16 %v1831
        %v1873 = vunpack.c.l.b16 %v1832
        %v1874 = vunpack.c.l.b16 %v1833
        %v1875 = vunpack.c.l.b16 %v1834
        %v1876 = vunpack.c.l.b16 %v1835
        %v1877 = vunpack.c.l.b16 %v1836
        %v1878 = vunpack.c.l.b16 %v1837
        %v1879 = vunpack.c.l.b16 %v1838
        %v1880 = vunpack.c.l.b16 %v1839
        %v1881 = vunpack.c.l.b16 %v1840
        %v1882 = vunpack.c.l.b16 %v1841
        %v1883 = vunpack.c.l.b16 %v1842
        %v1884 = vunpack.c.l.b16 %v1843
        %v1885 = vpack.c.b16 %v1870, %v1869
        %v1886 = vpack.c.b16 %v1872, %v1871
        %v1887 = vpack.c.b16 %v1874, %v1873
        %v1888 = vpack.c.b16 %v1876, %v1875
        %v1889 = vpack.c.b16 %v1878, %v1877
        %v1890 = vpack.c.b16 %v1880, %v1879
        %v1891 = vpack.c.b16 %v1882, %v1881
        %v1892 = vpack.c.b16 %v1884, %v1883
        %1901 = vmatprep.subr.bf16.mxu0 0
        %1902 = vmatpush1.bf16.msra.mxu0 %v1892
        %1903 = vmatprep.subr.bf16.mxu0 0
        %1904 = vmatpush1.bf16.msra.mxu0 %v1891
        %1905 = vmatprep.subr.bf16.mxu0 0
        %1906 = vmatpush1.bf16.msra.mxu0 %v1890
        %1907 = vmatprep.subr.bf16.mxu0 0
        %1908 = vmatpush1.bf16.msra.mxu0 %v1889
        %1909 = vmatprep.subr.bf16.mxu0 0
        %1910 = vmatpush1.bf16.msra.mxu0 %v1888
        %1911 = vmatprep.subr.bf16.mxu0 0
        %1912 = vmatpush1.bf16.msra.mxu0 %v1887
        %1913 = vmatprep.subr.bf16.mxu0 0
        %1914 = vmatpush1.bf16.msra.mxu0 %v1886
        %1915 = vmatprep.subr.bf16.mxu0 0
        %1916 = vmatpush1.bf16.msra.mxu0 %v1885
        %1917 = vmatprep.subr.bf16.mxu0 0
        %1918 = vmatpush2.bf16.msra.mxu0 0
        %1919 = vmatprep.subr.bf16.mxu0 0
        %1920 = vmatpush2.bf16.msra.mxu0 0
        %1921 = vmatprep.subr.bf16.mxu0 0
        %1922 = vmatpush2.bf16.msra.mxu0 0
        %1923 = vmatprep.subr.bf16.mxu0 0
        %1924 = vmatpush2.bf16.msra.mxu0 0
        %1925 = vmatprep.subr.bf16.mxu0 0
        %1926 = vmatpush2.bf16.msra.mxu0 0
        %1927 = vmatprep.subr.bf16.mxu0 0
        %1928 = vmatpush2.bf16.msra.mxu0 0
        %1929 = vmatprep.subr.bf16.mxu0 0
        %1930 = vmatpush2.bf16.msra.mxu0 0
        %1931 = vmatprep.subr.bf16.mxu0 0
        %1932 = vmatpush2.bf16.msra.mxu0 0
        %1933 = vmatprep.mubr.bf16.mxu0 0
        %1934 = vmatmul.mubr.bf16.gmra.mxu0 %v1846
        %v1935 = vpop.f32.mrf.mxu0
        %v1936 = vadd.f32 %v1851, %v1935
        %v1937 = vpop.f32.mrf.mxu0
        %v1938 = vpop.f32.mrf.mxu0
        %v1939 = vpop.f32.mrf.mxu0
        %1940 = vdwg.mxu0
        %v1941 = vrot.slane %v1936, 4
        %v1942 = vadd.f32 %v1936, %v1941
        %v1943 = vrot.slane %v1942, 2
        %v1944 = vadd.f32 %v1942, %v1943
        %v1945 = vrot.slane %v1944, 1
        %v1946 = vadd.f32 %v1944, %v1945
        %v1947 = vmul.f32 %v1946, %v712
        %v1948 = vmul.f32 %v1936, %v1936
        %v1949 = vrot.slane %v1948, 4
        %v1950 = vadd.f32 %v1948, %v1949
        %v1951 = vrot.slane %v1950, 2
        %v1952 = vadd.f32 %v1950, %v1951
        %v1953 = vrot.slane %v1952, 1
        %v1954 = vadd.f32 %v1952, %v1953
        %v1955 = vmul.f32 %v1954, %v712
        %v1956 = vmul.f32 %v1947, %v1947
        %v1957 = vsub.f32 %v1955, %v1956
        %v1958 = vmax.f32 %v1957, 0.0
        %v1959 = vadd.f32 %v1958, 1e-05
        %v1960 = vrsqrt.pop %v1959
        %s1961 = scalar_lea.vmem [#allocation11], 8
        %v1962 = vld [vmem:[%s1961] sm:$0x1]
        %v1963 = vmul.f32 %v1960, %v1962
        %s1964 = scalar_lea.vmem %s6, 8
        %v1965 = vld [vmem:[%s1964] sm:$0x1]
        %v1966 = vmul.f32 %v1947, %v1963
        %v1967 = vsub.f32 %v1965, %v1966
        %v1968 = vlaneseq
        %v1969 = vshrl.u32 %v1968, 7
        %v1970 = vsub.s32 0, %v1969
        %v1971 = vrot.slane %v1963, %v1970
        %v1972 = vmul.f32 %v1936, %v1971
        %v1974 = vlaneseq
        %v1975 = vshrl.u32 %v1974, 7
        %v1976 = vsub.s32 0, %v1975
        %v1977 = vrot.slane %v1967, %v1976
        %v1979 = vadd.f32 %v1972, %v1977
        %v1980 = vmax.f32 %v1979, 0.0
        %s1981 = scalar_lea.vmem [#allocation8], 576
        %v1982 = vld [vmem:[%s1981] sm:$0xf]
        %v1983 = vld [vmem:[%s1981 + $0x4] sm:$0xf]
        %v1984 = vld [vmem:[%s1981 + $0x8] sm:$0xf]
        %v1985 = vld [vmem:[%s1981 + $0xc] sm:$0xf]
        %v1986 = vld [vmem:[%s1981 + $0x10] sm:$0xf]
        %v1987 = vld [vmem:[%s1981 + $0x14] sm:$0xf]
        %v1988 = vld [vmem:[%s1981 + $0x18] sm:$0xf]
        %v1989 = vld [vmem:[%s1981 + $0x1c] sm:$0xf]
        %v1990 = vld [vmem:[%s1981 + $0x20] sm:$0xf]
        %v1991 = vld [vmem:[%s1981 + $0x24] sm:$0xf]
        %v1992 = vld [vmem:[%s1981 + $0x28] sm:$0xf]
        %v1993 = vld [vmem:[%s1981 + $0x2c] sm:$0xf]
        %v1994 = vld [vmem:[%s1981 + $0x30] sm:$0xf]
        %v1995 = vld [vmem:[%s1981 + $0x34] sm:$0xf]
        %v1996 = vld [vmem:[%s1981 + $0x38] sm:$0xf]
        %v1997 = vld [vmem:[%s1981 + $0x3c] sm:$0xf]
        %s1998 = scalar_lea.vmem [#allocation10], 9
        %v1999 = vld [vmem:[%s1998] sm:$0x1]
        %v2000 = vpack.c.bf16 %v1980, %v1980
        %v2002 = vlaneseq
        %v2003 = vshrl.u32 %v2002, 7
        %v2004 = vsub.s32 0, %v2003
        %v2005 = vrot.slane %v1999, %v2004
        %v2023 = vunpack.c.l.b16 %v1982
        %v2024 = vunpack.c.l.b16 %v1983
        %v2025 = vunpack.c.l.b16 %v1984
        %v2026 = vunpack.c.l.b16 %v1985
        %v2027 = vunpack.c.l.b16 %v1986
        %v2028 = vunpack.c.l.b16 %v1987
        %v2029 = vunpack.c.l.b16 %v1988
        %v2030 = vunpack.c.l.b16 %v1989
        %v2031 = vunpack.c.l.b16 %v1990
        %v2032 = vunpack.c.l.b16 %v1991
        %v2033 = vunpack.c.l.b16 %v1992
        %v2034 = vunpack.c.l.b16 %v1993
        %v2035 = vunpack.c.l.b16 %v1994
        %v2036 = vunpack.c.l.b16 %v1995
        %v2037 = vunpack.c.l.b16 %v1996
        %v2038 = vunpack.c.l.b16 %v1997
        %v2039 = vpack.c.b16 %v2024, %v2023
        %v2040 = vpack.c.b16 %v2026, %v2025
        %v2041 = vpack.c.b16 %v2028, %v2027
        %v2042 = vpack.c.b16 %v2030, %v2029
        %v2043 = vpack.c.b16 %v2032, %v2031
        %v2044 = vpack.c.b16 %v2034, %v2033
        %v2045 = vpack.c.b16 %v2036, %v2035
        %v2046 = vpack.c.b16 %v2038, %v2037
        %2055 = vmatprep.subr.bf16.mxu0 0
        %2056 = vmatpush1.bf16.msra.mxu0 %v2046
        %2057 = vmatprep.subr.bf16.mxu0 0
        %2058 = vmatpush1.bf16.msra.mxu0 %v2045
        %2059 = vmatprep.subr.bf16.mxu0 0
        %2060 = vmatpush1.bf16.msra.mxu0 %v2044
        %2061 = vmatprep.subr.bf16.mxu0 0
        %2062 = vmatpush1.bf16.msra.mxu0 %v2043
        %2063 = vmatprep.subr.bf16.mxu0 0
        %2064 = vmatpush1.bf16.msra.mxu0 %v2042
        %2065 = vmatprep.subr.bf16.mxu0 0
        %2066 = vmatpush1.bf16.msra.mxu0 %v2041
        %2067 = vmatprep.subr.bf16.mxu0 0
        %2068 = vmatpush1.bf16.msra.mxu0 %v2040
        %2069 = vmatprep.subr.bf16.mxu0 0
        %2070 = vmatpush1.bf16.msra.mxu0 %v2039
        %2071 = vmatprep.subr.bf16.mxu0 0
        %2072 = vmatpush2.bf16.msra.mxu0 0
        %2073 = vmatprep.subr.bf16.mxu0 0
        %2074 = vmatpush2.bf16.msra.mxu0 0
        %2075 = vmatprep.subr.bf16.mxu0 0
        %2076 = vmatpush2.bf16.msra.mxu0 0
        %2077 = vmatprep.subr.bf16.mxu0 0
        %2078 = vmatpush2.bf16.msra.mxu0 0
        %2079 = vmatprep.subr.bf16.mxu0 0
        %2080 = vmatpush2.bf16.msra.mxu0 0
        %2081 = vmatprep.subr.bf16.mxu0 0
        %2082 = vmatpush2.bf16.msra.mxu0 0
        %2083 = vmatprep.subr.bf16.mxu0 0
        %2084 = vmatpush2.bf16.msra.mxu0 0
        %2085 = vmatprep.subr.bf16.mxu0 0
        %2086 = vmatpush2.bf16.msra.mxu0 0
        %2087 = vmatprep.mubr.bf16.mxu0 0
        %2088 = vmatmul.mubr.bf16.gmra.mxu0 %v2000
        %v2089 = vpop.f32.mrf.mxu0
        %v2090 = vadd.f32 %v2005, %v2089
        %v2091 = vpop.f32.mrf.mxu0
        %v2092 = vpop.f32.mrf.mxu0
        %v2093 = vpop.f32.mrf.mxu0
        %2094 = vdwg.mxu0
        %v2095 = vrot.slane %v2090, 4
        %v2096 = vadd.f32 %v2090, %v2095
        %v2097 = vrot.slane %v2096, 2
        %v2098 = vadd.f32 %v2096, %v2097
        %v2099 = vrot.slane %v2098, 1
        %v2100 = vadd.f32 %v2098, %v2099
        %v2101 = vmul.f32 %v2100, %v712
        %v2102 = vmul.f32 %v2090, %v2090
        %v2103 = vrot.slane %v2102, 4
        %v2104 = vadd.f32 %v2102, %v2103
        %v2105 = vrot.slane %v2104, 2
        %v2106 = vadd.f32 %v2104, %v2105
        %v2107 = vrot.slane %v2106, 1
        %v2108 = vadd.f32 %v2106, %v2107
        %v2109 = vmul.f32 %v2108, %v712
        %v2110 = vmul.f32 %v2101, %v2101
        %v2111 = vsub.f32 %v2109, %v2110
        %v2112 = vmax.f32 %v2111, 0.0
        %v2113 = vadd.f32 %v2112, 1e-05
        %v2114 = vrsqrt.pop %v2113
        %s2115 = scalar_lea.vmem [#allocation11], 9
        %v2116 = vld [vmem:[%s2115] sm:$0x1]
        %v2117 = vmul.f32 %v2114, %v2116
        %s2118 = scalar_lea.vmem %s6, 9
        %v2119 = vld [vmem:[%s2118] sm:$0x1]
        %v2120 = vmul.f32 %v2101, %v2117
        %v2121 = vsub.f32 %v2119, %v2120
        %v2122 = vlaneseq
        %v2123 = vshrl.u32 %v2122, 7
        %v2124 = vsub.s32 0, %v2123
        %v2125 = vrot.slane %v2117, %v2124
        %v2126 = vmul.f32 %v2090, %v2125
        %v2128 = vlaneseq
        %v2129 = vshrl.u32 %v2128, 7
        %v2130 = vsub.s32 0, %v2129
        %v2131 = vrot.slane %v2121, %v2130
        %v2133 = vadd.f32 %v2126, %v2131
        %v2134 = vmax.f32 %v2133, 0.0
        %v2135 = vadd.f32 %v2134, %v1826
        %v2136 = vpack.c.bf16 %v2135, %v2135
        %v2138 = vlaneseq
        %v2139 = vshrl.u32 %v2138, 7
        %v2140 = vsub.s32 0, %v2139
        %v2141 = vrot.slane %v519, %v2140
        %v2159 = vunpack.c.l.b16 %v503
        %v2160 = vunpack.c.l.b16 %v504
        %v2161 = vunpack.c.l.b16 %v505
        %v2162 = vunpack.c.l.b16 %v506
        %v2163 = vunpack.c.l.b16 %v507
        %v2164 = vunpack.c.l.b16 %v508
        %v2165 = vunpack.c.l.b16 %v509
        %v2166 = vunpack.c.l.b16 %v510
        %v2167 = vunpack.c.l.b16 %v511
        %v2168 = vunpack.c.l.b16 %v512
        %v2169 = vunpack.c.l.b16 %v513
        %v2170 = vunpack.c.l.b16 %v514
        %v2171 = vunpack.c.l.b16 %v515
        %v2172 = vunpack.c.l.b16 %v516
        %v2173 = vunpack.c.l.b16 %v517
        %v2174 = vunpack.c.l.b16 %v518
        %v2175 = vpack.c.b16 %v2160, %v2159
        %v2176 = vpack.c.b16 %v2162, %v2161
        %v2177 = vpack.c.b16 %v2164, %v2163
        %v2178 = vpack.c.b16 %v2166, %v2165
        %v2179 = vpack.c.b16 %v2168, %v2167
        %v2180 = vpack.c.b16 %v2170, %v2169
        %v2181 = vpack.c.b16 %v2172, %v2171
        %v2182 = vpack.c.b16 %v2174, %v2173
        %2191 = vmatprep.subr.bf16.mxu0 0
        %2192 = vmatpush1.bf16.msra.mxu0 %v2182
        %2193 = vmatprep.subr.bf16.mxu0 0
        %2194 = vmatpush1.bf16.msra.mxu0 %v2181
        %2195 = vmatprep.subr.bf16.mxu0 0
        %2196 = vmatpush1.bf16.msra.mxu0 %v2180
        %2197 = vmatprep.subr.bf16.mxu0 0
        %2198 = vmatpush1.bf16.msra.mxu0 %v2179
        %2199 = vmatprep.subr.bf16.mxu0 0
        %2200 = vmatpush1.bf16.msra.mxu0 %v2178
        %2201 = vmatprep.subr.bf16.mxu0 0
        %2202 = vmatpush1.bf16.msra.mxu0 %v2177
        %2203 = vmatprep.subr.bf16.mxu0 0
        %2204 = vmatpush1.bf16.msra.mxu0 %v2176
        %2205 = vmatprep.subr.bf16.mxu0 0
        %2206 = vmatpush1.bf16.msra.mxu0 %v2175
        %2207 = vmatprep.subr.bf16.mxu0 0
        %2208 = vmatpush2.bf16.msra.mxu0 0
        %2209 = vmatprep.subr.bf16.mxu0 0
        %2210 = vmatpush2.bf16.msra.mxu0 0
        %2211 = vmatprep.subr.bf16.mxu0 0
        %2212 = vmatpush2.bf16.msra.mxu0 0
        %2213 = vmatprep.subr.bf16.mxu0 0
        %2214 = vmatpush2.bf16.msra.mxu0 0
        %2215 = vmatprep.subr.bf16.mxu0 0
        %2216 = vmatpush2.bf16.msra.mxu0 0
        %2217 = vmatprep.subr.bf16.mxu0 0
        %2218 = vmatpush2.bf16.msra.mxu0 0
        %2219 = vmatprep.subr.bf16.mxu0 0
        %2220 = vmatpush2.bf16.msra.mxu0 0
        %2221 = vmatprep.subr.bf16.mxu0 0
        %2222 = vmatpush2.bf16.msra.mxu0 0
        %2223 = vmatprep.mubr.bf16.mxu0 0
        %2224 = vmatmul.mubr.bf16.gmra.mxu0 %v2136
        %v2225 = vpop.f32.mrf.mxu0
        %v2226 = vadd.f32 %v2141, %v2225
        %v2227 = vpop.f32.mrf.mxu0
        %v2228 = vpop.f32.mrf.mxu0
        %v2229 = vpop.f32.mrf.mxu0
        %2230 = vdwg.mxu0
        %v2231 = vtanh.pop %v2226
        %v2232 = vmax.f32 %v2231, 0.0
        %v2233 = vmul.f32 %v2232, %v2232
        %vm2234 = vcmask 31744
        %v2235 = vsel %vm2234, %v2233, 0.0
        %2236 = vadd.xlane.f32.xlu0 %v2235
        %v2237 = vpop.xlane.xlu0 %2236
        %v2238 = vrot.slane %v2237, 4
        %v2239 = vadd.f32 %v2237, %v2238
        %v2240 = vrot.slane %v2239, 2
        %v2241 = vadd.f32 %v2239, %v2240
        %v2242 = vrot.slane %v2241, 1
        %v2243 = vadd.f32 %v2241, %v2242
        %v2244 = vrot.slane %v2135, 4
        %v2245 = vadd.f32 %v2135, %v2244
        %v2246 = vrot.slane %v2245, 2
        %v2247 = vadd.f32 %v2245, %v2246
        %v2248 = vrot.slane %v2247, 1
        %v2249 = vadd.f32 %v2247, %v2248
        %v2250 = vmul.f32 %v2243, %v2249
        %v2251 = vadd.f32 %v2250, %v2135
        %v2252 = vmul.f32 %v2243, 8.0
        %v2253 = vadd.f32 %v2252, 1.0
        %v2254 = vrcp.pop %v2253
        %v2255 = vmul.f32 1.0, %v2254
        %v2256 = vmul.f32 %v2251, %v2255
        %v2257 = vpack.c.bf16 %v2256, %v2256
        %v2259 = vlaneseq
        %v2260 = vshrl.u32 %v2259, 7
        %v2261 = vsub.s32 0, %v2260
        %v2262 = vrot.slane %v536, %v2261
        %v2280 = vunpack.c.l.b16 %v520
        %v2281 = vunpack.c.l.b16 %v521
        %v2282 = vunpack.c.l.b16 %v522
        %v2283 = vunpack.c.l.b16 %v523
        %v2284 = vunpack.c.l.b16 %v524
        %v2285 = vunpack.c.l.b16 %v525
        %v2286 = vunpack.c.l.b16 %v526
        %v2287 = vunpack.c.l.b16 %v527
        %v2288 = vunpack.c.l.b16 %v528
        %v2289 = vunpack.c.l.b16 %v529
        %v2290 = vunpack.c.l.b16 %v530
        %v2291 = vunpack.c.l.b16 %v531
        %v2292 = vunpack.c.l.b16 %v532
        %v2293 = vunpack.c.l.b16 %v533
        %v2294 = vunpack.c.l.b16 %v534
        %v2295 = vunpack.c.l.b16 %v535
        %v2296 = vpack.c.b16 %v2281, %v2280
        %v2297 = vpack.c.b16 %v2283, %v2282
        %v2298 = vpack.c.b16 %v2285, %v2284
        %v2299 = vpack.c.b16 %v2287, %v2286
        %v2300 = vpack.c.b16 %v2289, %v2288
        %v2301 = vpack.c.b16 %v2291, %v2290
        %v2302 = vpack.c.b16 %v2293, %v2292
        %v2303 = vpack.c.b16 %v2295, %v2294
        %2312 = vmatprep.subr.bf16.mxu0 0
        %2313 = vmatpush1.bf16.msra.mxu0 %v2303
        %2314 = vmatprep.subr.bf16.mxu0 0
        %2315 = vmatpush1.bf16.msra.mxu0 %v2302
        %2316 = vmatprep.subr.bf16.mxu0 0
        %2317 = vmatpush1.bf16.msra.mxu0 %v2301
        %2318 = vmatprep.subr.bf16.mxu0 0
        %2319 = vmatpush1.bf16.msra.mxu0 %v2300
        %2320 = vmatprep.subr.bf16.mxu0 0
        %2321 = vmatpush1.bf16.msra.mxu0 %v2299
        %2322 = vmatprep.subr.bf16.mxu0 0
        %2323 = vmatpush1.bf16.msra.mxu0 %v2298
        %2324 = vmatprep.subr.bf16.mxu0 0
        %2325 = vmatpush1.bf16.msra.mxu0 %v2297
        %2326 = vmatprep.subr.bf16.mxu0 0
        %2327 = vmatpush1.bf16.msra.mxu0 %v2296
        %2328 = vmatprep.subr.bf16.mxu0 0
        %2329 = vmatpush2.bf16.msra.mxu0 0
        %2330 = vmatprep.subr.bf16.mxu0 0
        %2331 = vmatpush2.bf16.msra.mxu0 0
        %2332 = vmatprep.subr.bf16.mxu0 0
        %2333 = vmatpush2.bf16.msra.mxu0 0
        %2334 = vmatprep.subr.bf16.mxu0 0
        %2335 = vmatpush2.bf16.msra.mxu0 0
        %2336 = vmatprep.subr.bf16.mxu0 0
        %2337 = vmatpush2.bf16.msra.mxu0 0
        %2338 = vmatprep.subr.bf16.mxu0 0
        %2339 = vmatpush2.bf16.msra.mxu0 0
        %2340 = vmatprep.subr.bf16.mxu0 0
        %2341 = vmatpush2.bf16.msra.mxu0 0
        %2342 = vmatprep.subr.bf16.mxu0 0
        %2343 = vmatpush2.bf16.msra.mxu0 0
        %2344 = vmatprep.mubr.bf16.mxu0 0
        %2345 = vmatmul.mubr.bf16.gmra.mxu0 %v2257
        %v2346 = vpop.f32.mrf.mxu0
        %v2347 = vadd.f32 %v2262, %v2346
        %v2348 = vpop.f32.mrf.mxu0
        %v2349 = vpop.f32.mrf.mxu0
        %v2350 = vpop.f32.mrf.mxu0
        %2351 = vdwg.mxu0
        %v2352 = vmax.f32 %v2347, 0.0
        %v2353 = vadd.f32 %v2352, %v2135
        %v2354 = vpack.c.bf16 %v2353, %v2353
        %2355 = vmatprep.subr.bf16.mxu0 0
        %2356 = vmatpush1.bf16.msra.mxu0 %v2182
        %2357 = vmatprep.subr.bf16.mxu0 0
        %2358 = vmatpush1.bf16.msra.mxu0 %v2181
        %2359 = vmatprep.subr.bf16.mxu0 0
        %2360 = vmatpush1.bf16.msra.mxu0 %v2180
        %2361 = vmatprep.subr.bf16.mxu0 0
        %2362 = vmatpush1.bf16.msra.mxu0 %v2179
        %2363 = vmatprep.subr.bf16.mxu0 0
        %2364 = vmatpush1.bf16.msra.mxu0 %v2178
        %2365 = vmatprep.subr.bf16.mxu0 0
        %2366 = vmatpush1.bf16.msra.mxu0 %v2177
        %2367 = vmatprep.subr.bf16.mxu0 0
        %2368 = vmatpush1.bf16.msra.mxu0 %v2176
        %2369 = vmatprep.subr.bf16.mxu0 0
        %2370 = vmatpush1.bf16.msra.mxu0 %v2175
        %2371 = vmatprep.subr.bf16.mxu0 0
        %2372 = vmatpush2.bf16.msra.mxu0 0
        %2373 = vmatprep.subr.bf16.mxu0 0
        %2374 = vmatpush2.bf16.msra.mxu0 0
        %2375 = vmatprep.subr.bf16.mxu0 0
        %2376 = vmatpush2.bf16.msra.mxu0 0
        %2377 = vmatprep.subr.bf16.mxu0 0
        %2378 = vmatpush2.bf16.msra.mxu0 0
        %2379 = vmatprep.subr.bf16.mxu0 0
        %2380 = vmatpush2.bf16.msra.mxu0 0
        %2381 = vmatprep.subr.bf16.mxu0 0
        %2382 = vmatpush2.bf16.msra.mxu0 0
        %2383 = vmatprep.subr.bf16.mxu0 0
        %2384 = vmatpush2.bf16.msra.mxu0 0
        %2385 = vmatprep.subr.bf16.mxu0 0
        %2386 = vmatpush2.bf16.msra.mxu0 0
        %2387 = vmatprep.mubr.bf16.mxu0 0
        %2388 = vmatmul.mubr.bf16.gmra.mxu0 %v2354
        %v2389 = vpop.f32.mrf.mxu0
        %v2390 = vadd.f32 %v2141, %v2389
        %v2391 = vpop.f32.mrf.mxu0
        %v2392 = vpop.f32.mrf.mxu0
        %v2393 = vpop.f32.mrf.mxu0
        %2394 = vdwg.mxu0
        %v2395 = vmin.f32 %v2390, 0.0
        %v2396 = vand.u32 2147483647, %v2390
        %v2397 = vsub.f32 0.0, %v2396
        %v2398 = vmul.f32 %v2397, 1.442695
        %v2399 = vpow.pop %v2398
        %v2400 = vadd.f32 %v2399, 1.0
        %v2401 = vlog2.pop %v2400
        %v2402 = vmul.f32 %v2401, 0.6931472
        %v2403 = vsub.f32 %v2395, %v2402
        %v2404 = vlaneseq
        %v2405 = vand.u32 %v2404, 127
        %v2406 = vrot.slane %v2403, 4
        %v2407 = vmax.f32 %v2403, %v2406
        %v2408 = vrot.slane %v2407, 2
        %v2409 = vmax.f32 %v2407, %v2408
        %v2410 = vrot.slane %v2409, 1
        %v2411 = vmax.f32 %v2409, %v2410
        %v2412 = vsub.f32 %v2403, %v2411
        %v2413 = vmul.f32 %v2412, 1.442695
        %v2414 = vpow.pop %v2413
        %v2415 = vrot.slane %v2414, 4
        %v2416 = vadd.f32 %v2414, %v2415
        %v2417 = vrot.slane %v2416, 2
        %v2418 = vadd.f32 %v2416, %v2417
        %v2419 = vrot.slane %v2418, 1
        %v2420 = vadd.f32 %v2418, %v2419
        %v2421 = vlog2.pop %v2420
        %v2422 = vmul.f32 %v2421, 0.6931472
        %v2423 = vadd.f32 %v2411, %v2422
        %v2424 = vsub.f32 %v2403, %v2423
        %vm2425 = vcmp.ge.s32.totalorder %v2405, 4
        %vm2426 = vcmp.lt.s32.totalorder %v2405, 8
        %vm2427 = vmand %vm2425, %vm2426
        %v2428 = vsel %vm2427, %v2403, -inf
        %2429 = vmax.xlane.f32.xlu0 %v2428
        %v2430 = vpop.xlane.xlu0 %2429
        %v2431 = vsub.f32 %v2428, %v2430
        %v2432 = vmul.f32 %v2431, 1.442695
        %v2433 = vpow.pop %v2432
        %2434 = vadd.xlane.f32.xlu0 %v2433
        %v2435 = vpop.xlane.xlu0 %2434
        %v2436 = vlog2.pop %v2435
        %v2437 = vmul.f32 %v2436, 0.6931472
        %v2438 = vadd.f32 %v2430, %v2437
        %v2439 = vsub.f32 %v2403, %v2438
        %vm2440 = vcmp.lt.s32.totalorder %v2405, 4
        %v2441 = vsel %vm2440, %v2424, %v2439
        %2442 = vst [vmem:[%s499] sm:$0xff] %v2441
        %s2443 = sand.u32 %s276, 1
        %s2444 = scalar_lea.sflag [#allocation4], %s2443
        %s2445 = sand.u32 %s276, 1
        %s2446 = smul.addr %s2445, 8
        %s2447 = scalar_lea.vmem [#allocation16], %s2446
        // Predicated region
        $region97: #{tpu_custom_call.1} parent=63 // pred_check
          %p2448 = pneg %p286
        $region98: #{tpu_custom_call.1} parent=63 // pred_check_branch
          %2450 = sbr.rel (%p2448) target = $region100
        $region99: #{tpu_custom_call.1} parent=63 // pred_region
          %s2452 = ssub.s32 128, 128
          %2453 = vsyncadd %s2444, %s2452
          %s2454 = smul.addr %s32, 128
          %s2455 = scalar_lea.hbm %s11, %s2454
          %s2457 = sshll.u32 %s2447, 4
          %s2458 = int_to_ptr.vmem [resolvable:$true] %s2457
          %2460 = dma.vmem_to_hbm [thread:$0]  %s2458, 128, %s2455, %s2444
        $region100: #{tpu_custom_call.1} parent=63 // pred_fallthru
          _
      $region64: #{tpu_custom_call.1} parent=5 // pred_fallthru
        _
      %p2461 = scmp.le.s32.totalorder 2, %s27
      // Predicated region
      $region101: #{tpu_custom_call.1} parent=5 // pred_check
        %p2462 = pneg %p2461
      $region102: #{tpu_custom_call.1} parent=5 // pred_check_branch
        %2464 = sbr.rel (%p2462) target = $region104
      $region103: #{tpu_custom_call.1} parent=5 // pred_region
        %s2465 = ssub.s32 %s27, 2
        // Predicated region
        $region105: #{tpu_custom_call.1} parent=103 // pred_check
          %p2466 = pneg %p292
        $region106: #{tpu_custom_call.1} parent=103 // pred_check_branch
          %2468 = sbr.rel (%p2466) target = $region108
        $region107: #{tpu_custom_call.1} parent=103 // pred_region
          %s2469 = sand.u32 %s277, 1
          %s2470 = scalar_lea.sflag [#allocation4], %s2469
          %s2471 = sand.u32 %s277, 1
          %s2472 = smul.addr %s2471, 8
          %s2473 = scalar_lea.vmem [#allocation16], %s2472
          %2474 = dma.done %s2470, 128
        $region108: #{tpu_custom_call.1} parent=103 // pred_fallthru
          _
      $region104: #{tpu_custom_call.1} parent=5 // pred_fallthru
        _
    $region6: #{tpu_custom_call.1} parent=1 // loop_footer
      %s31 = sadd.s32 1, %s27
    $region7: #{tpu_custom_call.1} parent=1 // loop_footer_branch
      %26 = sbr.rel target = $region3
    $region8: #{tpu_custom_call.1} parent=1 // loop_exit
      _
    %2475 = vsyncpa [#allocation3], 1
    %s2476 = scalar_lea.sflag [#allocation3], 1
    %2477 = vsyncpa %s2476, 1
    %2478 = vsyncpa [#allocation6], 1
    %2479 = vsyncpa [#allocation9], 1
    %2480 = vsyncpa [#allocation12], 1
    %2481 = vsyncpa [#allocation15], 1
    %2482 = vsyncpa [#allocation4], 1
    %s2483 = scalar_lea.sflag [#allocation4], 1
    %2484 = vsyncpa %s2483, 1

</llo_original>
